<compile_context>
chip_gen: v5e
topology: v5e:2x2
jax: 0.10.0
libtpu: 0.0.40
codegen_flags: <defaults>
</compile_context>

<pallas_src>
import functools

import jax
import jax.numpy as jnp
from jax.experimental import pallas as pl
from jax.experimental.pallas import tpu as pltpu

LANES = 128          # lane width (last dim of a vreg)
ROW_ALIGN = 16       # bf16 packed sublane tile -> keep row tiles 16-aligned


def _round_up(x, m):
    return ((x + m - 1) // m) * m


# ----------------------------------------------------------------------------
# Kernel 1: fused Conv2d(3x3, stride=2, pad=1) [+ folded BN] + LeakyReLU(0.2)
# ----------------------------------------------------------------------------
def _conv_kernel(xm_ref, xh_ref, w_ref, b_ref, o_ref, *, offs):
    """One M-tile of the conv, expressed as 4 accumulating tap matmuls.

    xm_ref : (TM, Kp)     bf16  main tile of space-to-depth input rows
    xh_ref : (TH, Kp)     bf16  halo rows (the rows just after the tile)
    w_ref  : (4, Kp, Cp)  bf16  per-tap weight matrices (Kp = pad(4*Cin, 128))
    b_ref  : (1, Cp)      f32   bias (BatchNorm folded)
    o_ref  : (TM, Cp)     bf16  output tile
    """
    tm = o_ref.shape[0]
    x = jnp.concatenate([xm_ref[...], xh_ref[...]], axis=0)    # (TM+TH, Kp)
    acc = None
    for t, off in enumerate(offs):                             # 4 static taps
        y_t = jnp.dot(x[off:off + tm, :], w_ref[t],
                      preferred_element_type=jnp.float32)
        acc = y_t if acc is None else acc + y_t
    y = acc + b_ref[...]
    o_ref[...] = jnp.maximum(y, 0.2 * y).astype(o_ref.dtype)   # LeakyReLU(0.2)


def _fold_bn(w, b, bn, eps=1e-5):
    """w: (Cout,Cin,3,3) torch layout -> (3,3,Cin,Cout) f32 with BN folded."""
    wk = jnp.transpose(w, (2, 3, 1, 0)).astype(jnp.float32)
    if bn is None:
        return wk, b.astype(jnp.float32)
    gamma, beta, mean, var = bn
    scale = gamma * jax.lax.rsqrt(var + eps)
    return wk * scale[None, None, None, :], (b - mean) * scale + beta


def _conv_vmem_bytes(tm, th, kp, cp):
    x_bytes = 2 * 2 * (tm + th) * kp    # double-buffered bf16 main + halo tiles
    w_bytes = 4 * kp * cp * 2           # resident bf16 tap weights
    o_bytes = 2 * 2 * tm * cp           # double-buffered bf16 output tiles
    return x_bytes + w_bytes + o_bytes


def conv3x3_s2_block(x, w, b, bn):
    """Fused Conv2d(3, stride=2, pad=1) [+BN] + LeakyReLU(0.2), NHWC.

    Returns (N, Ho, Wo, Cp) bf16 with Cp = round_up(Cout, 128); channels >=
    Cout are exact zeros, so they stay inert and are sliced off by the next
    layer.
    """
    cout, cin = int(w.shape[0]), int(w.shape[1])
    assert x.shape[3] >= cin, (x.shape, w.shape)
    x = x[..., :cin]                      # drop inert zero-padded channels
    n, h, wdt, _ = x.shape
    cp = _round_up(cout, LANES)
    kp = _round_up(4 * cin, LANES)
    ho = (h - 1) // 2 + 1
    wo = (wdt - 1) // 2 + 1

    # --- fold BN and build the 4 tap weights of the equivalent 2x2 / s1 conv
    #     on the space-to-depth input --------------------------------------
    wk, b_eff = _fold_bn(w, b, bn)                              # (3,3,Cin,Cout)
    wk_p = jnp.pad(wk, ((0, 1), (0, 1), (0, 0), (0, cp - cout)))
    # (ky,kx,ci,co) -> (dy,pi,dx,pj,ci,co) -> (dy,dx,pi,pj,ci,co)
    w4 = wk_p.reshape(2, 2, 2, 2, cin, cp).transpose(0, 2, 1, 3, 4, 5)
    w4 = w4.reshape(4, 4 * cin, cp)
    w4 = jnp.pad(w4, ((0, 0), (0, kp - 4 * cin), (0, 0))).astype(jnp.bfloat16)
    bp = jnp.pad(b_eff[None, :], ((0, 0), (0, cp - cout)))      # (1, Cp) f32

    # --- space-to-depth: (N,H,W,Cin) -> rows of width 4*Cin ----------------
    hp, wp = 2 * (ho + 1), 2 * (wo + 1)
    xp = jnp.pad(x, ((0, 0), (1, hp - h - 1), (1, wp - wdt - 1), (0, 0)))
    xs = xp.reshape(n, ho + 1, 2, wo + 1, 2, cin)
    xs = xs.transpose(0, 1, 3, 2, 4, 5).reshape(n * (ho + 1) * (wo + 1), 4 * cin)
    mv = n * (ho + 1) * (wo + 1)          # rows of the (padded) output grid

    # --- M tiling: TM-row tiles + a TH-row halo covering the tap shifts ----
    th = _round_up(wo + 2, ROW_ALIGN)
    tm = th * max(1, min(max(1, 512 // th), -(-mv // th)))
    # keep double-buffered tiles + resident weights inside a conservative
    # scoped-VMEM budget (v7x has only 64 MiB physical VMEM)
    while tm > th and _conv_vmem_bytes(tm, th, kp, cp) > 16 * 1024 * 1024:
        tm = th * max(1, (tm // th) // 2)
    n_tiles = -(-mv // tm)
    mx = n_tiles * tm + th
    x2 = jnp.pad(xs.astype(jnp.bfloat16), ((0, mx - mv), (0, kp - 4 * cin)))

    offs = (0, 1, wo + 1, wo + 2)         # tap row-offsets (dy,dx) in {0,1}^2
    mult = tm // th
    kernel = functools.partial(_conv_kernel, offs=offs)
    y = pl.pallas_call(
        kernel,
        out_shape=jax.ShapeDtypeStruct((n_tiles * tm, cp), jnp.bfloat16),
        grid=(n_tiles,),
        in_specs=[
            pl.BlockSpec((tm, kp), lambda i: (i, 0)),               # main tile
            pl.BlockSpec((th, kp), lambda i: ((i + 1) * mult, 0)),  # halo rows
            pl.BlockSpec((4, kp, cp), lambda i: (0, 0, 0)),         # weights
            pl.BlockSpec((1, cp), lambda i: (0, 0)),                # bias
        ],
        out_specs=pl.BlockSpec((tm, cp), lambda i: (i, 0)),
        compiler_params=pltpu.CompilerParams(
            dimension_semantics=("parallel",),
            vmem_limit_bytes=48 * 1024 * 1024,
        ),
    )(x2, x2, w4, bp)

    # valid outputs are positions (R < Ho, C < Wo) of the (Ho+1, Wo+1) grid
    y = y[:mv].reshape(n, ho + 1, wo + 1, cp)[:, :ho, :wo, :]
    return y


# ----------------------------------------------------------------------------
# Kernel 2: fused tail = all 1x1-spatial blocks + final Linear + Sigmoid
# ----------------------------------------------------------------------------
def _tail_kernel(x_ref, w_ref, b_ref, o_ref, *, n_layers):
    """Chain of centre-tap 'conv' layers + final Linear, fully fused.

    Activations never leave VMEM/vregs between layers.
    """
    h = x_ref[...]                                             # (B, Ct) bf16
    for l in range(n_layers):
        y = jnp.dot(h, w_ref[l], preferred_element_type=jnp.float32)
        y = y + b_ref[l]
        if l + 1 < n_layers:
            y = jnp.maximum(y, 0.2 * y)                        # LeakyReLU(0.2)
            h = y.astype(jnp.bfloat16)
        else:
            # Sigmoid: exp + approximate reciprocal both land on the EUP slot.
            o_ref[...] = pl.reciprocal(1.0 + jnp.exp(-y),
                                       approx=True).astype(o_ref.dtype)


def fused_tail(x2, tail_convs, fc_w, fc_b):
    """Fuse the remaining (1x1 spatial) blocks and Linear+Sigmoid in one call."""
    nb, c_in = x2.shape
    nbp = _round_up(max(nb, 8), 8)
    ct = max(LANES, _round_up(c_in, LANES))
    for (w, _, _) in tail_convs:
        ct = max(ct, _round_up(int(w.shape[0]), LANES),
                 _round_up(int(w.shape[1]), LANES))
    n_layers = len(tail_convs) + 1

    w_stack = jnp.zeros((n_layers, ct, ct), jnp.float32)
    b_stack = jnp.zeros((n_layers, 1, ct), jnp.float32)
    for l, (w, b, bn) in enumerate(tail_convs):
        cout, cin = int(w.shape[0]), int(w.shape[1])
        wk, b_eff = _fold_bn(w, b, bn)        # (3,3,Cin,Cout)
        w_stack = w_stack.at[l, :cin, :cout].set(wk[1, 1])  # centre tap only
        b_stack = b_stack.at[l, 0, :cout].set(b_eff)
    kin, kout = fc_w.shape
    w_stack = w_stack.at[n_layers - 1, :kin, :kout].set(fc_w.astype(jnp.float32))
    b_stack = b_stack.at[n_layers - 1, 0, :kout].set(fc_b.astype(jnp.float32))

    x_pad = jnp.pad(x2.astype(jnp.bfloat16),
                    ((0, nbp - nb), (0, ct - c_in)))
    kernel = functools.partial(_tail_kernel, n_layers=n_layers)
    out = pl.pallas_call(
        kernel,
        out_shape=jax.ShapeDtypeStruct((nbp, ct), jnp.float32),
        grid=(1,),
        in_specs=[
            pl.BlockSpec((nbp, ct), lambda i: (0, 0)),
            pl.BlockSpec((n_layers, ct, ct), lambda i: (0, 0, 0)),
            pl.BlockSpec((n_layers, 1, ct), lambda i: (0, 0, 0)),
        ],
        out_specs=pl.BlockSpec((nbp, ct), lambda i: (0, 0)),
        compiler_params=pltpu.CompilerParams(
            dimension_semantics=("arbitrary",),
            vmem_limit_bytes=32 * 1024 * 1024,
        ),
    )(x_pad, w_stack.astype(jnp.bfloat16), b_stack)
    return out[:nb, :kout]


# ----------------------------------------------------------------------------
# Parameters (deterministic, PyTorch-like fan-in uniform init)
# ----------------------------------------------------------------------------
def _conv_params(key, cin, cout):
    k_w, k_b = jax.random.split(key)
    bound = 1.0 / jnp.sqrt(cin * 9.0)
    w = jax.random.uniform(k_w, (cout, cin, 3, 3), jnp.float32, -bound, bound)
    b = jax.random.uniform(k_b, (cout,), jnp.float32, -bound, bound)
    return w, b


def _bn_params(key, c):
    k_g, k_b = jax.random.split(key)
    gamma = 1.0 + 0.1 * jax.random.normal(k_g, (c,), jnp.float32)
    beta = 0.1 * jax.random.normal(k_b, (c,), jnp.float32)
    mean = jnp.zeros((c,), jnp.float32)
    var = jnp.ones((c,), jnp.float32)
    return gamma, beta, mean, var


def init_discriminator(key, in_channels, features):
    f = features
    # every conv in the reference has kernel=3, stride=2, pad=1
    # (the Blocks class ignores its `stride` argument)
    layer_cfg = [
        (in_channels, f, False),   # first_layer
        (f, 2 * f, True),          # Block1
        (2 * f, 2 * f, True),      # Block2
        (2 * f, 4 * f, True),      # Block3
        (4 * f, 4 * f, True),      # Block4
        (4 * f, 8 * f, True),      # Block5
        (8 * f, 8 * f, True),      # Block6
        (8 * f, 8 * f, True),      # Block7
        (8 * f, 8 * f, True),      # Block8
        (8 * f, 4 * f, False),     # Block9
    ]
    params = {"convs": []}
    for i, (cin, cout, has_bn) in enumerate(layer_cfg):
        k = jax.random.fold_in(key, i)
        w, b = _conv_params(k, cin, cout)
        bn = _bn_params(jax.random.fold_in(k, 1000), cout) if has_bn else None
        params["convs"].append((w, b, bn))
    k_fin = jax.random.fold_in(key, 999)
    bound = 1.0 / jnp.sqrt(4.0 * f)
    params["fc_w"] = jax.random.uniform(
        jax.random.fold_in(k_fin, 0), (4 * f, 1), jnp.float32, -bound, bound)
    params["fc_b"] = jax.random.uniform(
        jax.random.fold_in(k_fin, 1), (1,), jnp.float32, -bound, bound)
    return params


# ----------------------------------------------------------------------------
# Forward pass (mirrors Discriminator.forward)
# ----------------------------------------------------------------------------
def discriminator_forward(params, x_nchw):
    x = jnp.transpose(x_nchw, (0, 2, 3, 1)).astype(jnp.float32)  # NCHW -> NHWC
    convs = params["convs"]
    idx = 0
    # spatial conv blocks (until the feature map collapses to 1x1)
    while idx < len(convs) and (x.shape[1] > 1 or x.shape[2] > 1):
        w, b, bn = convs[idx]
        x = conv3x3_s2_block(x, w, b, bn)
        idx += 1
    assert x.shape[1] == 1 and x.shape[2] == 1, (
        "spatial size must collapse to 1x1 before the final Linear; "
        f"got {x.shape}")
    x2 = x.reshape(x.shape[0], x.shape[3])
    # remaining blocks act on 1x1 maps (= centre-tap matmuls): fuse them with
    # the final Linear + Sigmoid into a single kernel
    return fused_tail(x2, convs[idx:], params["fc_w"], params["fc_b"])


# ----------------------------------------------------------------------------
# Pure-JAX reference (no Pallas) for the correctness check
# ----------------------------------------------------------------------------
def reference_forward(params, x_nchw):
    x = jnp.transpose(x_nchw, (0, 2, 3, 1)).astype(jnp.float32)
    for (w, b, bn) in params["convs"]:
        wk = jnp.transpose(w, (2, 3, 1, 0))  # HWIO
        y = jax.lax.conv_general_dilated(
            x, wk, window_strides=(2, 2), padding=((1, 1), (1, 1)),
            dimension_numbers=("NHWC", "HWIO", "NHWC"))
        y = y + b[None, None, None, :]
        if bn is not None:
            gamma, beta, mean, var = bn
            y = (y - mean) * (gamma * jax.lax.rsqrt(var + 1e-5)) + beta
        x = jnp.maximum(y, 0.2 * y)
    x = x.reshape(x.shape[0], -1)
    return jax.nn.sigmoid(x @ params["fc_w"] + params["fc_b"])


# ----------------------------------------------------------------------------
if __name__ == "__main__":
    key = jax.random.PRNGKey(0)
    in_channels, features = 3, 8
    batch, spatial = 2, 16

    params = init_discriminator(jax.random.fold_in(key, 1), in_channels, features)
    x = jax.random.normal(jax.random.fold_in(key, 2),
                          (batch, in_channels, spatial, spatial), jnp.float32)

    fwd = jax.jit(discriminator_forward)
    out = jax.block_until_ready(fwd(params, x))
    assert out.shape == (batch, 1)
    assert bool(jnp.all((out >= 0.0) & (out <= 1.0)))

    # correctness check against the pure-JAX reference (bf16 matmuls -> loose tol)
    ref = reference_forward(params, x)
    assert bool(jnp.allclose(out, ref, atol=3e-2)), (out, ref)

    print("KERNEL_OK")
</pallas_src>

<mosaic_0001>
module attributes {stable_mosaic.version = 11 : i64} {
  func.func @_conv_kernel(%arg0: i32, %arg1: memref<176x128xbf16, #tpu.memory_space<vmem>>, %arg2: memref<16x128xbf16, #tpu.memory_space<vmem>>, %arg3: memref<4x128x128xbf16, #tpu.memory_space<vmem>>, %arg4: memref<1x128xf32, #tpu.memory_space<vmem>>, %arg5: memref<176x128xbf16, #tpu.memory_space<vmem>>) attributes {dimension_semantics = [#tpu.dimension_semantics<parallel>], iteration_bounds = array<i64: 1>, scalar_prefetch = 0 : i64, scratch_operands = 0 : i64, tpu.core_type = #tpu.core_type<tc>, window_params = [{transform_indices = @transform_0, window_bounds = array<i64: 176, 128>}, {transform_indices = @transform_1, window_bounds = array<i64: 16, 128>}, {pipeline_mode = #tpu.pipeline_mode<synchronous>, transform_indices = @transform_2, window_bounds = array<i64: 4, 128, 128>}, {pipeline_mode = #tpu.pipeline_mode<synchronous>, transform_indices = @transform_3, window_bounds = array<i64: 1, 128>}, {transform_indices = @transform_4, window_bounds = array<i64: 176, 128>}]} {
    %c0 = arith.constant 0 : index
    %c0_0 = arith.constant 0 : index
    %0 = vector.load %arg1[%c0, %c0_0] : memref<176x128xbf16, #tpu.memory_space<vmem>>, vector<176x128xbf16>
    %c0_1 = arith.constant 0 : index
    %c0_2 = arith.constant 0 : index
    %1 = vector.load %arg2[%c0_1, %c0_2] : memref<16x128xbf16, #tpu.memory_space<vmem>>, vector<16x128xbf16>
    %2 = tpu.concatenate %0, %1 in 0 : vector<176x128xbf16>, vector<16x128xbf16> -> vector<192x128xbf16>
    %3 = vector.extract_strided_slice %2 {offsets = [0, 0], sizes = [176, 128], strides = [1, 1]} : vector<192x128xbf16> to vector<176x128xbf16>
    %c0_3 = arith.constant 0 : index
    %c0_4 = arith.constant 0 : index
    %c0_5 = arith.constant 0 : index
    %4 = vector.load %arg3[%c0_3, %c0_4, %c0_5] : memref<4x128x128xbf16, #tpu.memory_space<vmem>>, vector<1x128x128xbf16>
    %5 = vector.shape_cast %4 : vector<1x128x128xbf16> to vector<128x128xbf16>
    %cst = arith.constant dense<0.000000e+00> : vector<176x128xf32>
    %6 = tpu.matmul %3, %5, %cst {dimension_numbers = #tpu.dot_dimension_numbers<[1], [0], [0], [1], [0, 0, 1, 1], [], []>} : vector<176x128xbf16>, vector<128x128xbf16>, vector<176x128xf32> -> vector<176x128xf32>
    %7 = vector.extract_strided_slice %2 {offsets = [1, 0], sizes = [176, 128], strides = [1, 1]} : vector<192x128xbf16> to vector<176x128xbf16>
    %c1 = arith.constant 1 : index
    %c0_6 = arith.constant 0 : index
    %c0_7 = arith.constant 0 : index
    %8 = vector.load %arg3[%c1, %c0_6, %c0_7] : memref<4x128x128xbf16, #tpu.memory_space<vmem>>, vector<1x128x128xbf16>
    %9 = vector.shape_cast %8 : vector<1x128x128xbf16> to vector<128x128xbf16>
    %cst_8 = arith.constant dense<0.000000e+00> : vector<176x128xf32>
    %10 = tpu.matmul %7, %9, %cst_8 {dimension_numbers = #tpu.dot_dimension_numbers<[1], [0], [0], [1], [0, 0, 1, 1], [], []>} : vector<176x128xbf16>, vector<128x128xbf16>, vector<176x128xf32> -> vector<176x128xf32>
    %11 = arith.addf %6, %10 : vector<176x128xf32>
    %12 = vector.extract_strided_slice %2 {offsets = [9, 0], sizes = [176, 128], strides = [1, 1]} : vector<192x128xbf16> to vector<176x128xbf16>
    %c2 = arith.constant 2 : index
    %c0_9 = arith.constant 0 : index
    %c0_10 = arith.constant 0 : index
    %13 = vector.load %arg3[%c2, %c0_9, %c0_10] : memref<4x128x128xbf16, #tpu.memory_space<vmem>>, vector<1x128x128xbf16>
    %14 = vector.shape_cast %13 : vector<1x128x128xbf16> to vector<128x128xbf16>
    %cst_11 = arith.constant dense<0.000000e+00> : vector<176x128xf32>
    %15 = tpu.matmul %12, %14, %cst_11 {dimension_numbers = #tpu.dot_dimension_numbers<[1], [0], [0], [1], [0, 0, 1, 1], [], []>} : vector<176x128xbf16>, vector<128x128xbf16>, vector<176x128xf32> -> vector<176x128xf32>
    %16 = arith.addf %11, %15 : vector<176x128xf32>
    %17 = vector.extract_strided_slice %2 {offsets = [10, 0], sizes = [176, 128], strides = [1, 1]} : vector<192x128xbf16> to vector<176x128xbf16>
    %c3 = arith.constant 3 : index
    %c0_12 = arith.constant 0 : index
    %c0_13 = arith.constant 0 : index
    %18 = vector.load %arg3[%c3, %c0_12, %c0_13] : memref<4x128x128xbf16, #tpu.memory_space<vmem>>, vector<1x128x128xbf16>
    %19 = vector.shape_cast %18 : vector<1x128x128xbf16> to vector<128x128xbf16>
    %cst_14 = arith.constant dense<0.000000e+00> : vector<176x128xf32>
    %20 = tpu.matmul %17, %19, %cst_14 {dimension_numbers = #tpu.dot_dimension_numbers<[1], [0], [0], [1], [0, 0, 1, 1], [], []>} : vector<176x128xbf16>, vector<128x128xbf16>, vector<176x128xf32> -> vector<176x128xf32>
    %21 = arith.addf %16, %20 : vector<176x128xf32>
    %c0_15 = arith.constant 0 : index
    %c0_16 = arith.constant 0 : index
    %22 = vector.load %arg4[%c0_15, %c0_16] : memref<1x128xf32, #tpu.memory_space<vmem>>, vector<1x128xf32>
    %23 = vector.broadcast %22 : vector<1x128xf32> to vector<176x128xf32>
    %24 = arith.addf %21, %23 : vector<176x128xf32>
    %cst_17 = arith.constant 2.000000e-01 : f32
    %25 = vector.broadcast %cst_17 : f32 to vector<176x128xf32>
    %26 = arith.mulf %25, %24 : vector<176x128xf32>
    %27 = arith.maximumf %24, %26 : vector<176x128xf32>
    %28 = arith.truncf %27 : vector<176x128xf32> to vector<176x128xbf16>
    %c0_18 = arith.constant 0 : index
    %c0_19 = arith.constant 0 : index
    %29 = vector.load %arg5[%c0_18, %c0_19] : memref<176x128xbf16, #tpu.memory_space<vmem>>, vector<176x128xbf16>
    tpu.vector_store %arg5[%c0_18, %c0_19], %28 {strides = array<i32>} : memref<176x128xbf16, #tpu.memory_space<vmem>>, vector<176x128xbf16>,
    return
  }
  func.func @transform_0(%arg0: i32) -> (i32, i32) {
    %c0_i32 = arith.constant 0 : i32
    %c0_i32_0 = arith.constant 0 : i32
    return %arg0, %c0_i32 : i32, i32
  }
  func.func @transform_1(%arg0: i32) -> (i32, i32) {
    %c1_i32 = arith.constant 1 : i32
    %0 = arith.addi %arg0, %c1_i32 : i32
    %c11_i32 = arith.constant 11 : i32
    %1 = arith.muli %0, %c11_i32 : i32
    %c0_i32 = arith.constant 0 : i32
    %c0_i32_0 = arith.constant 0 : i32
    return %1, %c0_i32 : i32, i32
  }
  func.func @transform_2(%arg0: i32) -> (i32, i32, i32) {
    %c0_i32 = arith.constant 0 : i32
    %c0_i32_0 = arith.constant 0 : i32
    %c0_i32_1 = arith.constant 0 : i32
    %c0_i32_2 = arith.constant 0 : i32
    return %c0_i32, %c0_i32_0, %c0_i32_1 : i32, i32, i32
  }
  func.func @transform_3(%arg0: i32) -> (i32, i32) {
    %c0_i32 = arith.constant 0 : i32
    %c0_i32_0 = arith.constant 0 : i32
    %c0_i32_1 = arith.constant 0 : i32
    return %c0_i32, %c0_i32_0 : i32, i32
  }
  func.func @transform_4(%arg0: i32) -> (i32, i32) {
    %c0_i32 = arith.constant 0 : i32
    %c0_i32_0 = arith.constant 0 : i32
    return %arg0, %c0_i32 : i32, i32
  }
}

module attributes {stable_mosaic.version = 11 : i64} {
  func.func @_conv_kernel(%arg0: i32, %arg1: memref<64x128xbf16, #tpu.memory_space<vmem>>, %arg2: memref<16x128xbf16, #tpu.memory_space<vmem>>, %arg3: memref<4x128x128xbf16, #tpu.memory_space<vmem>>, %arg4: memref<1x128xf32, #tpu.memory_space<vmem>>, %arg5: memref<64x128xbf16, #tpu.memory_space<vmem>>) attributes {dimension_semantics = [#tpu.dimension_semantics<parallel>], iteration_bounds = array<i64: 1>, scalar_prefetch = 0 : i64, scratch_operands = 0 : i64, tpu.core_type = #tpu.core_type<tc>, window_params = [{transform_indices = @transform_0, window_bounds = array<i64: 64, 128>}, {transform_indices = @transform_1, window_bounds = array<i64: 16, 128>}, {pipeline_mode = #tpu.pipeline_mode<synchronous>, transform_indices = @transform_2, window_bounds = array<i64: 4, 128, 128>}, {pipeline_mode = #tpu.pipeline_mode<synchronous>, transform_indices = @transform_3, window_bounds = array<i64: 1, 128>}, {transform_indices = @transform_4, window_bounds = array<i64: 64, 128>}]} {
    %c0 = arith.constant 0 : index
    %c0_0 = arith.constant 0 : index
    %0 = vector.load %arg1[%c0, %c0_0] : memref<64x128xbf16, #tpu.memory_space<vmem>>, vector<64x128xbf16>
    %c0_1 = arith.constant 0 : index
    %c0_2 = arith.constant 0 : index
    %1 = vector.load %arg2[%c0_1, %c0_2] : memref<16x128xbf16, #tpu.memory_space<vmem>>, vector<16x128xbf16>
    %2 = tpu.concatenate %0, %1 in 0 : vector<64x128xbf16>, vector<16x128xbf16> -> vector<80x128xbf16>
    %3 = vector.extract_strided_slice %2 {offsets = [0, 0], sizes = [64, 128], strides = [1, 1]} : vector<80x128xbf16> to vector<64x128xbf16>
    %c0_3 = arith.constant 0 : index
    %c0_4 = arith.constant 0 : index
    %c0_5 = arith.constant 0 : index
    %4 = vector.load %arg3[%c0_3, %c0_4, %c0_5] : memref<4x128x128xbf16, #tpu.memory_space<vmem>>, vector<1x128x128xbf16>
    %5 = vector.shape_cast %4 : vector<1x128x128xbf16> to vector<128x128xbf16>
    %cst = arith.constant dense<0.000000e+00> : vector<64x128xf32>
    %6 = tpu.matmul %3, %5, %cst {dimension_numbers = #tpu.dot_dimension_numbers<[1], [0], [0], [1], [0, 0, 1, 1], [], []>} : vector<64x128xbf16>, vector<128x128xbf16>, vector<64x128xf32> -> vector<64x128xf32>
    %7 = vector.extract_strided_slice %2 {offsets = [1, 0], sizes = [64, 128], strides = [1, 1]} : vector<80x128xbf16> to vector<64x128xbf16>
    %c1 = arith.constant 1 : index
    %c0_6 = arith.constant 0 : index
    %c0_7 = arith.constant 0 : index
    %8 = vector.load %arg3[%c1, %c0_6, %c0_7] : memref<4x128x128xbf16, #tpu.memory_space<vmem>>, vector<1x128x128xbf16>
    %9 = vector.shape_cast %8 : vector<1x128x128xbf16> to vector<128x128xbf16>
    %cst_8 = arith.constant dense<0.000000e+00> : vector<64x128xf32>
    %10 = tpu.matmul %7, %9, %cst_8 {dimension_numbers = #tpu.dot_dimension_numbers<[1], [0], [0], [1], [0, 0, 1, 1], [], []>} : vector<64x128xbf16>, vector<128x128xbf16>, vector<64x128xf32> -> vector<64x128xf32>
    %11 = arith.addf %6, %10 : vector<64x128xf32>
    %12 = vector.extract_strided_slice %2 {offsets = [5, 0], sizes = [64, 128], strides = [1, 1]} : vector<80x128xbf16> to vector<64x128xbf16>
    %c2 = arith.constant 2 : index
    %c0_9 = arith.constant 0 : index
    %c0_10 = arith.constant 0 : index
    %13 = vector.load %arg3[%c2, %c0_9, %c0_10] : memref<4x128x128xbf16, #tpu.memory_space<vmem>>, vector<1x128x128xbf16>
    %14 = vector.shape_cast %13 : vector<1x128x128xbf16> to vector<128x128xbf16>
    %cst_11 = arith.constant dense<0.000000e+00> : vector<64x128xf32>
    %15 = tpu.matmul %12, %14, %cst_11 {dimension_numbers = #tpu.dot_dimension_numbers<[1], [0], [0], [1], [0, 0, 1, 1], [], []>} : vector<64x128xbf16>, vector<128x128xbf16>, vector<64x128xf32> -> vector<64x128xf32>
    %16 = arith.addf %11, %15 : vector<64x128xf32>
    %17 = vector.extract_strided_slice %2 {offsets = [6, 0], sizes = [64, 128], strides = [1, 1]} : vector<80x128xbf16> to vector<64x128xbf16>
    %c3 = arith.constant 3 : index
    %c0_12 = arith.constant 0 : index
    %c0_13 = arith.constant 0 : index
    %18 = vector.load %arg3[%c3, %c0_12, %c0_13] : memref<4x128x128xbf16, #tpu.memory_space<vmem>>, vector<1x128x128xbf16>
    %19 = vector.shape_cast %18 : vector<1x128x128xbf16> to vector<128x128xbf16>
    %cst_14 = arith.constant dense<0.000000e+00> : vector<64x128xf32>
    %20 = tpu.matmul %17, %19, %cst_14 {dimension_numbers = #tpu.dot_dimension_numbers<[1], [0], [0], [1], [0, 0, 1, 1], [], []>} : vector<64x128xbf16>, vector<128x128xbf16>, vector<64x128xf32> -> vector<64x128xf32>
    %21 = arith.addf %16, %20 : vector<64x128xf32>
    %c0_15 = arith.constant 0 : index
    %c0_16 = arith.constant 0 : index
    %22 = vector.load %arg4[%c0_15, %c0_16] : memref<1x128xf32, #tpu.memory_space<vmem>>, vector<1x128xf32>
    %23 = vector.broadcast %22 : vector<1x128xf32> to vector<64x128xf32>
    %24 = arith.addf %21, %23 : vector<64x128xf32>
    %cst_17 = arith.constant 2.000000e-01 : f32
    %25 = vector.broadcast %cst_17 : f32 to vector<64x128xf32>
    %26 = arith.mulf %25, %24 : vector<64x128xf32>
    %27 = arith.maximumf %24, %26 : vector<64x128xf32>
    %28 = arith.truncf %27 : vector<64x128xf32> to vector<64x128xbf16>
    %c0_18 = arith.constant 0 : index
    %c0_19 = arith.constant 0 : index
    %29 = vector.load %arg5[%c0_18, %c0_19] : memref<64x128xbf16, #tpu.memory_space<vmem>>, vector<64x128xbf16>
    tpu.vector_store %arg5[%c0_18, %c0_19], %28 {strides = array<i32>} : memref<64x128xbf16, #tpu.memory_space<vmem>>, vector<64x128xbf16>,
    return
  }
  func.func @transform_0(%arg0: i32) -> (i32, i32) {
    %c0_i32 = arith.constant 0 : i32
    %c0_i32_0 = arith.constant 0 : i32
    return %arg0, %c0_i32 : i32, i32
  }
  func.func @transform_1(%arg0: i32) -> (i32, i32) {
    %c1_i32 = arith.constant 1 : i32
    %0 = arith.addi %arg0, %c1_i32 : i32
    %c4_i32 = arith.constant 4 : i32
    %1 = arith.muli %0, %c4_i32 : i32
    %c0_i32 = arith.constant 0 : i32
    %c0_i32_0 = arith.constant 0 : i32
    return %1, %c0_i32 : i32, i32
  }
  func.func @transform_2(%arg0: i32) -> (i32, i32, i32) {
    %c0_i32 = arith.constant 0 : i32
    %c0_i32_0 = arith.constant 0 : i32
    %c0_i32_1 = arith.constant 0 : i32
    %c0_i32_2 = arith.constant 0 : i32
    return %c0_i32, %c0_i32_0, %c0_i32_1 : i32, i32, i32
  }
  func.func @transform_3(%arg0: i32) -> (i32, i32) {
    %c0_i32 = arith.constant 0 : i32
    %c0_i32_0 = arith.constant 0 : i32
    %c0_i32_1 = arith.constant 0 : i32
    return %c0_i32, %c0_i32_0 : i32, i32
  }
  func.func @transform_4(%arg0: i32) -> (i32, i32) {
    %c0_i32 = arith.constant 0 : i32
    %c0_i32_0 = arith.constant 0 : i32
    return %arg0, %c0_i32 : i32, i32
  }
}

module attributes {stable_mosaic.version = 11 : i64} {
  func.func @_conv_kernel(%arg0: i32, %arg1: memref<32x128xbf16, #tpu.memory_space<vmem>>, %arg2: memref<16x128xbf16, #tpu.memory_space<vmem>>, %arg3: memref<4x128x128xbf16, #tpu.memory_space<vmem>>, %arg4: memref<1x128xf32, #tpu.memory_space<vmem>>, %arg5: memref<32x128xbf16, #tpu.memory_space<vmem>>) attributes {dimension_semantics = [#tpu.dimension_semantics<parallel>], iteration_bounds = array<i64: 1>, scalar_prefetch = 0 : i64, scratch_operands = 0 : i64, tpu.core_type = #tpu.core_type<tc>, window_params = [{transform_indices = @transform_0, window_bounds = array<i64: 32, 128>}, {transform_indices = @transform_1, window_bounds = array<i64: 16, 128>}, {pipeline_mode = #tpu.pipeline_mode<synchronous>, transform_indices = @transform_2, window_bounds = array<i64: 4, 128, 128>}, {pipeline_mode = #tpu.pipeline_mode<synchronous>, transform_indices = @transform_3, window_bounds = array<i64: 1, 128>}, {transform_indices = @transform_4, window_bounds = array<i64: 32, 128>}]} {
    %c0 = arith.constant 0 : index
    %c0_0 = arith.constant 0 : index
    %0 = vector.load %arg1[%c0, %c0_0] : memref<32x128xbf16, #tpu.memory_space<vmem>>, vector<32x128xbf16>
    %c0_1 = arith.constant 0 : index
    %c0_2 = arith.constant 0 : index
    %1 = vector.load %arg2[%c0_1, %c0_2] : memref<16x128xbf16, #tpu.memory_space<vmem>>, vector<16x128xbf16>
    %2 = tpu.concatenate %0, %1 in 0 : vector<32x128xbf16>, vector<16x128xbf16> -> vector<48x128xbf16>
    %3 = vector.extract_strided_slice %2 {offsets = [0, 0], sizes = [32, 128], strides = [1, 1]} : vector<48x128xbf16> to vector<32x128xbf16>
    %c0_3 = arith.constant 0 : index
    %c0_4 = arith.constant 0 : index
    %c0_5 = arith.constant 0 : index
    %4 = vector.load %arg3[%c0_3, %c0_4, %c0_5] : memref<4x128x128xbf16, #tpu.memory_space<vmem>>, vector<1x128x128xbf16>
    %5 = vector.shape_cast %4 : vector<1x128x128xbf16> to vector<128x128xbf16>
    %cst = arith.constant dense<0.000000e+00> : vector<32x128xf32>
    %6 = tpu.matmul %3, %5, %cst {dimension_numbers = #tpu.dot_dimension_numbers<[1], [0], [0], [1], [0, 0, 1, 1], [], []>} : vector<32x128xbf16>, vector<128x128xbf16>, vector<32x128xf32> -> vector<32x128xf32>
    %7 = vector.extract_strided_slice %2 {offsets = [1, 0], sizes = [32, 128], strides = [1, 1]} : vector<48x128xbf16> to vector<32x128xbf16>
    %c1 = arith.constant 1 : index
    %c0_6 = arith.constant 0 : index
    %c0_7 = arith.constant 0 : index
    %8 = vector.load %arg3[%c1, %c0_6, %c0_7] : memref<4x128x128xbf16, #tpu.memory_space<vmem>>, vector<1x128x128xbf16>
    %9 = vector.shape_cast %8 : vector<1x128x128xbf16> to vector<128x128xbf16>
    %cst_8 = arith.constant dense<0.000000e+00> : vector<32x128xf32>
    %10 = tpu.matmul %7, %9, %cst_8 {dimension_numbers = #tpu.dot_dimension_numbers<[1], [0], [0], [1], [0, 0, 1, 1], [], []>} : vector<32x128xbf16>, vector<128x128xbf16>, vector<32x128xf32> -> vector<32x128xf32>
    %11 = arith.addf %6, %10 : vector<32x128xf32>
    %12 = vector.extract_strided_slice %2 {offsets = [3, 0], sizes = [32, 128], strides = [1, 1]} : vector<48x128xbf16> to vector<32x128xbf16>
    %c2 = arith.constant 2 : index
    %c0_9 = arith.constant 0 : index
    %c0_10 = arith.constant 0 : index
    %13 = vector.load %arg3[%c2, %c0_9, %c0_10] : memref<4x128x128xbf16, #tpu.memory_space<vmem>>, vector<1x128x128xbf16>
    %14 = vector.shape_cast %13 : vector<1x128x128xbf16> to vector<128x128xbf16>
    %cst_11 = arith.constant dense<0.000000e+00> : vector<32x128xf32>
    %15 = tpu.matmul %12, %14, %cst_11 {dimension_numbers = #tpu.dot_dimension_numbers<[1], [0], [0], [1], [0, 0, 1, 1], [], []>} : vector<32x128xbf16>, vector<128x128xbf16>, vector<32x128xf32> -> vector<32x128xf32>
    %16 = arith.addf %11, %15 : vector<32x128xf32>
    %17 = vector.extract_strided_slice %2 {offsets = [4, 0], sizes = [32, 128], strides = [1, 1]} : vector<48x128xbf16> to vector<32x128xbf16>
    %c3 = arith.constant 3 : index
    %c0_12 = arith.constant 0 : index
    %c0_13 = arith.constant 0 : index
    %18 = vector.load %arg3[%c3, %c0_12, %c0_13] : memref<4x128x128xbf16, #tpu.memory_space<vmem>>, vector<1x128x128xbf16>
    %19 = vector.shape_cast %18 : vector<1x128x128xbf16> to vector<128x128xbf16>
    %cst_14 = arith.constant dense<0.000000e+00> : vector<32x128xf32>
    %20 = tpu.matmul %17, %19, %cst_14 {dimension_numbers = #tpu.dot_dimension_numbers<[1], [0], [0], [1], [0, 0, 1, 1], [], []>} : vector<32x128xbf16>, vector<128x128xbf16>, vector<32x128xf32> -> vector<32x128xf32>
    %21 = arith.addf %16, %20 : vector<32x128xf32>
    %c0_15 = arith.constant 0 : index
    %c0_16 = arith.constant 0 : index
    %22 = vector.load %arg4[%c0_15, %c0_16] : memref<1x128xf32, #tpu.memory_space<vmem>>, vector<1x128xf32>
    %23 = vector.broadcast %22 : vector<1x128xf32> to vector<32x128xf32>
    %24 = arith.addf %21, %23 : vector<32x128xf32>
    %cst_17 = arith.constant 2.000000e-01 : f32
    %25 = vector.broadcast %cst_17 : f32 to vector<32x128xf32>
    %26 = arith.mulf %25, %24 : vector<32x128xf32>
    %27 = arith.maximumf %24, %26 : vector<32x128xf32>
    %28 = arith.truncf %27 : vector<32x128xf32> to vector<32x128xbf16>
    %c0_18 = arith.constant 0 : index
    %c0_19 = arith.constant 0 : index
    %29 = vector.load %arg5[%c0_18, %c0_19] : memref<32x128xbf16, #tpu.memory_space<vmem>>, vector<32x128xbf16>
    tpu.vector_store %arg5[%c0_18, %c0_19], %28 {strides = array<i32>} : memref<32x128xbf16, #tpu.memory_space<vmem>>, vector<32x128xbf16>,
    return
  }
  func.func @transform_0(%arg0: i32) -> (i32, i32) {
    %c0_i32 = arith.constant 0 : i32
    %c0_i32_0 = arith.constant 0 : i32
    return %arg0, %c0_i32 : i32, i32
  }
  func.func @transform_1(%arg0: i32) -> (i32, i32) {
    %c1_i32 = arith.constant 1 : i32
    %0 = arith.addi %arg0, %c1_i32 : i32
    %c2_i32 = arith.constant 2 : i32
    %1 = arith.muli %0, %c2_i32 : i32
    %c0_i32 = arith.constant 0 : i32
    %c0_i32_0 = arith.constant 0 : i32
    return %1, %c0_i32 : i32, i32
  }
  func.func @transform_2(%arg0: i32) -> (i32, i32, i32) {
    %c0_i32 = arith.constant 0 : i32
    %c0_i32_0 = arith.constant 0 : i32
    %c0_i32_1 = arith.constant 0 : i32
    %c0_i32_2 = arith.constant 0 : i32
    return %c0_i32, %c0_i32_0, %c0_i32_1 : i32, i32, i32
  }
  func.func @transform_3(%arg0: i32) -> (i32, i32) {
    %c0_i32 = arith.constant 0 : i32
    %c0_i32_0 = arith.constant 0 : i32
    %c0_i32_1 = arith.constant 0 : i32
    return %c0_i32, %c0_i32_0 : i32, i32
  }
  func.func @transform_4(%arg0: i32) -> (i32, i32) {
    %c0_i32 = arith.constant 0 : i32
    %c0_i32_0 = arith.constant 0 : i32
    return %arg0, %c0_i32 : i32, i32
  }
}

module attributes {stable_mosaic.version = 11 : i64} {
  func.func @_conv_kernel(%arg0: i32, %arg1: memref<16x128xbf16, #tpu.memory_space<vmem>>, %arg2: memref<16x128xbf16, #tpu.memory_space<vmem>>, %arg3: memref<4x128x128xbf16, #tpu.memory_space<vmem>>, %arg4: memref<1x128xf32, #tpu.memory_space<vmem>>, %arg5: memref<16x128xbf16, #tpu.memory_space<vmem>>) attributes {dimension_semantics = [#tpu.dimension_semantics<parallel>], iteration_bounds = array<i64: 1>, scalar_prefetch = 0 : i64, scratch_operands = 0 : i64, tpu.core_type = #tpu.core_type<tc>, window_params = [{transform_indices = @transform_0, window_bounds = array<i64: 16, 128>}, {transform_indices = @transform_1, window_bounds = array<i64: 16, 128>}, {pipeline_mode = #tpu.pipeline_mode<synchronous>, transform_indices = @transform_2, window_bounds = array<i64: 4, 128, 128>}, {pipeline_mode = #tpu.pipeline_mode<synchronous>, transform_indices = @transform_3, window_bounds = array<i64: 1, 128>}, {transform_indices = @transform_4, window_bounds = array<i64: 16, 128>}]} {
    %c0 = arith.constant 0 : index
    %c0_0 = arith.constant 0 : index
    %0 = vector.load %arg1[%c0, %c0_0] : memref<16x128xbf16, #tpu.memory_space<vmem>>, vector<16x128xbf16>
    %c0_1 = arith.constant 0 : index
    %c0_2 = arith.constant 0 : index
    %1 = vector.load %arg2[%c0_1, %c0_2] : memref<16x128xbf16, #tpu.memory_space<vmem>>, vector<16x128xbf16>
    %2 = tpu.concatenate %0, %1 in 0 : vector<16x128xbf16>, vector<16x128xbf16> -> vector<32x128xbf16>
    %3 = vector.extract_strided_slice %2 {offsets = [0, 0], sizes = [16, 128], strides = [1, 1]} : vector<32x128xbf16> to vector<16x128xbf16>
    %c0_3 = arith.constant 0 : index
    %c0_4 = arith.constant 0 : index
    %c0_5 = arith.constant 0 : index
    %4 = vector.load %arg3[%c0_3, %c0_4, %c0_5] : memref<4x128x128xbf16, #tpu.memory_space<vmem>>, vector<1x128x128xbf16>
    %5 = vector.shape_cast %4 : vector<1x128x128xbf16> to vector<128x128xbf16>
    %cst = arith.constant dense<0.000000e+00> : vector<16x128xf32>
    %6 = tpu.matmul %3, %5, %cst {dimension_numbers = #tpu.dot_dimension_numbers<[1], [0], [0], [1], [0, 0, 1, 1], [], []>} : vector<16x128xbf16>, vector<128x128xbf16>, vector<16x128xf32> -> vector<16x128xf32>
    %7 = vector.extract_strided_slice %2 {offsets = [1, 0], sizes = [16, 128], strides = [1, 1]} : vector<32x128xbf16> to vector<16x128xbf16>
    %c1 = arith.constant 1 : index
    %c0_6 = arith.constant 0 : index
    %c0_7 = arith.constant 0 : index
    %8 = vector.load %arg3[%c1, %c0_6, %c0_7] : memref<4x128x128xbf16, #tpu.memory_space<vmem>>, vector<1x128x128xbf16>
    %9 = vector.shape_cast %8 : vector<1x128x128xbf16> to vector<128x128xbf16>
    %cst_8 = arith.constant dense<0.000000e+00> : vector<16x128xf32>
    %10 = tpu.matmul %7, %9, %cst_8 {dimension_numbers = #tpu.dot_dimension_numbers<[1], [0], [0], [1], [0, 0, 1, 1], [], []>} : vector<16x128xbf16>, vector<128x128xbf16>, vector<16x128xf32> -> vector<16x128xf32>
    %11 = arith.addf %6, %10 : vector<16x128xf32>
    %12 = vector.extract_strided_slice %2 {offsets = [2, 0], sizes = [16, 128], strides = [1, 1]} : vector<32x128xbf16> to vector<16x128xbf16>
    %c2 = arith.constant 2 : index
    %c0_9 = arith.constant 0 : index
    %c0_10 = arith.constant 0 : index
    %13 = vector.load %arg3[%c2, %c0_9, %c0_10] : memref<4x128x128xbf16, #tpu.memory_space<vmem>>, vector<1x128x128xbf16>
    %14 = vector.shape_cast %13 : vector<1x128x128xbf16> to vector<128x128xbf16>
    %cst_11 = arith.constant dense<0.000000e+00> : vector<16x128xf32>
    %15 = tpu.matmul %12, %14, %cst_11 {dimension_numbers = #tpu.dot_dimension_numbers<[1], [0], [0], [1], [0, 0, 1, 1], [], []>} : vector<16x128xbf16>, vector<128x128xbf16>, vector<16x128xf32> -> vector<16x128xf32>
    %16 = arith.addf %11, %15 : vector<16x128xf32>
    %17 = vector.extract_strided_slice %2 {offsets = [3, 0], sizes = [16, 128], strides = [1, 1]} : vector<32x128xbf16> to vector<16x128xbf16>
    %c3 = arith.constant 3 : index
    %c0_12 = arith.constant 0 : index
    %c0_13 = arith.constant 0 : index
    %18 = vector.load %arg3[%c3, %c0_12, %c0_13] : memref<4x128x128xbf16, #tpu.memory_space<vmem>>, vector<1x128x128xbf16>
    %19 = vector.shape_cast %18 : vector<1x128x128xbf16> to vector<128x128xbf16>
    %cst_14 = arith.constant dense<0.000000e+00> : vector<16x128xf32>
    %20 = tpu.matmul %17, %19, %cst_14 {dimension_numbers = #tpu.dot_dimension_numbers<[1], [0], [0], [1], [0, 0, 1, 1], [], []>} : vector<16x128xbf16>, vector<128x128xbf16>, vector<16x128xf32> -> vector<16x128xf32>
    %21 = arith.addf %16, %20 : vector<16x128xf32>
    %c0_15 = arith.constant 0 : index
    %c0_16 = arith.constant 0 : index
    %22 = vector.load %arg4[%c0_15, %c0_16] : memref<1x128xf32, #tpu.memory_space<vmem>>, vector<1x128xf32>
    %23 = vector.broadcast %22 : vector<1x128xf32> to vector<16x128xf32>
    %24 = arith.addf %21, %23 : vector<16x128xf32>
    %cst_17 = arith.constant 2.000000e-01 : f32
    %25 = vector.broadcast %cst_17 : f32 to vector<16x128xf32>
    %26 = arith.mulf %25, %24 : vector<16x128xf32>
    %27 = arith.maximumf %24, %26 : vector<16x128xf32>
    %28 = arith.truncf %27 : vector<16x128xf32> to vector<16x128xbf16>
    %c0_18 = arith.constant 0 : index
    %c0_19 = arith.constant 0 : index
    %29 = vector.load %arg5[%c0_18, %c0_19] : memref<16x128xbf16, #tpu.memory_space<vmem>>, vector<16x128xbf16>
    tpu.vector_store %arg5[%c0_18, %c0_19], %28 {strides = array<i32>} : memref<16x128xbf16, #tpu.memory_space<vmem>>, vector<16x128xbf16>,
    return
  }
  func.func @transform_0(%arg0: i32) -> (i32, i32) {
    %c0_i32 = arith.constant 0 : i32
    %c0_i32_0 = arith.constant 0 : i32
    return %arg0, %c0_i32 : i32, i32
  }
  func.func @transform_1(%arg0: i32) -> (i32, i32) {
    %c1_i32 = arith.constant 1 : i32
    %0 = arith.addi %arg0, %c1_i32 : i32
    %c1_i32_0 = arith.constant 1 : i32
    %1 = arith.muli %0, %c1_i32_0 : i32
    %c0_i32 = arith.constant 0 : i32
    %c0_i32_1 = arith.constant 0 : i32
    return %1, %c0_i32 : i32, i32
  }
  func.func @transform_2(%arg0: i32) -> (i32, i32, i32) {
    %c0_i32 = arith.constant 0 : i32
    %c0_i32_0 = arith.constant 0 : i32
    %c0_i32_1 = arith.constant 0 : i32
    %c0_i32_2 = arith.constant 0 : i32
    return %c0_i32, %c0_i32_0, %c0_i32_1 : i32, i32, i32
  }
  func.func @transform_3(%arg0: i32) -> (i32, i32) {
    %c0_i32 = arith.constant 0 : i32
    %c0_i32_0 = arith.constant 0 : i32
    %c0_i32_1 = arith.constant 0 : i32
    return %c0_i32, %c0_i32_0 : i32, i32
  }
  func.func @transform_4(%arg0: i32) -> (i32, i32) {
    %c0_i32 = arith.constant 0 : i32
    %c0_i32_0 = arith.constant 0 : i32
    return %arg0, %c0_i32 : i32, i32
  }
}

module attributes {stable_mosaic.version = 11 : i64} {
  func.func @_tail_kernel(%arg0: i32, %arg1: memref<8x128xbf16, #tpu.memory_space<vmem>>, %arg2: memref<7x128x128xbf16, #tpu.memory_space<vmem>>, %arg3: memref<7x1x128xf32, #tpu.memory_space<vmem>>, %arg4: memref<8x128xf32, #tpu.memory_space<vmem>>) attributes {dimension_semantics = [#tpu.dimension_semantics<arbitrary>], iteration_bounds = array<i64: 1>, scalar_prefetch = 0 : i64, scratch_operands = 0 : i64, tpu.core_type = #tpu.core_type<tc>, window_params = [{pipeline_mode = #tpu.pipeline_mode<synchronous>, transform_indices = @transform_0, window_bounds = array<i64: 8, 128>}, {pipeline_mode = #tpu.pipeline_mode<synchronous>, transform_indices = @transform_1, window_bounds = array<i64: 7, 128, 128>}, {pipeline_mode = #tpu.pipeline_mode<synchronous>, transform_indices = @transform_2, window_bounds = array<i64: 7, 1, 128>}, {pipeline_mode = #tpu.pipeline_mode<synchronous>, transform_indices = @transform_3, window_bounds = array<i64: 8, 128>}]} {
    %c0 = arith.constant 0 : index
    %c0_0 = arith.constant 0 : index
    %0 = vector.load %arg1[%c0, %c0_0] : memref<8x128xbf16, #tpu.memory_space<vmem>>, vector<8x128xbf16>
    %c0_1 = arith.constant 0 : index
    %c0_2 = arith.constant 0 : index
    %c0_3 = arith.constant 0 : index
    %1 = vector.load %arg2[%c0_1, %c0_2, %c0_3] : memref<7x128x128xbf16, #tpu.memory_space<vmem>>, vector<1x128x128xbf16>
    %2 = vector.shape_cast %1 : vector<1x128x128xbf16> to vector<128x128xbf16>
    %cst = arith.constant dense<0.000000e+00> : vector<8x128xf32>
    %3 = tpu.matmul %0, %2, %cst {dimension_numbers = #tpu.dot_dimension_numbers<[1], [0], [0], [1], [0, 0, 1, 1], [], []>} : vector<8x128xbf16>, vector<128x128xbf16>, vector<8x128xf32> -> vector<8x128xf32>
    %c0_4 = arith.constant 0 : index
    %c0_5 = arith.constant 0 : index
    %c0_6 = arith.constant 0 : index
    %4 = vector.load %arg3[%c0_4, %c0_5, %c0_6] : memref<7x1x128xf32, #tpu.memory_space<vmem>>, vector<1x1x128xf32>
    %5 = vector.shape_cast %4 : vector<1x1x128xf32> to vector<1x128xf32>
    %6 = vector.broadcast %5 : vector<1x128xf32> to vector<8x128xf32>
    %7 = arith.addf %3, %6 : vector<8x128xf32>
    %cst_7 = arith.constant 2.000000e-01 : f32
    %8 = vector.broadcast %cst_7 : f32 to vector<8x128xf32>
    %9 = arith.mulf %8, %7 : vector<8x128xf32>
    %10 = arith.maximumf %7, %9 : vector<8x128xf32>
    %11 = arith.truncf %10 : vector<8x128xf32> to vector<8x128xbf16>
    %c1 = arith.constant 1 : index
    %c0_8 = arith.constant 0 : index
    %c0_9 = arith.constant 0 : index
    %12 = vector.load %arg2[%c1, %c0_8, %c0_9] : memref<7x128x128xbf16, #tpu.memory_space<vmem>>, vector<1x128x128xbf16>
    %13 = vector.shape_cast %12 : vector<1x128x128xbf16> to vector<128x128xbf16>
    %cst_10 = arith.constant dense<0.000000e+00> : vector<8x128xf32>
    %14 = tpu.matmul %11, %13, %cst_10 {dimension_numbers = #tpu.dot_dimension_numbers<[1], [0], [0], [1], [0, 0, 1, 1], [], []>} : vector<8x128xbf16>, vector<128x128xbf16>, vector<8x128xf32> -> vector<8x128xf32>
    %c1_11 = arith.constant 1 : index
    %c0_12 = arith.constant 0 : index
    %c0_13 = arith.constant 0 : index
    %15 = vector.load %arg3[%c1_11, %c0_12, %c0_13] : memref<7x1x128xf32, #tpu.memory_space<vmem>>, vector<1x1x128xf32>
    %16 = vector.shape_cast %15 : vector<1x1x128xf32> to vector<1x128xf32>
    %17 = vector.broadcast %16 : vector<1x128xf32> to vector<8x128xf32>
    %18 = arith.addf %14, %17 : vector<8x128xf32>
    %cst_14 = arith.constant 2.000000e-01 : f32
    %19 = vector.broadcast %cst_14 : f32 to vector<8x128xf32>
    %20 = arith.mulf %19, %18 : vector<8x128xf32>
    %21 = arith.maximumf %18, %20 : vector<8x128xf32>
    %22 = arith.truncf %21 : vector<8x128xf32> to vector<8x128xbf16>
    %c2 = arith.constant 2 : index
    %c0_15 = arith.constant 0 : index
    %c0_16 = arith.constant 0 : index
    %23 = vector.load %arg2[%c2, %c0_15, %c0_16] : memref<7x128x128xbf16, #tpu.memory_space<vmem>>, vector<1x128x128xbf16>
    %24 = vector.shape_cast %23 : vector<1x128x128xbf16> to vector<128x128xbf16>
    %cst_17 = arith.constant dense<0.000000e+00> : vector<8x128xf32>
    %25 = tpu.matmul %22, %24, %cst_17 {dimension_numbers = #tpu.dot_dimension_numbers<[1], [0], [0], [1], [0, 0, 1, 1], [], []>} : vector<8x128xbf16>, vector<128x128xbf16>, vector<8x128xf32> -> vector<8x128xf32>
    %c2_18 = arith.constant 2 : index
    %c0_19 = arith.constant 0 : index
    %c0_20 = arith.constant 0 : index
    %26 = vector.load %arg3[%c2_18, %c0_19, %c0_20] : memref<7x1x128xf32, #tpu.memory_space<vmem>>, vector<1x1x128xf32>
    %27 = vector.shape_cast %26 : vector<1x1x128xf32> to vector<1x128xf32>
    %28 = vector.broadcast %27 : vector<1x128xf32> to vector<8x128xf32>
    %29 = arith.addf %25, %28 : vector<8x128xf32>
    %cst_21 = arith.constant 2.000000e-01 : f32
    %30 = vector.broadcast %cst_21 : f32 to vector<8x128xf32>
    %31 = arith.mulf %30, %29 : vector<8x128xf32>
    %32 = arith.maximumf %29, %31 : vector<8x128xf32>
    %33 = arith.truncf %32 : vector<8x128xf32> to vector<8x128xbf16>
    %c3 = arith.constant 3 : index
    %c0_22 = arith.constant 0 : index
    %c0_23 = arith.constant 0 : index
    %34 = vector.load %arg2[%c3, %c0_22, %c0_23] : memref<7x128x128xbf16, #tpu.memory_space<vmem>>, vector<1x128x128xbf16>
    %35 = vector.shape_cast %34 : vector<1x128x128xbf16> to vector<128x128xbf16>
    %cst_24 = arith.constant dense<0.000000e+00> : vector<8x128xf32>
    %36 = tpu.matmul %33, %35, %cst_24 {dimension_numbers = #tpu.dot_dimension_numbers<[1], [0], [0], [1], [0, 0, 1, 1], [], []>} : vector<8x128xbf16>, vector<128x128xbf16>, vector<8x128xf32> -> vector<8x128xf32>
    %c3_25 = arith.constant 3 : index
    %c0_26 = arith.constant 0 : index
    %c0_27 = arith.constant 0 : index
    %37 = vector.load %arg3[%c3_25, %c0_26, %c0_27] : memref<7x1x128xf32, #tpu.memory_space<vmem>>, vector<1x1x128xf32>
    %38 = vector.shape_cast %37 : vector<1x1x128xf32> to vector<1x128xf32>
    %39 = vector.broadcast %38 : vector<1x128xf32> to vector<8x128xf32>
    %40 = arith.addf %36, %39 : vector<8x128xf32>
    %cst_28 = arith.constant 2.000000e-01 : f32
    %41 = vector.broadcast %cst_28 : f32 to vector<8x128xf32>
    %42 = arith.mulf %41, %40 : vector<8x128xf32>
    %43 = arith.maximumf %40, %42 : vector<8x128xf32>
    %44 = arith.truncf %43 : vector<8x128xf32> to vector<8x128xbf16>
    %c4 = arith.constant 4 : index
    %c0_29 = arith.constant 0 : index
    %c0_30 = arith.constant 0 : index
    %45 = vector.load %arg2[%c4, %c0_29, %c0_30] : memref<7x128x128xbf16, #tpu.memory_space<vmem>>, vector<1x128x128xbf16>
    %46 = vector.shape_cast %45 : vector<1x128x128xbf16> to vector<128x128xbf16>
    %cst_31 = arith.constant dense<0.000000e+00> : vector<8x128xf32>
    %47 = tpu.matmul %44, %46, %cst_31 {dimension_numbers = #tpu.dot_dimension_numbers<[1], [0], [0], [1], [0, 0, 1, 1], [], []>} : vector<8x128xbf16>, vector<128x128xbf16>, vector<8x128xf32> -> vector<8x128xf32>
    %c4_32 = arith.constant 4 : index
    %c0_33 = arith.constant 0 : index
    %c0_34 = arith.constant 0 : index
    %48 = vector.load %arg3[%c4_32, %c0_33, %c0_34] : memref<7x1x128xf32, #tpu.memory_space<vmem>>, vector<1x1x128xf32>
    %49 = vector.shape_cast %48 : vector<1x1x128xf32> to vector<1x128xf32>
    %50 = vector.broadcast %49 : vector<1x128xf32> to vector<8x128xf32>
    %51 = arith.addf %47, %50 : vector<8x128xf32>
    %cst_35 = arith.constant 2.000000e-01 : f32
    %52 = vector.broadcast %cst_35 : f32 to vector<8x128xf32>
    %53 = arith.mulf %52, %51 : vector<8x128xf32>
    %54 = arith.maximumf %51, %53 : vector<8x128xf32>
    %55 = arith.truncf %54 : vector<8x128xf32> to vector<8x128xbf16>
    %c5 = arith.constant 5 : index
    %c0_36 = arith.constant 0 : index
    %c0_37 = arith.constant 0 : index
    %56 = vector.load %arg2[%c5, %c0_36, %c0_37] : memref<7x128x128xbf16, #tpu.memory_space<vmem>>, vector<1x128x128xbf16>
    %57 = vector.shape_cast %56 : vector<1x128x128xbf16> to vector<128x128xbf16>
    %cst_38 = arith.constant dense<0.000000e+00> : vector<8x128xf32>
    %58 = tpu.matmul %55, %57, %cst_38 {dimension_numbers = #tpu.dot_dimension_numbers<[1], [0], [0], [1], [0, 0, 1, 1], [], []>} : vector<8x128xbf16>, vector<128x128xbf16>, vector<8x128xf32> -> vector<8x128xf32>
    %c5_39 = arith.constant 5 : index
    %c0_40 = arith.constant 0 : index
    %c0_41 = arith.constant 0 : index
    %59 = vector.load %arg3[%c5_39, %c0_40, %c0_41] : memref<7x1x128xf32, #tpu.memory_space<vmem>>, vector<1x1x128xf32>
    %60 = vector.shape_cast %59 : vector<1x1x128xf32> to vector<1x128xf32>
    %61 = vector.broadcast %60 : vector<1x128xf32> to vector<8x128xf32>
    %62 = arith.addf %58, %61 : vector<8x128xf32>
    %cst_42 = arith.constant 2.000000e-01 : f32
    %63 = vector.broadcast %cst_42 : f32 to vector<8x128xf32>
    %64 = arith.mulf %63, %62 : vector<8x128xf32>
    %65 = arith.maximumf %62, %64 : vector<8x128xf32>
    %66 = arith.truncf %65 : vector<8x128xf32> to vector<8x128xbf16>
    %c6 = arith.constant 6 : index
    %c0_43 = arith.constant 0 : index
    %c0_44 = arith.constant 0 : index
    %67 = vector.load %arg2[%c6, %c0_43, %c0_44] : memref<7x128x128xbf16, #tpu.memory_space<vmem>>, vector<1x128x128xbf16>
    %68 = vector.shape_cast %67 : vector<1x128x128xbf16> to vector<128x128xbf16>
    %cst_45 = arith.constant dense<0.000000e+00> : vector<8x128xf32>
    %69 = tpu.matmul %66, %68, %cst_45 {dimension_numbers = #tpu.dot_dimension_numbers<[1], [0], [0], [1], [0, 0, 1, 1], [], []>} : vector<8x128xbf16>, vector<128x128xbf16>, vector<8x128xf32> -> vector<8x128xf32>
    %c6_46 = arith.constant 6 : index
    %c0_47 = arith.constant 0 : index
    %c0_48 = arith.constant 0 : index
    %70 = vector.load %arg3[%c6_46, %c0_47, %c0_48] : memref<7x1x128xf32, #tpu.memory_space<vmem>>, vector<1x1x128xf32>
    %71 = vector.shape_cast %70 : vector<1x1x128xf32> to vector<1x128xf32>
    %72 = vector.broadcast %71 : vector<1x128xf32> to vector<8x128xf32>
    %73 = arith.addf %69, %72 : vector<8x128xf32>
    %cst_49 = arith.constant 0.000000e+00 : f32
    %74 = vector.broadcast %cst_49 : f32 to vector<8x128xf32>
    %75 = arith.subf %74, %73 : vector<8x128xf32>
    %76 = math.exp %75 : vector<8x128xf32>
    %cst_50 = arith.constant 1.000000e+00 : f32
    %77 = vector.broadcast %cst_50 : f32 to vector<8x128xf32>
    %78 = arith.addf %77, %76 : vector<8x128xf32>
    %79 = tpu.reciprocal %78 {approx = true} : vector<8x128xf32> -> vector<8x128xf32>
    %c0_51 = arith.constant 0 : index
    %c0_52 = arith.constant 0 : index
    %80 = vector.load %arg4[%c0_51, %c0_52] : memref<8x128xf32, #tpu.memory_space<vmem>>, vector<8x128xf32>
    tpu.vector_store %arg4[%c0_51, %c0_52], %79 {strides = array<i32>} : memref<8x128xf32, #tpu.memory_space<vmem>>, vector<8x128xf32>,
    return
  }
  func.func @transform_0(%arg0: i32) -> (i32, i32) {
    %c0_i32 = arith.constant 0 : i32
    %c0_i32_0 = arith.constant 0 : i32
    %c0_i32_1 = arith.constant 0 : i32
    return %c0_i32, %c0_i32_0 : i32, i32
  }
  func.func @transform_1(%arg0: i32) -> (i32, i32, i32) {
    %c0_i32 = arith.constant 0 : i32
    %c0_i32_0 = arith.constant 0 : i32
    %c0_i32_1 = arith.constant 0 : i32
    %c0_i32_2 = arith.constant 0 : i32
    return %c0_i32, %c0_i32_0, %c0_i32_1 : i32, i32, i32
  }
  func.func @transform_2(%arg0: i32) -> (i32, i32, i32) {
    %c0_i32 = arith.constant 0 : i32
    %c0_i32_0 = arith.constant 0 : i32
    %c0_i32_1 = arith.constant 0 : i32
    %c0_i32_2 = arith.constant 0 : i32
    return %c0_i32, %c0_i32_0, %c0_i32_1 : i32, i32, i32
  }
  func.func @transform_3(%arg0: i32) -> (i32, i32) {
    %c0_i32 = arith.constant 0 : i32
    %c0_i32_0 = arith.constant 0 : i32
    %c0_i32_1 = arith.constant 0 : i32
    return %c0_i32, %c0_i32_0 : i32, i32
  }
}

</mosaic_0001>

<llo_original>
// kernel: discriminator_forward.5
$region0: #{discriminator_forward.5}
  #allocation0 [shape = 'u32[]', space=smem, size = 0x4, offset = 0x4, fixed_abs, tag = 'smem constant byte address 0x4 - core index']
  #allocation1 [shape = 'u32[72,128]{1,0:T(1,128)}', space=vmem, size = 0x9000, scoped, tag = 'internal scratch']
  %s0 = inlined_call_operand.vmem [shape: bf16[192,128], index: 0, kind: input, shape index: {}, may-alias: {0,1}]
  %s1 = inlined_call_operand.vmem [shape: bf16[192,128], index: 1, kind: input, shape index: {}, may-alias: {0,1}]
  %s2 = inlined_call_operand.vmem [shape: bf16[4,128,128], index: 2, kind: input, shape index: {}]
  %s3 = inlined_call_operand.vmem [shape: f32[1,128], index: 3, kind: input, shape index: {}]
  %s4 = inlined_call_operand.vmem [shape: bf16[176,128], index: 4, kind: output, shape index: {}]
  %s5 = sld [smem:[#allocation0]]
  $region26: #{discriminator_forward.5} parent=0
    _
  %s7 = ssub.s32 1, %s5
  %s8 = scalar_select 0, %s7, %s5
  // Predicated region
  $region2: #{discriminator_forward.5} parent=0 // pred_check
    _
  $region3: #{discriminator_forward.5} parent=0 // pred_check_branch
    %10 = sbr.rel (0) target = $region5
  $region4: #{discriminator_forward.5} parent=0 // pred_region
    _
  $region5: #{discriminator_forward.5} parent=0 // pred_fallthru
    _
  // Predicated region
  $region6: #{discriminator_forward.5} parent=0 // pred_check
    _
  $region7: #{discriminator_forward.5} parent=0 // pred_check_branch
    %12 = sbr.rel (0) target = $region9
  $region8: #{discriminator_forward.5} parent=0 // pred_region
    %s13 = sadd.s32 0, 1
    %s14 = smul.u32 %s13, 11
    %s15 = smul.u32 2, %s14
    %p16 = scmp.lt.s32.totalorder %s15, 23
    %s17 = scalar_select %p16, %s15, 23
    %s18 = smul.addr %s17, 4
    %s19 = scalar_lea.vmem %s1, %s18
    %s20 = sadd.s32 0, 1
    %s21 = smul.u32 %s20, 11
    %s22 = smul.u32 2, %s21
  $region9: #{discriminator_forward.5} parent=0 // pred_fallthru
    _
  // Predicated region
  $region10: #{discriminator_forward.5} parent=0 // pred_check
    _
  $region11: #{discriminator_forward.5} parent=0 // pred_check_branch
    %24 = sbr.rel (0) target = $region13
  $region12: #{discriminator_forward.5} parent=0 // pred_region
    _
  $region13: #{discriminator_forward.5} parent=0 // pred_fallthru
    _
  // Predicated region
  $region14: #{discriminator_forward.5} parent=0 // pred_check
    _
  $region15: #{discriminator_forward.5} parent=0 // pred_check_branch
    %26 = sbr.rel (0) target = $region17
  $region16: #{discriminator_forward.5} parent=0 // pred_region
    _
  $region17: #{discriminator_forward.5} parent=0 // pred_fallthru
    _
  %s27 = sadd.s32 0, 1
  %s28 = smul.u32 %s27, 11
  %s29 = smul.u32 2, %s28
  %p30 = scmp.lt.s32.totalorder %s29, 23
  %s31 = scalar_select %p30, %s29, 23
  %s32 = smul.addr %s31, 4
  %s33 = scalar_lea.vmem %s1, %s32
  %s34 = sadd.s32 0, 1
  %s35 = smul.u32 %s34, 11
  %s36 = smul.u32 2, %s35
  %p37 = scmp.lt.s32.totalorder %s36, 23
  %s38 = scalar_select %p37, %s36, 23
  %s39 = smul.addr %s38, 4
  %s40 = scalar_lea.vmem %s1, %s39
  %s41 = sadd.s32 0, 1
  %s42 = smul.u32 %s41, 11
  %s43 = smul.u32 2, %s42
  %v44 = vld [vmem:[%s0] sm:$0xf]
  %v45 = vld [vmem:[%s0 + $0x4] sm:$0xf]
  %v46 = vld [vmem:[%s0 + $0x8] sm:$0xf]
  %v47 = vld [vmem:[%s0 + $0xc] sm:$0xf]
  %v48 = vld [vmem:[%s0 + $0x10] sm:$0xf]
  %v49 = vld [vmem:[%s0 + $0x14] sm:$0xf]
  %v50 = vld [vmem:[%s0 + $0x18] sm:$0xf]
  %v51 = vld [vmem:[%s0 + $0x1c] sm:$0xf]
  %v52 = vld [vmem:[%s0 + $0x20] sm:$0xf]
  %v53 = vld [vmem:[%s0 + $0x24] sm:$0xf]
  %v54 = vld [vmem:[%s0 + $0x28] sm:$0xf]
  %v55 = vld [vmem:[%s0 + $0x2c] sm:$0xf]
  %v56 = vld [vmem:[%s0 + $0x30] sm:$0xf]
  %v57 = vld [vmem:[%s0 + $0x34] sm:$0xf]
  %v58 = vld [vmem:[%s0 + $0x38] sm:$0xf]
  %v59 = vld [vmem:[%s0 + $0x3c] sm:$0xf]
  %v60 = vld [vmem:[%s0 + $0x40] sm:$0xf]
  %v61 = vld [vmem:[%s0 + $0x44] sm:$0xf]
  %v62 = vld [vmem:[%s0 + $0x48] sm:$0xf]
  %v63 = vld [vmem:[%s0 + $0x4c] sm:$0xf]
  %v64 = vld [vmem:[%s0 + $0x50] sm:$0xf]
  %v65 = vld [vmem:[%s0 + $0x54] sm:$0xf]
  %v66 = vld [vmem:[%s40] sm:$0xf]
  %v67 = vld [vmem:[%s40 + $0x4] sm:$0xf]
  %v90 = vunpack.c.l.b16 %v44
  %v91 = vunpack.c.l.b16 %v45
  %v92 = vunpack.c.l.b16 %v46
  %v93 = vunpack.c.l.b16 %v47
  %v94 = vunpack.c.l.b16 %v48
  %v95 = vunpack.c.l.b16 %v49
  %v96 = vunpack.c.l.b16 %v50
  %v97 = vunpack.c.l.b16 %v51
  %v98 = vunpack.c.l.b16 %v52
  %v99 = vunpack.c.l.b16 %v53
  %v100 = vunpack.c.l.b16 %v54
  %v101 = vunpack.c.l.b16 %v55
  %v102 = vunpack.c.l.b16 %v56
  %v103 = vunpack.c.l.b16 %v57
  %v104 = vunpack.c.l.b16 %v58
  %v105 = vunpack.c.l.b16 %v59
  %v106 = vunpack.c.l.b16 %v60
  %v107 = vunpack.c.l.b16 %v61
  %v108 = vunpack.c.l.b16 %v62
  %v109 = vunpack.c.l.b16 %v63
  %v110 = vunpack.c.l.b16 %v64
  %v111 = vunpack.c.l.b16 %v65
  %v112 = vpack.c.b16 %v91, %v90
  %v113 = vpack.c.b16 %v93, %v92
  %v114 = vpack.c.b16 %v95, %v94
  %v115 = vpack.c.b16 %v97, %v96
  %v116 = vpack.c.b16 %v99, %v98
  %v117 = vpack.c.b16 %v101, %v100
  %v118 = vpack.c.b16 %v103, %v102
  %v119 = vpack.c.b16 %v105, %v104
  %v120 = vpack.c.b16 %v107, %v106
  %v121 = vpack.c.b16 %v109, %v108
  %v122 = vpack.c.b16 %v111, %v110
  %v136 = vunpack.c.l.b16 %v66
  %v137 = vunpack.c.l.b16 %v67
  %v138 = vpack.c.b16 %v137, %v136
  %v139 = vld [vmem:[%s2] sm:$0xf]
  %v140 = vld [vmem:[%s2 + $0x4] sm:$0xf]
  %v141 = vld [vmem:[%s2 + $0x8] sm:$0xf]
  %v142 = vld [vmem:[%s2 + $0xc] sm:$0xf]
  %v143 = vld [vmem:[%s2 + $0x10] sm:$0xf]
  %v144 = vld [vmem:[%s2 + $0x14] sm:$0xf]
  %v145 = vld [vmem:[%s2 + $0x18] sm:$0xf]
  %v146 = vld [vmem:[%s2 + $0x1c] sm:$0xf]
  %v147 = vld [vmem:[%s2 + $0x20] sm:$0xf]
  %v148 = vld [vmem:[%s2 + $0x24] sm:$0xf]
  %v149 = vld [vmem:[%s2 + $0x28] sm:$0xf]
  %v150 = vld [vmem:[%s2 + $0x2c] sm:$0xf]
  %v151 = vld [vmem:[%s2 + $0x30] sm:$0xf]
  %v152 = vld [vmem:[%s2 + $0x34] sm:$0xf]
  %v153 = vld [vmem:[%s2 + $0x38] sm:$0xf]
  %v154 = vld [vmem:[%s2 + $0x3c] sm:$0xf]
  %s155 = scalar_lea.vmem %s2, 64
  %v156 = vld [vmem:[%s155] sm:$0xf]
  %v157 = vld [vmem:[%s155 + $0x4] sm:$0xf]
  %v158 = vld [vmem:[%s155 + $0x8] sm:$0xf]
  %v159 = vld [vmem:[%s155 + $0xc] sm:$0xf]
  %v160 = vld [vmem:[%s155 + $0x10] sm:$0xf]
  %v161 = vld [vmem:[%s155 + $0x14] sm:$0xf]
  %v162 = vld [vmem:[%s155 + $0x18] sm:$0xf]
  %v163 = vld [vmem:[%s155 + $0x1c] sm:$0xf]
  %v164 = vld [vmem:[%s155 + $0x20] sm:$0xf]
  %v165 = vld [vmem:[%s155 + $0x24] sm:$0xf]
  %v166 = vld [vmem:[%s155 + $0x28] sm:$0xf]
  %v167 = vld [vmem:[%s155 + $0x2c] sm:$0xf]
  %v168 = vld [vmem:[%s155 + $0x30] sm:$0xf]
  %v169 = vld [vmem:[%s155 + $0x34] sm:$0xf]
  %v170 = vld [vmem:[%s155 + $0x38] sm:$0xf]
  %v171 = vld [vmem:[%s155 + $0x3c] sm:$0xf]
  %vm172 = vsmask.f32 7424
  %v174 = vshrl.u32 %v112, 16
  %v176 = vshll.u32 %v112, 16
  %v178 = vrot.slane %v176, 1
  %v179 = vor.u32 %v174, %v178
  %v181 = vshll.u32 %v113, 16
  %v183 = vrot.slane %v181, 1
  %v184 = vsel %vm172, %v179, %v183
  %v185 = vshrl.u32 %v113, 16
  %v187 = vor.u32 %v185, %v183
  %v189 = vshll.u32 %v114, 16
  %v191 = vrot.slane %v189, 1
  %v192 = vsel %vm172, %v187, %v191
  %v193 = vshrl.u32 %v114, 16
  %v195 = vor.u32 %v193, %v191
  %v197 = vshll.u32 %v115, 16
  %v199 = vrot.slane %v197, 1
  %v200 = vsel %vm172, %v195, %v199
  %v201 = vshrl.u32 %v115, 16
  %v203 = vor.u32 %v201, %v199
  %v205 = vshll.u32 %v116, 16
  %v207 = vrot.slane %v205, 1
  %v208 = vsel %vm172, %v203, %v207
  %v209 = vshrl.u32 %v116, 16
  %v211 = vor.u32 %v209, %v207
  %v213 = vshll.u32 %v117, 16
  %v215 = vrot.slane %v213, 1
  %v216 = vsel %vm172, %v211, %v215
  %v217 = vshrl.u32 %v117, 16
  %v219 = vor.u32 %v217, %v215
  %v221 = vshll.u32 %v118, 16
  %v223 = vrot.slane %v221, 1
  %v224 = vsel %vm172, %v219, %v223
  %v225 = vshrl.u32 %v118, 16
  %v227 = vor.u32 %v225, %v223
  %v229 = vshll.u32 %v119, 16
  %v231 = vrot.slane %v229, 1
  %v232 = vsel %vm172, %v227, %v231
  %v233 = vshrl.u32 %v119, 16
  %v235 = vor.u32 %v233, %v231
  %v237 = vshll.u32 %v120, 16
  %v239 = vrot.slane %v237, 1
  %v240 = vsel %vm172, %v235, %v239
  %v241 = vshrl.u32 %v120, 16
  %v243 = vor.u32 %v241, %v239
  %v245 = vshll.u32 %v121, 16
  %v247 = vrot.slane %v245, 1
  %v248 = vsel %vm172, %v243, %v247
  %v249 = vshrl.u32 %v121, 16
  %v251 = vor.u32 %v249, %v247
  %v253 = vshll.u32 %v122, 16
  %v255 = vrot.slane %v253, 1
  %v256 = vsel %vm172, %v251, %v255
  %v257 = vshrl.u32 %v122, 16
  %v259 = vor.u32 %v257, %v255
  %v261 = vshll.u32 %v138, 16
  %v263 = vrot.slane %v261, 1
  %v264 = vsel %vm172, %v259, %v263
  %v292 = vunpack.c.l.b16 %v156
  %v293 = vunpack.c.l.b16 %v157
  %v294 = vunpack.c.l.b16 %v158
  %v295 = vunpack.c.l.b16 %v159
  %v296 = vunpack.c.l.b16 %v160
  %v297 = vunpack.c.l.b16 %v161
  %v298 = vunpack.c.l.b16 %v162
  %v299 = vunpack.c.l.b16 %v163
  %v300 = vunpack.c.l.b16 %v164
  %v301 = vunpack.c.l.b16 %v165
  %v302 = vunpack.c.l.b16 %v166
  %v303 = vunpack.c.l.b16 %v167
  %v304 = vunpack.c.l.b16 %v168
  %v305 = vunpack.c.l.b16 %v169
  %v306 = vunpack.c.l.b16 %v170
  %v307 = vunpack.c.l.b16 %v171
  %v308 = vpack.c.b16 %v293, %v292
  %v309 = vpack.c.b16 %v295, %v294
  %v310 = vpack.c.b16 %v297, %v296
  %v311 = vpack.c.b16 %v299, %v298
  %v312 = vpack.c.b16 %v301, %v300
  %v313 = vpack.c.b16 %v303, %v302
  %v314 = vpack.c.b16 %v305, %v304
  %v315 = vpack.c.b16 %v307, %v306
  %324 = vmatpush.bf16.msra.mxu0 %v315
  %325 = vmatpush.bf16.msra.mxu0 %v314
  %326 = vmatpush.bf16.msra.mxu0 %v313
  %327 = vmatpush.bf16.msra.mxu0 %v312
  %328 = vmatpush.bf16.msra.mxu0 %v311
  %329 = vmatpush.bf16.msra.mxu0 %v310
  %330 = vmatpush.bf16.msra.mxu0 %v309
  %331 = vmatpush.bf16.msra.mxu0 %v308
  %332 = vmatmul.bf16.gmra.mxu0 %v184
  %v333 = vpop.f32.mrf.mxu0
  %v334 = vadd.f32 0.0, %v333
  %v335 = vpop.f32.mrf.mxu0
  %v336 = vadd.f32 0.0, %v335
  %337 = vmatmul.bf16.gmra.mxu0 %v192
  %v338 = vpop.f32.mrf.mxu0
  %v339 = vadd.f32 0.0, %v338
  %v340 = vpop.f32.mrf.mxu0
  %v341 = vadd.f32 0.0, %v340
  %342 = vmatmul.bf16.gmra.mxu0 %v200
  %v343 = vpop.f32.mrf.mxu0
  %v344 = vadd.f32 0.0, %v343
  %v345 = vpop.f32.mrf.mxu0
  %v346 = vadd.f32 0.0, %v345
  %347 = vmatmul.bf16.gmra.mxu0 %v208
  %v348 = vpop.f32.mrf.mxu0
  %v349 = vadd.f32 0.0, %v348
  %v350 = vpop.f32.mrf.mxu0
  %v351 = vadd.f32 0.0, %v350
  %352 = vmatmul.bf16.gmra.mxu0 %v216
  %v353 = vpop.f32.mrf.mxu0
  %v354 = vadd.f32 0.0, %v353
  %v355 = vpop.f32.mrf.mxu0
  %v356 = vadd.f32 0.0, %v355
  %357 = vmatmul.bf16.gmra.mxu0 %v224
  %v358 = vpop.f32.mrf.mxu0
  %v359 = vadd.f32 0.0, %v358
  %v360 = vpop.f32.mrf.mxu0
  %v361 = vadd.f32 0.0, %v360
  %362 = vmatmul.bf16.gmra.mxu0 %v232
  %v363 = vpop.f32.mrf.mxu0
  %v364 = vadd.f32 0.0, %v363
  %v365 = vpop.f32.mrf.mxu0
  %v366 = vadd.f32 0.0, %v365
  %367 = vmatmul.bf16.gmra.mxu0 %v240
  %v368 = vpop.f32.mrf.mxu0
  %v369 = vadd.f32 0.0, %v368
  %v370 = vpop.f32.mrf.mxu0
  %v371 = vadd.f32 0.0, %v370
  %372 = vmatmul.bf16.gmra.mxu0 %v248
  %v373 = vpop.f32.mrf.mxu0
  %v374 = vadd.f32 0.0, %v373
  %v375 = vpop.f32.mrf.mxu0
  %v376 = vadd.f32 0.0, %v375
  %377 = vmatmul.bf16.gmra.mxu0 %v256
  %v378 = vpop.f32.mrf.mxu0
  %v379 = vadd.f32 0.0, %v378
  %v380 = vpop.f32.mrf.mxu0
  %v381 = vadd.f32 0.0, %v380
  %382 = vmatmul.bf16.gmra.mxu0 %v264
  %v383 = vpop.f32.mrf.mxu0
  %v384 = vadd.f32 0.0, %v383
  %v385 = vpop.f32.mrf.mxu0
  %v386 = vadd.f32 0.0, %v385
  %387 = vdwg.mxu0
  %v404 = vunpack.c.l.b16 %v139
  %v405 = vunpack.c.l.b16 %v140
  %v406 = vunpack.c.l.b16 %v141
  %v407 = vunpack.c.l.b16 %v142
  %v408 = vunpack.c.l.b16 %v143
  %v409 = vunpack.c.l.b16 %v144
  %v410 = vunpack.c.l.b16 %v145
  %v411 = vunpack.c.l.b16 %v146
  %v412 = vunpack.c.l.b16 %v147
  %v413 = vunpack.c.l.b16 %v148
  %v414 = vunpack.c.l.b16 %v149
  %v415 = vunpack.c.l.b16 %v150
  %v416 = vunpack.c.l.b16 %v151
  %v417 = vunpack.c.l.b16 %v152
  %v418 = vunpack.c.l.b16 %v153
  %v419 = vunpack.c.l.b16 %v154
  %v420 = vpack.c.b16 %v405, %v404
  %v421 = vpack.c.b16 %v407, %v406
  %v422 = vpack.c.b16 %v409, %v408
  %v423 = vpack.c.b16 %v411, %v410
  %v424 = vpack.c.b16 %v413, %v412
  %v425 = vpack.c.b16 %v415, %v414
  %v426 = vpack.c.b16 %v417, %v416
  %v427 = vpack.c.b16 %v419, %v418
  %436 = vmatpush.bf16.msra.mxu0 %v427
  %437 = vmatpush.bf16.msra.mxu0 %v426
  %438 = vmatpush.bf16.msra.mxu0 %v425
  %439 = vmatpush.bf16.msra.mxu0 %v424
  %440 = vmatpush.bf16.msra.mxu0 %v423
  %441 = vmatpush.bf16.msra.mxu0 %v422
  %442 = vmatpush.bf16.msra.mxu0 %v421
  %443 = vmatpush.bf16.msra.mxu0 %v420
  %444 = vmatmul.bf16.gmra.mxu0 %v112
  %v445 = vpop.f32.mrf.mxu0
  %v446 = vadd.f32 %v334, %v445
  %v447 = vpop.f32.mrf.mxu0
  %v448 = vadd.f32 %v336, %v447
  %449 = vmatmul.bf16.gmra.mxu0 %v113
  %v450 = vpop.f32.mrf.mxu0
  %v451 = vadd.f32 %v339, %v450
  %v452 = vpop.f32.mrf.mxu0
  %v453 = vadd.f32 %v341, %v452
  %454 = vmatmul.bf16.gmra.mxu0 %v114
  %v455 = vpop.f32.mrf.mxu0
  %v456 = vadd.f32 %v344, %v455
  %v457 = vpop.f32.mrf.mxu0
  %v458 = vadd.f32 %v346, %v457
  %459 = vmatmul.bf16.gmra.mxu0 %v115
  %v460 = vpop.f32.mrf.mxu0
  %v461 = vadd.f32 %v349, %v460
  %v462 = vpop.f32.mrf.mxu0
  %v463 = vadd.f32 %v351, %v462
  %464 = vmatmul.bf16.gmra.mxu0 %v116
  %v465 = vpop.f32.mrf.mxu0
  %v466 = vadd.f32 %v354, %v465
  %v467 = vpop.f32.mrf.mxu0
  %v468 = vadd.f32 %v356, %v467
  %469 = vmatmul.bf16.gmra.mxu0 %v117
  %v470 = vpop.f32.mrf.mxu0
  %v471 = vadd.f32 %v359, %v470
  %v472 = vpop.f32.mrf.mxu0
  %v473 = vadd.f32 %v361, %v472
  %474 = vmatmul.bf16.gmra.mxu0 %v118
  %v475 = vpop.f32.mrf.mxu0
  %v476 = vadd.f32 %v364, %v475
  %v477 = vpop.f32.mrf.mxu0
  %v478 = vadd.f32 %v366, %v477
  %479 = vmatmul.bf16.gmra.mxu0 %v119
  %v480 = vpop.f32.mrf.mxu0
  %v481 = vadd.f32 %v369, %v480
  %v482 = vpop.f32.mrf.mxu0
  %v483 = vadd.f32 %v371, %v482
  %484 = vmatmul.bf16.gmra.mxu0 %v120
  %v485 = vpop.f32.mrf.mxu0
  %v486 = vadd.f32 %v374, %v485
  %v487 = vpop.f32.mrf.mxu0
  %v488 = vadd.f32 %v376, %v487
  %489 = vmatmul.bf16.gmra.mxu0 %v121
  %v490 = vpop.f32.mrf.mxu0
  %v491 = vadd.f32 %v379, %v490
  %v492 = vpop.f32.mrf.mxu0
  %v493 = vadd.f32 %v381, %v492
  %494 = vmatmul.bf16.gmra.mxu0 %v122
  %v495 = vpop.f32.mrf.mxu0
  %v496 = vadd.f32 %v384, %v495
  %v497 = vpop.f32.mrf.mxu0
  %v498 = vadd.f32 %v386, %v497
  %499 = vdwg.mxu0
  %s500 = scalar_lea.vmem %s2, 128
  %v501 = vld [vmem:[%s500] sm:$0xf]
  %v502 = vld [vmem:[%s500 + $0x4] sm:$0xf]
  %v503 = vld [vmem:[%s500 + $0x8] sm:$0xf]
  %v504 = vld [vmem:[%s500 + $0xc] sm:$0xf]
  %v505 = vld [vmem:[%s500 + $0x10] sm:$0xf]
  %v506 = vld [vmem:[%s500 + $0x14] sm:$0xf]
  %v507 = vld [vmem:[%s500 + $0x18] sm:$0xf]
  %v508 = vld [vmem:[%s500 + $0x1c] sm:$0xf]
  %v509 = vld [vmem:[%s500 + $0x20] sm:$0xf]
  %v510 = vld [vmem:[%s500 + $0x24] sm:$0xf]
  %v511 = vld [vmem:[%s500 + $0x28] sm:$0xf]
  %v512 = vld [vmem:[%s500 + $0x2c] sm:$0xf]
  %v513 = vld [vmem:[%s500 + $0x30] sm:$0xf]
  %v514 = vld [vmem:[%s500 + $0x34] sm:$0xf]
  %v515 = vld [vmem:[%s500 + $0x38] sm:$0xf]
  %v516 = vld [vmem:[%s500 + $0x3c] sm:$0xf]
  %vm517 = vsmask.f32 3328
  %v518 = vrot.slane %v174, 4
  %v519 = vrot.slane %v176, 5
  %v520 = vor.u32 %v518, %v519
  %v521 = vrot.slane %v185, 4
  %v522 = vrot.slane %v181, 5
  %v523 = vor.u32 %v521, %v522
  %v524 = vsel %vm517, %v520, %v523
  %v525 = vrot.slane %v193, 4
  %v526 = vrot.slane %v189, 5
  %v527 = vor.u32 %v525, %v526
  %v528 = vsel %vm517, %v523, %v527
  %v529 = vrot.slane %v201, 4
  %v530 = vrot.slane %v197, 5
  %v531 = vor.u32 %v529, %v530
  %v532 = vsel %vm517, %v527, %v531
  %v533 = vrot.slane %v209, 4
  %v534 = vrot.slane %v205, 5
  %v535 = vor.u32 %v533, %v534
  %v536 = vsel %vm517, %v531, %v535
  %v537 = vrot.slane %v217, 4
  %v538 = vrot.slane %v213, 5
  %v539 = vor.u32 %v537, %v538
  %v540 = vsel %vm517, %v535, %v539
  %v541 = vrot.slane %v225, 4
  %v542 = vrot.slane %v221, 5
  %v543 = vor.u32 %v541, %v542
  %v544 = vsel %vm517, %v539, %v543
  %v545 = vrot.slane %v233, 4
  %v546 = vrot.slane %v229, 5
  %v547 = vor.u32 %v545, %v546
  %v548 = vsel %vm517, %v543, %v547
  %v549 = vrot.slane %v241, 4
  %v550 = vrot.slane %v237, 5
  %v551 = vor.u32 %v549, %v550
  %v552 = vsel %vm517, %v547, %v551
  %v553 = vrot.slane %v249, 4
  %v554 = vrot.slane %v245, 5
  %v555 = vor.u32 %v553, %v554
  %v556 = vsel %vm517, %v551, %v555
  %v557 = vrot.slane %v257, 4
  %v558 = vrot.slane %v253, 5
  %v559 = vor.u32 %v557, %v558
  %v560 = vsel %vm517, %v555, %v559
  %v561 = vshrl.u32 %v138, 16
  %v563 = vrot.slane %v561, 4
  %v564 = vrot.slane %v261, 5
  %v565 = vor.u32 %v563, %v564
  %v566 = vsel %vm517, %v559, %v565
  %v594 = vunpack.c.l.b16 %v501
  %v595 = vunpack.c.l.b16 %v502
  %v596 = vunpack.c.l.b16 %v503
  %v597 = vunpack.c.l.b16 %v504
  %v598 = vunpack.c.l.b16 %v505
  %v599 = vunpack.c.l.b16 %v506
  %v600 = vunpack.c.l.b16 %v507
  %v601 = vunpack.c.l.b16 %v508
  %v602 = vunpack.c.l.b16 %v509
  %v603 = vunpack.c.l.b16 %v510
  %v604 = vunpack.c.l.b16 %v511
  %v605 = vunpack.c.l.b16 %v512
  %v606 = vunpack.c.l.b16 %v513
  %v607 = vunpack.c.l.b16 %v514
  %v608 = vunpack.c.l.b16 %v515
  %v609 = vunpack.c.l.b16 %v516
  %v610 = vpack.c.b16 %v595, %v594
  %v611 = vpack.c.b16 %v597, %v596
  %v612 = vpack.c.b16 %v599, %v598
  %v613 = vpack.c.b16 %v601, %v600
  %v614 = vpack.c.b16 %v603, %v602
  %v615 = vpack.c.b16 %v605, %v604
  %v616 = vpack.c.b16 %v607, %v606
  %v617 = vpack.c.b16 %v609, %v608
  %626 = vmatpush.bf16.msra.mxu0 %v617
  %627 = vmatpush.bf16.msra.mxu0 %v616
  %628 = vmatpush.bf16.msra.mxu0 %v615
  %629 = vmatpush.bf16.msra.mxu0 %v614
  %630 = vmatpush.bf16.msra.mxu0 %v613
  %631 = vmatpush.bf16.msra.mxu0 %v612
  %632 = vmatpush.bf16.msra.mxu0 %v611
  %633 = vmatpush.bf16.msra.mxu0 %v610
  %634 = vmatmul.bf16.gmra.mxu0 %v524
  %v635 = vpop.f32.mrf.mxu0
  %v636 = vadd.f32 0.0, %v635
  %v637 = vpop.f32.mrf.mxu0
  %v638 = vadd.f32 0.0, %v637
  %639 = vmatmul.bf16.gmra.mxu0 %v528
  %v640 = vpop.f32.mrf.mxu0
  %v641 = vadd.f32 0.0, %v640
  %v642 = vpop.f32.mrf.mxu0
  %v643 = vadd.f32 0.0, %v642
  %644 = vmatmul.bf16.gmra.mxu0 %v532
  %v645 = vpop.f32.mrf.mxu0
  %v646 = vadd.f32 0.0, %v645
  %v647 = vpop.f32.mrf.mxu0
  %v648 = vadd.f32 0.0, %v647
  %649 = vmatmul.bf16.gmra.mxu0 %v536
  %v650 = vpop.f32.mrf.mxu0
  %v651 = vadd.f32 0.0, %v650
  %v652 = vpop.f32.mrf.mxu0
  %v653 = vadd.f32 0.0, %v652
  %654 = vmatmul.bf16.gmra.mxu0 %v540
  %v655 = vpop.f32.mrf.mxu0
  %v656 = vadd.f32 0.0, %v655
  %v657 = vpop.f32.mrf.mxu0
  %v658 = vadd.f32 0.0, %v657
  %659 = vmatmul.bf16.gmra.mxu0 %v544
  %v660 = vpop.f32.mrf.mxu0
  %v661 = vadd.f32 0.0, %v660
  %v662 = vpop.f32.mrf.mxu0
  %v663 = vadd.f32 0.0, %v662
  %664 = vmatmul.bf16.gmra.mxu0 %v548
  %v665 = vpop.f32.mrf.mxu0
  %v666 = vadd.f32 0.0, %v665
  %v667 = vpop.f32.mrf.mxu0
  %v668 = vadd.f32 0.0, %v667
  %669 = vmatmul.bf16.gmra.mxu0 %v552
  %v670 = vpop.f32.mrf.mxu0
  %v671 = vadd.f32 0.0, %v670
  %v672 = vpop.f32.mrf.mxu0
  %v673 = vadd.f32 0.0, %v672
  %674 = vmatmul.bf16.gmra.mxu0 %v556
  %v675 = vpop.f32.mrf.mxu0
  %v676 = vadd.f32 0.0, %v675
  %v677 = vpop.f32.mrf.mxu0
  %v678 = vadd.f32 0.0, %v677
  %679 = vmatmul.bf16.gmra.mxu0 %v560
  %v680 = vpop.f32.mrf.mxu0
  %v681 = vadd.f32 0.0, %v680
  %v682 = vpop.f32.mrf.mxu0
  %v683 = vadd.f32 0.0, %v682
  %684 = vmatmul.bf16.gmra.mxu0 %v566
  %v685 = vpop.f32.mrf.mxu0
  %v686 = vadd.f32 0.0, %v685
  %v687 = vpop.f32.mrf.mxu0
  %v688 = vadd.f32 0.0, %v687
  %689 = vdwg.mxu0
  %v690 = vadd.f32 %v446, %v636
  %v691 = vadd.f32 %v448, %v638
  %v692 = vadd.f32 %v451, %v641
  %v693 = vadd.f32 %v453, %v643
  %v694 = vadd.f32 %v456, %v646
  %v695 = vadd.f32 %v458, %v648
  %v696 = vadd.f32 %v461, %v651
  %v697 = vadd.f32 %v463, %v653
  %v698 = vadd.f32 %v466, %v656
  %v699 = vadd.f32 %v468, %v658
  %v700 = vadd.f32 %v471, %v661
  %v701 = vadd.f32 %v473, %v663
  %v702 = vadd.f32 %v476, %v666
  %v703 = vadd.f32 %v478, %v668
  %v704 = vadd.f32 %v481, %v671
  %v705 = vadd.f32 %v483, %v673
  %v706 = vadd.f32 %v486, %v676
  %v707 = vadd.f32 %v488, %v678
  %v708 = vadd.f32 %v491, %v681
  %v709 = vadd.f32 %v493, %v683
  %v710 = vadd.f32 %v496, %v686
  %v711 = vadd.f32 %v498, %v688
  %s712 = scalar_lea.vmem %s2, 192
  %v713 = vld [vmem:[%s712] sm:$0xf]
  %v714 = vld [vmem:[%s712 + $0x4] sm:$0xf]
  %v715 = vld [vmem:[%s712 + $0x8] sm:$0xf]
  %v716 = vld [vmem:[%s712 + $0xc] sm:$0xf]
  %v717 = vld [vmem:[%s712 + $0x10] sm:$0xf]
  %v718 = vld [vmem:[%s712 + $0x14] sm:$0xf]
  %v719 = vld [vmem:[%s712 + $0x18] sm:$0xf]
  %v720 = vld [vmem:[%s712 + $0x1c] sm:$0xf]
  %v721 = vld [vmem:[%s712 + $0x20] sm:$0xf]
  %v722 = vld [vmem:[%s712 + $0x24] sm:$0xf]
  %v723 = vld [vmem:[%s712 + $0x28] sm:$0xf]
  %v724 = vld [vmem:[%s712 + $0x2c] sm:$0xf]
  %v725 = vld [vmem:[%s712 + $0x30] sm:$0xf]
  %v726 = vld [vmem:[%s712 + $0x34] sm:$0xf]
  %v727 = vld [vmem:[%s712 + $0x38] sm:$0xf]
  %v728 = vld [vmem:[%s712 + $0x3c] sm:$0xf]
  %vm729 = vcmask 1042432
  %v730 = vrot.slane %v112, 5
  %v731 = vrot.slane %v113, 5
  %v732 = vsel %vm729, %v730, %v731
  %v733 = vrot.slane %v114, 5
  %v734 = vsel %vm729, %v731, %v733
  %v735 = vrot.slane %v115, 5
  %v736 = vsel %vm729, %v733, %v735
  %v737 = vrot.slane %v116, 5
  %v738 = vsel %vm729, %v735, %v737
  %v739 = vrot.slane %v117, 5
  %v740 = vsel %vm729, %v737, %v739
  %v741 = vrot.slane %v118, 5
  %v742 = vsel %vm729, %v739, %v741
  %v743 = vrot.slane %v119, 5
  %v744 = vsel %vm729, %v741, %v743
  %v745 = vrot.slane %v120, 5
  %v746 = vsel %vm729, %v743, %v745
  %v747 = vrot.slane %v121, 5
  %v748 = vsel %vm729, %v745, %v747
  %v749 = vrot.slane %v122, 5
  %v750 = vsel %vm729, %v747, %v749
  %v751 = vrot.slane %v138, 5
  %v752 = vsel %vm729, %v749, %v751
  %v780 = vunpack.c.l.b16 %v713
  %v781 = vunpack.c.l.b16 %v714
  %v782 = vunpack.c.l.b16 %v715
  %v783 = vunpack.c.l.b16 %v716
  %v784 = vunpack.c.l.b16 %v717
  %v785 = vunpack.c.l.b16 %v718
  %v786 = vunpack.c.l.b16 %v719
  %v787 = vunpack.c.l.b16 %v720
  %v788 = vunpack.c.l.b16 %v721
  %v789 = vunpack.c.l.b16 %v722
  %v790 = vunpack.c.l.b16 %v723
  %v791 = vunpack.c.l.b16 %v724
  %v792 = vunpack.c.l.b16 %v725
  %v793 = vunpack.c.l.b16 %v726
  %v794 = vunpack.c.l.b16 %v727
  %v795 = vunpack.c.l.b16 %v728
  %v796 = vpack.c.b16 %v781, %v780
  %v797 = vpack.c.b16 %v783, %v782
  %v798 = vpack.c.b16 %v785, %v784
  %v799 = vpack.c.b16 %v787, %v786
  %v800 = vpack.c.b16 %v789, %v788
  %v801 = vpack.c.b16 %v791, %v790
  %v802 = vpack.c.b16 %v793, %v792
  %v803 = vpack.c.b16 %v795, %v794
  %812 = vmatpush.bf16.msra.mxu0 %v803
  %813 = vmatpush.bf16.msra.mxu0 %v802
  %814 = vmatpush.bf16.msra.mxu0 %v801
  %815 = vmatpush.bf16.msra.mxu0 %v800
  %816 = vmatpush.bf16.msra.mxu0 %v799
  %817 = vmatpush.bf16.msra.mxu0 %v798
  %818 = vmatpush.bf16.msra.mxu0 %v797
  %819 = vmatpush.bf16.msra.mxu0 %v796
  %820 = vmatmul.bf16.gmra.mxu0 %v732
  %v821 = vpop.f32.mrf.mxu0
  %v822 = vadd.f32 0.0, %v821
  %v823 = vpop.f32.mrf.mxu0
  %v824 = vadd.f32 0.0, %v823
  %825 = vmatmul.bf16.gmra.mxu0 %v734
  %v826 = vpop.f32.mrf.mxu0
  %v827 = vadd.f32 0.0, %v826
  %v828 = vpop.f32.mrf.mxu0
  %v829 = vadd.f32 0.0, %v828
  %830 = vmatmul.bf16.gmra.mxu0 %v736
  %v831 = vpop.f32.mrf.mxu0
  %v832 = vadd.f32 0.0, %v831
  %v833 = vpop.f32.mrf.mxu0
  %v834 = vadd.f32 0.0, %v833
  %835 = vmatmul.bf16.gmra.mxu0 %v738
  %v836 = vpop.f32.mrf.mxu0
  %v837 = vadd.f32 0.0, %v836
  %v838 = vpop.f32.mrf.mxu0
  %v839 = vadd.f32 0.0, %v838
  %840 = vmatmul.bf16.gmra.mxu0 %v740
  %v841 = vpop.f32.mrf.mxu0
  %v842 = vadd.f32 0.0, %v841
  %v843 = vpop.f32.mrf.mxu0
  %v844 = vadd.f32 0.0, %v843
  %845 = vmatmul.bf16.gmra.mxu0 %v742
  %v846 = vpop.f32.mrf.mxu0
  %v847 = vadd.f32 0.0, %v846
  %v848 = vpop.f32.mrf.mxu0
  %v849 = vadd.f32 0.0, %v848
  %850 = vmatmul.bf16.gmra.mxu0 %v744
  %v851 = vpop.f32.mrf.mxu0
  %v852 = vadd.f32 0.0, %v851
  %v853 = vpop.f32.mrf.mxu0
  %v854 = vadd.f32 0.0, %v853
  %855 = vmatmul.bf16.gmra.mxu0 %v746
  %v856 = vpop.f32.mrf.mxu0
  %v857 = vadd.f32 0.0, %v856
  %v858 = vpop.f32.mrf.mxu0
  %v859 = vadd.f32 0.0, %v858
  %860 = vmatmul.bf16.gmra.mxu0 %v748
  %v861 = vpop.f32.mrf.mxu0
  %v862 = vadd.f32 0.0, %v861
  %v863 = vpop.f32.mrf.mxu0
  %v864 = vadd.f32 0.0, %v863
  %865 = vmatmul.bf16.gmra.mxu0 %v750
  %v866 = vpop.f32.mrf.mxu0
  %v867 = vadd.f32 0.0, %v866
  %v868 = vpop.f32.mrf.mxu0
  %v869 = vadd.f32 0.0, %v868
  %870 = vmatmul.bf16.gmra.mxu0 %v752
  %v871 = vpop.f32.mrf.mxu0
  %v872 = vadd.f32 0.0, %v871
  %v873 = vpop.f32.mrf.mxu0
  %v874 = vadd.f32 0.0, %v873
  %875 = vdwg.mxu0
  %v876 = vadd.f32 %v690, %v822
  %v877 = vadd.f32 %v691, %v824
  %v878 = vadd.f32 %v692, %v827
  %v879 = vadd.f32 %v693, %v829
  %v880 = vadd.f32 %v694, %v832
  %v881 = vadd.f32 %v695, %v834
  %v882 = vadd.f32 %v696, %v837
  %v883 = vadd.f32 %v697, %v839
  %v884 = vadd.f32 %v698, %v842
  %v885 = vadd.f32 %v699, %v844
  %v886 = vadd.f32 %v700, %v847
  %v887 = vadd.f32 %v701, %v849
  %v888 = vadd.f32 %v702, %v852
  %v889 = vadd.f32 %v703, %v854
  %v890 = vadd.f32 %v704, %v857
  %v891 = vadd.f32 %v705, %v859
  %v892 = vadd.f32 %v706, %v862
  %v893 = vadd.f32 %v707, %v864
  %v894 = vadd.f32 %v708, %v867
  %v895 = vadd.f32 %v709, %v869
  %v896 = vadd.f32 %v710, %v872
  %v897 = vadd.f32 %v711, %v874
  %v898 = vld [vmem:[%s3] sm:$0x1]
  %v900 = vperm.slane %v898, 0
  %v902 = vadd.f32 %v876, %v900
  %v903 = vadd.f32 %v877, %v900
  %v904 = vadd.f32 %v878, %v900
  %v905 = vadd.f32 %v879, %v900
  %v906 = vadd.f32 %v880, %v900
  %v907 = vadd.f32 %v881, %v900
  %v908 = vadd.f32 %v882, %v900
  %v909 = vadd.f32 %v883, %v900
  %v910 = vadd.f32 %v884, %v900
  %v911 = vadd.f32 %v885, %v900
  %v912 = vadd.f32 %v886, %v900
  %v913 = vadd.f32 %v887, %v900
  %v914 = vadd.f32 %v888, %v900
  %v915 = vadd.f32 %v889, %v900
  %v916 = vadd.f32 %v890, %v900
  %v917 = vadd.f32 %v891, %v900
  %v918 = vadd.f32 %v892, %v900
  %v919 = vadd.f32 %v893, %v900
  %v920 = vadd.f32 %v894, %v900
  %v921 = vadd.f32 %v895, %v900
  %v922 = vadd.f32 %v896, %v900
  %v923 = vadd.f32 %v897, %v900
  %v924 = vmul.f32 %v902, 0.2
  %v925 = vmul.f32 %v903, 0.2
  %v926 = vmul.f32 %v904, 0.2
  %v927 = vmul.f32 %v905, 0.2
  %v928 = vmul.f32 %v906, 0.2
  %v929 = vmul.f32 %v907, 0.2
  %v930 = vmul.f32 %v908, 0.2
  %v931 = vmul.f32 %v909, 0.2
  %v932 = vmul.f32 %v910, 0.2
  %v933 = vmul.f32 %v911, 0.2
  %v934 = vmul.f32 %v912, 0.2
  %v935 = vmul.f32 %v913, 0.2
  %v936 = vmul.f32 %v914, 0.2
  %v937 = vmul.f32 %v915, 0.2
  %v938 = vmul.f32 %v916, 0.2
  %v939 = vmul.f32 %v917, 0.2
  %v940 = vmul.f32 %v918, 0.2
  %v941 = vmul.f32 %v919, 0.2
  %v942 = vmul.f32 %v920, 0.2
  %v943 = vmul.f32 %v921, 0.2
  %v944 = vmul.f32 %v922, 0.2
  %v945 = vmul.f32 %v923, 0.2
  %v946 = vmax.f32 %v902, %v924
  %v947 = vmax.f32 %v903, %v925
  %v948 = vmax.f32 %v904, %v926
  %v949 = vmax.f32 %v905, %v927
  %v950 = vmax.f32 %v906, %v928
  %v951 = vmax.f32 %v907, %v929
  %v952 = vmax.f32 %v908, %v930
  %v953 = vmax.f32 %v909, %v931
  %v954 = vmax.f32 %v910, %v932
  %v955 = vmax.f32 %v911, %v933
  %v956 = vmax.f32 %v912, %v934
  %v957 = vmax.f32 %v913, %v935
  %v958 = vmax.f32 %v914, %v936
  %v959 = vmax.f32 %v915, %v937
  %v960 = vmax.f32 %v916, %v938
  %v961 = vmax.f32 %v917, %v939
  %v962 = vmax.f32 %v918, %v940
  %v963 = vmax.f32 %v919, %v941
  %v964 = vmax.f32 %v920, %v942
  %v965 = vmax.f32 %v921, %v943
  %v966 = vmax.f32 %v922, %v944
  %v967 = vmax.f32 %v923, %v945
  %v968 = vpack.c.bf16 %v946, %v946
  %v969 = vpack.c.bf16 %v947, %v947
  %v970 = vpack.c.bf16 %v948, %v948
  %v971 = vpack.c.bf16 %v949, %v949
  %v972 = vpack.c.bf16 %v950, %v950
  %v973 = vpack.c.bf16 %v951, %v951
  %v974 = vpack.c.bf16 %v952, %v952
  %v975 = vpack.c.bf16 %v953, %v953
  %v976 = vpack.c.bf16 %v954, %v954
  %v977 = vpack.c.bf16 %v955, %v955
  %v978 = vpack.c.bf16 %v956, %v956
  %v979 = vpack.c.bf16 %v957, %v957
  %v980 = vpack.c.bf16 %v958, %v958
  %v981 = vpack.c.bf16 %v959, %v959
  %v982 = vpack.c.bf16 %v960, %v960
  %v983 = vpack.c.bf16 %v961, %v961
  %v984 = vpack.c.bf16 %v962, %v962
  %v985 = vpack.c.bf16 %v963, %v963
  %v986 = vpack.c.bf16 %v964, %v964
  %v987 = vpack.c.bf16 %v965, %v965
  %v988 = vpack.c.bf16 %v966, %v966
  %v989 = vpack.c.bf16 %v967, %v967
  %990 = vst [vmem:[%s4] sm:$0xf] %v968
  %991 = vst [vmem:[%s4 + $0x4] sm:$0xf] %v969
  %992 = vst [vmem:[%s4 + $0x8] sm:$0xf] %v970
  %993 = vst [vmem:[%s4 + $0xc] sm:$0xf] %v971
  %994 = vst [vmem:[%s4 + $0x10] sm:$0xf] %v972
  %995 = vst [vmem:[%s4 + $0x14] sm:$0xf] %v973
  %996 = vst [vmem:[%s4 + $0x18] sm:$0xf] %v974
  %997 = vst [vmem:[%s4 + $0x1c] sm:$0xf] %v975
  %998 = vst [vmem:[%s4 + $0x20] sm:$0xf] %v976
  %999 = vst [vmem:[%s4 + $0x24] sm:$0xf] %v977
  %1000 = vst [vmem:[%s4 + $0x28] sm:$0xf] %v978
  %1001 = vst [vmem:[%s4 + $0x2c] sm:$0xf] %v979
  %1002 = vst [vmem:[%s4 + $0x30] sm:$0xf] %v980
  %1003 = vst [vmem:[%s4 + $0x34] sm:$0xf] %v981
  %1004 = vst [vmem:[%s4 + $0x38] sm:$0xf] %v982
  %1005 = vst [vmem:[%s4 + $0x3c] sm:$0xf] %v983
  %1006 = vst [vmem:[%s4 + $0x40] sm:$0xf] %v984
  %1007 = vst [vmem:[%s4 + $0x44] sm:$0xf] %v985
  %1008 = vst [vmem:[%s4 + $0x48] sm:$0xf] %v986
  %1009 = vst [vmem:[%s4 + $0x4c] sm:$0xf] %v987
  %1010 = vst [vmem:[%s4 + $0x50] sm:$0xf] %v988
  %1011 = vst [vmem:[%s4 + $0x54] sm:$0xf] %v989
  // Predicated region
  $region18: #{discriminator_forward.5} parent=0 // pred_check
    _
  $region19: #{discriminator_forward.5} parent=0 // pred_check_branch
    %1013 = sbr.rel (0) target = $region21
  $region20: #{discriminator_forward.5} parent=0 // pred_region
    _
  $region21: #{discriminator_forward.5} parent=0 // pred_fallthru
    _
  // Predicated region
  $region22: #{discriminator_forward.5} parent=0 // pred_check
    _
  $region23: #{discriminator_forward.5} parent=0 // pred_check_branch
    %1015 = sbr.rel (0) target = $region25
  $region24: #{discriminator_forward.5} parent=0 // pred_region
    _
  $region25: #{discriminator_forward.5} parent=0 // pred_fallthru
    _

// kernel: discriminator_forward.6
$region0: #{discriminator_forward.6}
  #allocation0 [shape = 'u32[]', space=smem, size = 0x4, offset = 0x4, fixed_abs, tag = 'smem constant byte address 0x4 - core index']
  #allocation1 [shape = 'u32[72,128]{1,0:T(1,128)}', space=vmem, size = 0x9000, scoped, tag = 'internal scratch']
  %s0 = inlined_call_operand.vmem [shape: bf16[80,128], index: 0, kind: input, shape index: {}, may-alias: {0,1}]
  %s1 = inlined_call_operand.vmem [shape: bf16[80,128], index: 1, kind: input, shape index: {}, may-alias: {0,1}]
  %s2 = inlined_call_operand.vmem [shape: bf16[4,128,128], index: 2, kind: input, shape index: {}]
  %s3 = inlined_call_operand.vmem [shape: f32[1,128], index: 3, kind: input, shape index: {}]
  %s4 = inlined_call_operand.vmem [shape: bf16[64,128], index: 4, kind: output, shape index: {}]
  %s5 = sld [smem:[#allocation0]]
  $region26: #{discriminator_forward.6} parent=0
    _
  %s7 = ssub.s32 1, %s5
  %s8 = scalar_select 0, %s7, %s5
  // Predicated region
  $region2: #{discriminator_forward.6} parent=0 // pred_check
    _
  $region3: #{discriminator_forward.6} parent=0 // pred_check_branch
    %10 = sbr.rel (0) target = $region5
  $region4: #{discriminator_forward.6} parent=0 // pred_region
    _
  $region5: #{discriminator_forward.6} parent=0 // pred_fallthru
    _
  // Predicated region
  $region6: #{discriminator_forward.6} parent=0 // pred_check
    _
  $region7: #{discriminator_forward.6} parent=0 // pred_check_branch
    %12 = sbr.rel (0) target = $region9
  $region8: #{discriminator_forward.6} parent=0 // pred_region
    %s13 = sadd.s32 0, 1
    %s14 = smul.u32 %s13, 4
    %s15 = smul.u32 2, %s14
    %p16 = scmp.lt.s32.totalorder %s15, 9
    %s17 = scalar_select %p16, %s15, 9
    %s18 = smul.addr %s17, 4
    %s19 = scalar_lea.vmem %s1, %s18
    %s20 = sadd.s32 0, 1
    %s21 = smul.u32 %s20, 4
    %s22 = smul.u32 2, %s21
  $region9: #{discriminator_forward.6} parent=0 // pred_fallthru
    _
  // Predicated region
  $region10: #{discriminator_forward.6} parent=0 // pred_check
    _
  $region11: #{discriminator_forward.6} parent=0 // pred_check_branch
    %24 = sbr.rel (0) target = $region13
  $region12: #{discriminator_forward.6} parent=0 // pred_region
    _
  $region13: #{discriminator_forward.6} parent=0 // pred_fallthru
    _
  // Predicated region
  $region14: #{discriminator_forward.6} parent=0 // pred_check
    _
  $region15: #{discriminator_forward.6} parent=0 // pred_check_branch
    %26 = sbr.rel (0) target = $region17
  $region16: #{discriminator_forward.6} parent=0 // pred_region
    _
  $region17: #{discriminator_forward.6} parent=0 // pred_fallthru
    _
  %s27 = sadd.s32 0, 1
  %s28 = smul.u32 %s27, 4
  %s29 = smul.u32 2, %s28
  %p30 = scmp.lt.s32.totalorder %s29, 9
  %s31 = scalar_select %p30, %s29, 9
  %s32 = smul.addr %s31, 4
  %s33 = scalar_lea.vmem %s1, %s32
  %s34 = sadd.s32 0, 1
  %s35 = smul.u32 %s34, 4
  %s36 = smul.u32 2, %s35
  %p37 = scmp.lt.s32.totalorder %s36, 9
  %s38 = scalar_select %p37, %s36, 9
  %s39 = smul.addr %s38, 4
  %s40 = scalar_lea.vmem %s1, %s39
  %s41 = sadd.s32 0, 1
  %s42 = smul.u32 %s41, 4
  %s43 = smul.u32 2, %s42
  %v44 = vld [vmem:[%s0] sm:$0xf]
  %v45 = vld [vmem:[%s0 + $0x4] sm:$0xf]
  %v46 = vld [vmem:[%s0 + $0x8] sm:$0xf]
  %v47 = vld [vmem:[%s0 + $0xc] sm:$0xf]
  %v48 = vld [vmem:[%s0 + $0x10] sm:$0xf]
  %v49 = vld [vmem:[%s0 + $0x14] sm:$0xf]
  %v50 = vld [vmem:[%s0 + $0x18] sm:$0xf]
  %v51 = vld [vmem:[%s0 + $0x1c] sm:$0xf]
  %v52 = vld [vmem:[%s40] sm:$0xf]
  %v53 = vld [vmem:[%s40 + $0x4] sm:$0xf]
  %v62 = vunpack.c.l.b16 %v44
  %v63 = vunpack.c.l.b16 %v45
  %v64 = vunpack.c.l.b16 %v46
  %v65 = vunpack.c.l.b16 %v47
  %v66 = vunpack.c.l.b16 %v48
  %v67 = vunpack.c.l.b16 %v49
  %v68 = vunpack.c.l.b16 %v50
  %v69 = vunpack.c.l.b16 %v51
  %v70 = vpack.c.b16 %v63, %v62
  %v71 = vpack.c.b16 %v65, %v64
  %v72 = vpack.c.b16 %v67, %v66
  %v73 = vpack.c.b16 %v69, %v68
  %v80 = vunpack.c.l.b16 %v52
  %v81 = vunpack.c.l.b16 %v53
  %v82 = vpack.c.b16 %v81, %v80
  %v83 = vld [vmem:[%s2] sm:$0xf]
  %v84 = vld [vmem:[%s2 + $0x4] sm:$0xf]
  %v85 = vld [vmem:[%s2 + $0x8] sm:$0xf]
  %v86 = vld [vmem:[%s2 + $0xc] sm:$0xf]
  %v87 = vld [vmem:[%s2 + $0x10] sm:$0xf]
  %v88 = vld [vmem:[%s2 + $0x14] sm:$0xf]
  %v89 = vld [vmem:[%s2 + $0x18] sm:$0xf]
  %v90 = vld [vmem:[%s2 + $0x1c] sm:$0xf]
  %v91 = vld [vmem:[%s2 + $0x20] sm:$0xf]
  %v92 = vld [vmem:[%s2 + $0x24] sm:$0xf]
  %v93 = vld [vmem:[%s2 + $0x28] sm:$0xf]
  %v94 = vld [vmem:[%s2 + $0x2c] sm:$0xf]
  %v95 = vld [vmem:[%s2 + $0x30] sm:$0xf]
  %v96 = vld [vmem:[%s2 + $0x34] sm:$0xf]
  %v97 = vld [vmem:[%s2 + $0x38] sm:$0xf]
  %v98 = vld [vmem:[%s2 + $0x3c] sm:$0xf]
  %s99 = scalar_lea.vmem %s2, 64
  %v100 = vld [vmem:[%s99] sm:$0xf]
  %v101 = vld [vmem:[%s99 + $0x4] sm:$0xf]
  %v102 = vld [vmem:[%s99 + $0x8] sm:$0xf]
  %v103 = vld [vmem:[%s99 + $0xc] sm:$0xf]
  %v104 = vld [vmem:[%s99 + $0x10] sm:$0xf]
  %v105 = vld [vmem:[%s99 + $0x14] sm:$0xf]
  %v106 = vld [vmem:[%s99 + $0x18] sm:$0xf]
  %v107 = vld [vmem:[%s99 + $0x1c] sm:$0xf]
  %v108 = vld [vmem:[%s99 + $0x20] sm:$0xf]
  %v109 = vld [vmem:[%s99 + $0x24] sm:$0xf]
  %v110 = vld [vmem:[%s99 + $0x28] sm:$0xf]
  %v111 = vld [vmem:[%s99 + $0x2c] sm:$0xf]
  %v112 = vld [vmem:[%s99 + $0x30] sm:$0xf]
  %v113 = vld [vmem:[%s99 + $0x34] sm:$0xf]
  %v114 = vld [vmem:[%s99 + $0x38] sm:$0xf]
  %v115 = vld [vmem:[%s99 + $0x3c] sm:$0xf]
  %vm116 = vsmask.f32 7424
  %v118 = vshrl.u32 %v70, 16
  %v120 = vshll.u32 %v70, 16
  %v122 = vrot.slane %v120, 1
  %v123 = vor.u32 %v118, %v122
  %v125 = vshll.u32 %v71, 16
  %v127 = vrot.slane %v125, 1
  %v128 = vsel %vm116, %v123, %v127
  %v129 = vshrl.u32 %v71, 16
  %v131 = vor.u32 %v129, %v127
  %v133 = vshll.u32 %v72, 16
  %v135 = vrot.slane %v133, 1
  %v136 = vsel %vm116, %v131, %v135
  %v137 = vshrl.u32 %v72, 16
  %v139 = vor.u32 %v137, %v135
  %v141 = vshll.u32 %v73, 16
  %v143 = vrot.slane %v141, 1
  %v144 = vsel %vm116, %v139, %v143
  %v145 = vshrl.u32 %v73, 16
  %v147 = vor.u32 %v145, %v143
  %v149 = vshll.u32 %v82, 16
  %v151 = vrot.slane %v149, 1
  %v152 = vsel %vm116, %v147, %v151
  %v173 = vunpack.c.l.b16 %v100
  %v174 = vunpack.c.l.b16 %v101
  %v175 = vunpack.c.l.b16 %v102
  %v176 = vunpack.c.l.b16 %v103
  %v177 = vunpack.c.l.b16 %v104
  %v178 = vunpack.c.l.b16 %v105
  %v179 = vunpack.c.l.b16 %v106
  %v180 = vunpack.c.l.b16 %v107
  %v181 = vunpack.c.l.b16 %v108
  %v182 = vunpack.c.l.b16 %v109
  %v183 = vunpack.c.l.b16 %v110
  %v184 = vunpack.c.l.b16 %v111
  %v185 = vunpack.c.l.b16 %v112
  %v186 = vunpack.c.l.b16 %v113
  %v187 = vunpack.c.l.b16 %v114
  %v188 = vunpack.c.l.b16 %v115
  %v189 = vpack.c.b16 %v174, %v173
  %v190 = vpack.c.b16 %v176, %v175
  %v191 = vpack.c.b16 %v178, %v177
  %v192 = vpack.c.b16 %v180, %v179
  %v193 = vpack.c.b16 %v182, %v181
  %v194 = vpack.c.b16 %v184, %v183
  %v195 = vpack.c.b16 %v186, %v185
  %v196 = vpack.c.b16 %v188, %v187
  %205 = vmatpush.bf16.msra.mxu0 %v196
  %206 = vmatpush.bf16.msra.mxu0 %v195
  %207 = vmatpush.bf16.msra.mxu0 %v194
  %208 = vmatpush.bf16.msra.mxu0 %v193
  %209 = vmatpush.bf16.msra.mxu0 %v192
  %210 = vmatpush.bf16.msra.mxu0 %v191
  %211 = vmatpush.bf16.msra.mxu0 %v190
  %212 = vmatpush.bf16.msra.mxu0 %v189
  %213 = vmatmul.bf16.gmra.mxu0 %v128
  %v214 = vpop.f32.mrf.mxu0
  %v215 = vadd.f32 0.0, %v214
  %v216 = vpop.f32.mrf.mxu0
  %v217 = vadd.f32 0.0, %v216
  %218 = vmatmul.bf16.gmra.mxu0 %v136
  %v219 = vpop.f32.mrf.mxu0
  %v220 = vadd.f32 0.0, %v219
  %v221 = vpop.f32.mrf.mxu0
  %v222 = vadd.f32 0.0, %v221
  %223 = vmatmul.bf16.gmra.mxu0 %v144
  %v224 = vpop.f32.mrf.mxu0
  %v225 = vadd.f32 0.0, %v224
  %v226 = vpop.f32.mrf.mxu0
  %v227 = vadd.f32 0.0, %v226
  %228 = vmatmul.bf16.gmra.mxu0 %v152
  %v229 = vpop.f32.mrf.mxu0
  %v230 = vadd.f32 0.0, %v229
  %v231 = vpop.f32.mrf.mxu0
  %v232 = vadd.f32 0.0, %v231
  %233 = vdwg.mxu0
  %v250 = vunpack.c.l.b16 %v83
  %v251 = vunpack.c.l.b16 %v84
  %v252 = vunpack.c.l.b16 %v85
  %v253 = vunpack.c.l.b16 %v86
  %v254 = vunpack.c.l.b16 %v87
  %v255 = vunpack.c.l.b16 %v88
  %v256 = vunpack.c.l.b16 %v89
  %v257 = vunpack.c.l.b16 %v90
  %v258 = vunpack.c.l.b16 %v91
  %v259 = vunpack.c.l.b16 %v92
  %v260 = vunpack.c.l.b16 %v93
  %v261 = vunpack.c.l.b16 %v94
  %v262 = vunpack.c.l.b16 %v95
  %v263 = vunpack.c.l.b16 %v96
  %v264 = vunpack.c.l.b16 %v97
  %v265 = vunpack.c.l.b16 %v98
  %v266 = vpack.c.b16 %v251, %v250
  %v267 = vpack.c.b16 %v253, %v252
  %v268 = vpack.c.b16 %v255, %v254
  %v269 = vpack.c.b16 %v257, %v256
  %v270 = vpack.c.b16 %v259, %v258
  %v271 = vpack.c.b16 %v261, %v260
  %v272 = vpack.c.b16 %v263, %v262
  %v273 = vpack.c.b16 %v265, %v264
  %282 = vmatpush.bf16.msra.mxu0 %v273
  %283 = vmatpush.bf16.msra.mxu0 %v272
  %284 = vmatpush.bf16.msra.mxu0 %v271
  %285 = vmatpush.bf16.msra.mxu0 %v270
  %286 = vmatpush.bf16.msra.mxu0 %v269
  %287 = vmatpush.bf16.msra.mxu0 %v268
  %288 = vmatpush.bf16.msra.mxu0 %v267
  %289 = vmatpush.bf16.msra.mxu0 %v266
  %290 = vmatmul.bf16.gmra.mxu0 %v70
  %v291 = vpop.f32.mrf.mxu0
  %v292 = vadd.f32 %v215, %v291
  %v293 = vpop.f32.mrf.mxu0
  %v294 = vadd.f32 %v217, %v293
  %295 = vmatmul.bf16.gmra.mxu0 %v71
  %v296 = vpop.f32.mrf.mxu0
  %v297 = vadd.f32 %v220, %v296
  %v298 = vpop.f32.mrf.mxu0
  %v299 = vadd.f32 %v222, %v298
  %300 = vmatmul.bf16.gmra.mxu0 %v72
  %v301 = vpop.f32.mrf.mxu0
  %v302 = vadd.f32 %v225, %v301
  %v303 = vpop.f32.mrf.mxu0
  %v304 = vadd.f32 %v227, %v303
  %305 = vmatmul.bf16.gmra.mxu0 %v73
  %v306 = vpop.f32.mrf.mxu0
  %v307 = vadd.f32 %v230, %v306
  %v308 = vpop.f32.mrf.mxu0
  %v309 = vadd.f32 %v232, %v308
  %310 = vdwg.mxu0
  %s311 = scalar_lea.vmem %s2, 128
  %v312 = vld [vmem:[%s311] sm:$0xf]
  %v313 = vld [vmem:[%s311 + $0x4] sm:$0xf]
  %v314 = vld [vmem:[%s311 + $0x8] sm:$0xf]
  %v315 = vld [vmem:[%s311 + $0xc] sm:$0xf]
  %v316 = vld [vmem:[%s311 + $0x10] sm:$0xf]
  %v317 = vld [vmem:[%s311 + $0x14] sm:$0xf]
  %v318 = vld [vmem:[%s311 + $0x18] sm:$0xf]
  %v319 = vld [vmem:[%s311 + $0x1c] sm:$0xf]
  %v320 = vld [vmem:[%s311 + $0x20] sm:$0xf]
  %v321 = vld [vmem:[%s311 + $0x24] sm:$0xf]
  %v322 = vld [vmem:[%s311 + $0x28] sm:$0xf]
  %v323 = vld [vmem:[%s311 + $0x2c] sm:$0xf]
  %v324 = vld [vmem:[%s311 + $0x30] sm:$0xf]
  %v325 = vld [vmem:[%s311 + $0x34] sm:$0xf]
  %v326 = vld [vmem:[%s311 + $0x38] sm:$0xf]
  %v327 = vld [vmem:[%s311 + $0x3c] sm:$0xf]
  %vm328 = vsmask.f32 5376
  %v329 = vrot.slane %v118, 2
  %v330 = vrot.slane %v120, 3
  %v331 = vor.u32 %v329, %v330
  %v332 = vrot.slane %v129, 2
  %v333 = vrot.slane %v125, 3
  %v334 = vor.u32 %v332, %v333
  %v335 = vsel %vm328, %v331, %v334
  %v336 = vrot.slane %v137, 2
  %v337 = vrot.slane %v133, 3
  %v338 = vor.u32 %v336, %v337
  %v339 = vsel %vm328, %v334, %v338
  %v340 = vrot.slane %v145, 2
  %v341 = vrot.slane %v141, 3
  %v342 = vor.u32 %v340, %v341
  %v343 = vsel %vm328, %v338, %v342
  %v344 = vshrl.u32 %v82, 16
  %v346 = vrot.slane %v344, 2
  %v347 = vrot.slane %v149, 3
  %v348 = vor.u32 %v346, %v347
  %v349 = vsel %vm328, %v342, %v348
  %v370 = vunpack.c.l.b16 %v312
  %v371 = vunpack.c.l.b16 %v313
  %v372 = vunpack.c.l.b16 %v314
  %v373 = vunpack.c.l.b16 %v315
  %v374 = vunpack.c.l.b16 %v316
  %v375 = vunpack.c.l.b16 %v317
  %v376 = vunpack.c.l.b16 %v318
  %v377 = vunpack.c.l.b16 %v319
  %v378 = vunpack.c.l.b16 %v320
  %v379 = vunpack.c.l.b16 %v321
  %v380 = vunpack.c.l.b16 %v322
  %v381 = vunpack.c.l.b16 %v323
  %v382 = vunpack.c.l.b16 %v324
  %v383 = vunpack.c.l.b16 %v325
  %v384 = vunpack.c.l.b16 %v326
  %v385 = vunpack.c.l.b16 %v327
  %v386 = vpack.c.b16 %v371, %v370
  %v387 = vpack.c.b16 %v373, %v372
  %v388 = vpack.c.b16 %v375, %v374
  %v389 = vpack.c.b16 %v377, %v376
  %v390 = vpack.c.b16 %v379, %v378
  %v391 = vpack.c.b16 %v381, %v380
  %v392 = vpack.c.b16 %v383, %v382
  %v393 = vpack.c.b16 %v385, %v384
  %402 = vmatpush.bf16.msra.mxu0 %v393
  %403 = vmatpush.bf16.msra.mxu0 %v392
  %404 = vmatpush.bf16.msra.mxu0 %v391
  %405 = vmatpush.bf16.msra.mxu0 %v390
  %406 = vmatpush.bf16.msra.mxu0 %v389
  %407 = vmatpush.bf16.msra.mxu0 %v388
  %408 = vmatpush.bf16.msra.mxu0 %v387
  %409 = vmatpush.bf16.msra.mxu0 %v386
  %410 = vmatmul.bf16.gmra.mxu0 %v335
  %v411 = vpop.f32.mrf.mxu0
  %v412 = vadd.f32 0.0, %v411
  %v413 = vpop.f32.mrf.mxu0
  %v414 = vadd.f32 0.0, %v413
  %415 = vmatmul.bf16.gmra.mxu0 %v339
  %v416 = vpop.f32.mrf.mxu0
  %v417 = vadd.f32 0.0, %v416
  %v418 = vpop.f32.mrf.mxu0
  %v419 = vadd.f32 0.0, %v418
  %420 = vmatmul.bf16.gmra.mxu0 %v343
  %v421 = vpop.f32.mrf.mxu0
  %v422 = vadd.f32 0.0, %v421
  %v423 = vpop.f32.mrf.mxu0
  %v424 = vadd.f32 0.0, %v423
  %425 = vmatmul.bf16.gmra.mxu0 %v349
  %v426 = vpop.f32.mrf.mxu0
  %v427 = vadd.f32 0.0, %v426
  %v428 = vpop.f32.mrf.mxu0
  %v429 = vadd.f32 0.0, %v428
  %430 = vdwg.mxu0
  %v431 = vadd.f32 %v292, %v412
  %v432 = vadd.f32 %v294, %v414
  %v433 = vadd.f32 %v297, %v417
  %v434 = vadd.f32 %v299, %v419
  %v435 = vadd.f32 %v302, %v422
  %v436 = vadd.f32 %v304, %v424
  %v437 = vadd.f32 %v307, %v427
  %v438 = vadd.f32 %v309, %v429
  %s439 = scalar_lea.vmem %s2, 192
  %v440 = vld [vmem:[%s439] sm:$0xf]
  %v441 = vld [vmem:[%s439 + $0x4] sm:$0xf]
  %v442 = vld [vmem:[%s439 + $0x8] sm:$0xf]
  %v443 = vld [vmem:[%s439 + $0xc] sm:$0xf]
  %v444 = vld [vmem:[%s439 + $0x10] sm:$0xf]
  %v445 = vld [vmem:[%s439 + $0x14] sm:$0xf]
  %v446 = vld [vmem:[%s439 + $0x18] sm:$0xf]
  %v447 = vld [vmem:[%s439 + $0x1c] sm:$0xf]
  %v448 = vld [vmem:[%s439 + $0x20] sm:$0xf]
  %v449 = vld [vmem:[%s439 + $0x24] sm:$0xf]
  %v450 = vld [vmem:[%s439 + $0x28] sm:$0xf]
  %v451 = vld [vmem:[%s439 + $0x2c] sm:$0xf]
  %v452 = vld [vmem:[%s439 + $0x30] sm:$0xf]
  %v453 = vld [vmem:[%s439 + $0x34] sm:$0xf]
  %v454 = vld [vmem:[%s439 + $0x38] sm:$0xf]
  %v455 = vld [vmem:[%s439 + $0x3c] sm:$0xf]
  %vm456 = vcmask 1044480
  %v457 = vrot.slane %v70, 3
  %v458 = vrot.slane %v71, 3
  %v459 = vsel %vm456, %v457, %v458
  %v460 = vrot.slane %v72, 3
  %v461 = vsel %vm456, %v458, %v460
  %v462 = vrot.slane %v73, 3
  %v463 = vsel %vm456, %v460, %v462
  %v464 = vrot.slane %v82, 3
  %v465 = vsel %vm456, %v462, %v464
  %v486 = vunpack.c.l.b16 %v440
  %v487 = vunpack.c.l.b16 %v441
  %v488 = vunpack.c.l.b16 %v442
  %v489 = vunpack.c.l.b16 %v443
  %v490 = vunpack.c.l.b16 %v444
  %v491 = vunpack.c.l.b16 %v445
  %v492 = vunpack.c.l.b16 %v446
  %v493 = vunpack.c.l.b16 %v447
  %v494 = vunpack.c.l.b16 %v448
  %v495 = vunpack.c.l.b16 %v449
  %v496 = vunpack.c.l.b16 %v450
  %v497 = vunpack.c.l.b16 %v451
  %v498 = vunpack.c.l.b16 %v452
  %v499 = vunpack.c.l.b16 %v453
  %v500 = vunpack.c.l.b16 %v454
  %v501 = vunpack.c.l.b16 %v455
  %v502 = vpack.c.b16 %v487, %v486
  %v503 = vpack.c.b16 %v489, %v488
  %v504 = vpack.c.b16 %v491, %v490
  %v505 = vpack.c.b16 %v493, %v492
  %v506 = vpack.c.b16 %v495, %v494
  %v507 = vpack.c.b16 %v497, %v496
  %v508 = vpack.c.b16 %v499, %v498
  %v509 = vpack.c.b16 %v501, %v500
  %518 = vmatpush.bf16.msra.mxu0 %v509
  %519 = vmatpush.bf16.msra.mxu0 %v508
  %520 = vmatpush.bf16.msra.mxu0 %v507
  %521 = vmatpush.bf16.msra.mxu0 %v506
  %522 = vmatpush.bf16.msra.mxu0 %v505
  %523 = vmatpush.bf16.msra.mxu0 %v504
  %524 = vmatpush.bf16.msra.mxu0 %v503
  %525 = vmatpush.bf16.msra.mxu0 %v502
  %526 = vmatmul.bf16.gmra.mxu0 %v459
  %v527 = vpop.f32.mrf.mxu0
  %v528 = vadd.f32 0.0, %v527
  %v529 = vpop.f32.mrf.mxu0
  %v530 = vadd.f32 0.0, %v529
  %531 = vmatmul.bf16.gmra.mxu0 %v461
  %v532 = vpop.f32.mrf.mxu0
  %v533 = vadd.f32 0.0, %v532
  %v534 = vpop.f32.mrf.mxu0
  %v535 = vadd.f32 0.0, %v534
  %536 = vmatmul.bf16.gmra.mxu0 %v463
  %v537 = vpop.f32.mrf.mxu0
  %v538 = vadd.f32 0.0, %v537
  %v539 = vpop.f32.mrf.mxu0
  %v540 = vadd.f32 0.0, %v539
  %541 = vmatmul.bf16.gmra.mxu0 %v465
  %v542 = vpop.f32.mrf.mxu0
  %v543 = vadd.f32 0.0, %v542
  %v544 = vpop.f32.mrf.mxu0
  %v545 = vadd.f32 0.0, %v544
  %546 = vdwg.mxu0
  %v547 = vadd.f32 %v431, %v528
  %v548 = vadd.f32 %v432, %v530
  %v549 = vadd.f32 %v433, %v533
  %v550 = vadd.f32 %v434, %v535
  %v551 = vadd.f32 %v435, %v538
  %v552 = vadd.f32 %v436, %v540
  %v553 = vadd.f32 %v437, %v543
  %v554 = vadd.f32 %v438, %v545
  %v555 = vld [vmem:[%s3] sm:$0x1]
  %v557 = vperm.slane %v555, 0
  %v559 = vadd.f32 %v547, %v557
  %v560 = vadd.f32 %v548, %v557
  %v561 = vadd.f32 %v549, %v557
  %v562 = vadd.f32 %v550, %v557
  %v563 = vadd.f32 %v551, %v557
  %v564 = vadd.f32 %v552, %v557
  %v565 = vadd.f32 %v553, %v557
  %v566 = vadd.f32 %v554, %v557
  %v567 = vmul.f32 %v559, 0.2
  %v568 = vmul.f32 %v560, 0.2
  %v569 = vmul.f32 %v561, 0.2
  %v570 = vmul.f32 %v562, 0.2
  %v571 = vmul.f32 %v563, 0.2
  %v572 = vmul.f32 %v564, 0.2
  %v573 = vmul.f32 %v565, 0.2
  %v574 = vmul.f32 %v566, 0.2
  %v575 = vmax.f32 %v559, %v567
  %v576 = vmax.f32 %v560, %v568
  %v577 = vmax.f32 %v561, %v569
  %v578 = vmax.f32 %v562, %v570
  %v579 = vmax.f32 %v563, %v571
  %v580 = vmax.f32 %v564, %v572
  %v581 = vmax.f32 %v565, %v573
  %v582 = vmax.f32 %v566, %v574
  %v583 = vpack.c.bf16 %v575, %v575
  %v584 = vpack.c.bf16 %v576, %v576
  %v585 = vpack.c.bf16 %v577, %v577
  %v586 = vpack.c.bf16 %v578, %v578
  %v587 = vpack.c.bf16 %v579, %v579
  %v588 = vpack.c.bf16 %v580, %v580
  %v589 = vpack.c.bf16 %v581, %v581
  %v590 = vpack.c.bf16 %v582, %v582
  %591 = vst [vmem:[%s4] sm:$0xf] %v583
  %592 = vst [vmem:[%s4 + $0x4] sm:$0xf] %v584
  %593 = vst [vmem:[%s4 + $0x8] sm:$0xf] %v585
  %594 = vst [vmem:[%s4 + $0xc] sm:$0xf] %v586
  %595 = vst [vmem:[%s4 + $0x10] sm:$0xf] %v587
  %596 = vst [vmem:[%s4 + $0x14] sm:$0xf] %v588
  %597 = vst [vmem:[%s4 + $0x18] sm:$0xf] %v589
  %598 = vst [vmem:[%s4 + $0x1c] sm:$0xf] %v590
  // Predicated region
  $region18: #{discriminator_forward.6} parent=0 // pred_check
    _
  $region19: #{discriminator_forward.6} parent=0 // pred_check_branch
    %600 = sbr.rel (0) target = $region21
  $region20: #{discriminator_forward.6} parent=0 // pred_region
    _
  $region21: #{discriminator_forward.6} parent=0 // pred_fallthru
    _
  // Predicated region
  $region22: #{discriminator_forward.6} parent=0 // pred_check
    _
  $region23: #{discriminator_forward.6} parent=0 // pred_check_branch
    %602 = sbr.rel (0) target = $region25
  $region24: #{discriminator_forward.6} parent=0 // pred_region
    _
  $region25: #{discriminator_forward.6} parent=0 // pred_fallthru
    _

// kernel: discriminator_forward.7
$region0: #{discriminator_forward.7}
  #allocation0 [shape = 'u32[]', space=smem, size = 0x4, offset = 0x4, fixed_abs, tag = 'smem constant byte address 0x4 - core index']
  #allocation1 [shape = 'u32[72,128]{1,0:T(1,128)}', space=vmem, size = 0x9000, scoped, tag = 'internal scratch']
  %s0 = inlined_call_operand.vmem [shape: bf16[48,128], index: 0, kind: input, shape index: {}, may-alias: {0,1}]
  %s1 = inlined_call_operand.vmem [shape: bf16[48,128], index: 1, kind: input, shape index: {}, may-alias: {0,1}]
  %s2 = inlined_call_operand.vmem [shape: bf16[4,128,128], index: 2, kind: input, shape index: {}]
  %s3 = inlined_call_operand.vmem [shape: f32[1,128], index: 3, kind: input, shape index: {}]
  %s4 = inlined_call_operand.vmem [shape: bf16[32,128], index: 4, kind: output, shape index: {}]
  %s5 = sld [smem:[#allocation0]]
  $region26: #{discriminator_forward.7} parent=0
    _
  %s7 = ssub.s32 1, %s5
  %s8 = scalar_select 0, %s7, %s5
  // Predicated region
  $region2: #{discriminator_forward.7} parent=0 // pred_check
    _
  $region3: #{discriminator_forward.7} parent=0 // pred_check_branch
    %10 = sbr.rel (0) target = $region5
  $region4: #{discriminator_forward.7} parent=0 // pred_region
    _
  $region5: #{discriminator_forward.7} parent=0 // pred_fallthru
    _
  // Predicated region
  $region6: #{discriminator_forward.7} parent=0 // pred_check
    _
  $region7: #{discriminator_forward.7} parent=0 // pred_check_branch
    %12 = sbr.rel (0) target = $region9
  $region8: #{discriminator_forward.7} parent=0 // pred_region
    %s13 = sadd.s32 0, 1
    %s14 = smul.u32 %s13, 2
    %s15 = smul.u32 2, %s14
    %p16 = scmp.lt.s32.totalorder %s15, 5
    %s17 = scalar_select %p16, %s15, 5
    %s18 = smul.addr %s17, 4
    %s19 = scalar_lea.vmem %s1, %s18
    %s20 = sadd.s32 0, 1
    %s21 = smul.u32 %s20, 2
    %s22 = smul.u32 2, %s21
  $region9: #{discriminator_forward.7} parent=0 // pred_fallthru
    _
  // Predicated region
  $region10: #{discriminator_forward.7} parent=0 // pred_check
    _
  $region11: #{discriminator_forward.7} parent=0 // pred_check_branch
    %24 = sbr.rel (0) target = $region13
  $region12: #{discriminator_forward.7} parent=0 // pred_region
    _
  $region13: #{discriminator_forward.7} parent=0 // pred_fallthru
    _
  // Predicated region
  $region14: #{discriminator_forward.7} parent=0 // pred_check
    _
  $region15: #{discriminator_forward.7} parent=0 // pred_check_branch
    %26 = sbr.rel (0) target = $region17
  $region16: #{discriminator_forward.7} parent=0 // pred_region
    _
  $region17: #{discriminator_forward.7} parent=0 // pred_fallthru
    _
  %s27 = sadd.s32 0, 1
  %s28 = smul.u32 %s27, 2
  %s29 = smul.u32 2, %s28
  %p30 = scmp.lt.s32.totalorder %s29, 5
  %s31 = scalar_select %p30, %s29, 5
  %s32 = smul.addr %s31, 4
  %s33 = scalar_lea.vmem %s1, %s32
  %s34 = sadd.s32 0, 1
  %s35 = smul.u32 %s34, 2
  %s36 = smul.u32 2, %s35
  %p37 = scmp.lt.s32.totalorder %s36, 5
  %s38 = scalar_select %p37, %s36, 5
  %s39 = smul.addr %s38, 4
  %s40 = scalar_lea.vmem %s1, %s39
  %s41 = sadd.s32 0, 1
  %s42 = smul.u32 %s41, 2
  %s43 = smul.u32 2, %s42
  %v44 = vld [vmem:[%s0] sm:$0xf]
  %v45 = vld [vmem:[%s0 + $0x4] sm:$0xf]
  %v46 = vld [vmem:[%s0 + $0x8] sm:$0xf]
  %v47 = vld [vmem:[%s0 + $0xc] sm:$0xf]
  %v48 = vld [vmem:[%s40] sm:$0xf]
  %v49 = vld [vmem:[%s40 + $0x4] sm:$0xf]
  %v54 = vunpack.c.l.b16 %v44
  %v55 = vunpack.c.l.b16 %v45
  %v56 = vunpack.c.l.b16 %v46
  %v57 = vunpack.c.l.b16 %v47
  %v58 = vpack.c.b16 %v55, %v54
  %v59 = vpack.c.b16 %v57, %v56
  %v64 = vunpack.c.l.b16 %v48
  %v65 = vunpack.c.l.b16 %v49
  %v66 = vpack.c.b16 %v65, %v64
  %v67 = vld [vmem:[%s2] sm:$0xf]
  %v68 = vld [vmem:[%s2 + $0x4] sm:$0xf]
  %v69 = vld [vmem:[%s2 + $0x8] sm:$0xf]
  %v70 = vld [vmem:[%s2 + $0xc] sm:$0xf]
  %v71 = vld [vmem:[%s2 + $0x10] sm:$0xf]
  %v72 = vld [vmem:[%s2 + $0x14] sm:$0xf]
  %v73 = vld [vmem:[%s2 + $0x18] sm:$0xf]
  %v74 = vld [vmem:[%s2 + $0x1c] sm:$0xf]
  %v75 = vld [vmem:[%s2 + $0x20] sm:$0xf]
  %v76 = vld [vmem:[%s2 + $0x24] sm:$0xf]
  %v77 = vld [vmem:[%s2 + $0x28] sm:$0xf]
  %v78 = vld [vmem:[%s2 + $0x2c] sm:$0xf]
  %v79 = vld [vmem:[%s2 + $0x30] sm:$0xf]
  %v80 = vld [vmem:[%s2 + $0x34] sm:$0xf]
  %v81 = vld [vmem:[%s2 + $0x38] sm:$0xf]
  %v82 = vld [vmem:[%s2 + $0x3c] sm:$0xf]
  %s83 = scalar_lea.vmem %s2, 64
  %v84 = vld [vmem:[%s83] sm:$0xf]
  %v85 = vld [vmem:[%s83 + $0x4] sm:$0xf]
  %v86 = vld [vmem:[%s83 + $0x8] sm:$0xf]
  %v87 = vld [vmem:[%s83 + $0xc] sm:$0xf]
  %v88 = vld [vmem:[%s83 + $0x10] sm:$0xf]
  %v89 = vld [vmem:[%s83 + $0x14] sm:$0xf]
  %v90 = vld [vmem:[%s83 + $0x18] sm:$0xf]
  %v91 = vld [vmem:[%s83 + $0x1c] sm:$0xf]
  %v92 = vld [vmem:[%s83 + $0x20] sm:$0xf]
  %v93 = vld [vmem:[%s83 + $0x24] sm:$0xf]
  %v94 = vld [vmem:[%s83 + $0x28] sm:$0xf]
  %v95 = vld [vmem:[%s83 + $0x2c] sm:$0xf]
  %v96 = vld [vmem:[%s83 + $0x30] sm:$0xf]
  %v97 = vld [vmem:[%s83 + $0x34] sm:$0xf]
  %v98 = vld [vmem:[%s83 + $0x38] sm:$0xf]
  %v99 = vld [vmem:[%s83 + $0x3c] sm:$0xf]
  %vm100 = vsmask.f32 7424
  %v102 = vshrl.u32 %v58, 16
  %v104 = vshll.u32 %v58, 16
  %v106 = vrot.slane %v104, 1
  %v107 = vor.u32 %v102, %v106
  %v109 = vshll.u32 %v59, 16
  %v111 = vrot.slane %v109, 1
  %v112 = vsel %vm100, %v107, %v111
  %v113 = vshrl.u32 %v59, 16
  %v115 = vor.u32 %v113, %v111
  %v117 = vshll.u32 %v66, 16
  %v119 = vrot.slane %v117, 1
  %v120 = vsel %vm100, %v115, %v119
  %v139 = vunpack.c.l.b16 %v84
  %v140 = vunpack.c.l.b16 %v85
  %v141 = vunpack.c.l.b16 %v86
  %v142 = vunpack.c.l.b16 %v87
  %v143 = vunpack.c.l.b16 %v88
  %v144 = vunpack.c.l.b16 %v89
  %v145 = vunpack.c.l.b16 %v90
  %v146 = vunpack.c.l.b16 %v91
  %v147 = vunpack.c.l.b16 %v92
  %v148 = vunpack.c.l.b16 %v93
  %v149 = vunpack.c.l.b16 %v94
  %v150 = vunpack.c.l.b16 %v95
  %v151 = vunpack.c.l.b16 %v96
  %v152 = vunpack.c.l.b16 %v97
  %v153 = vunpack.c.l.b16 %v98
  %v154 = vunpack.c.l.b16 %v99
  %v155 = vpack.c.b16 %v140, %v139
  %v156 = vpack.c.b16 %v142, %v141
  %v157 = vpack.c.b16 %v144, %v143
  %v158 = vpack.c.b16 %v146, %v145
  %v159 = vpack.c.b16 %v148, %v147
  %v160 = vpack.c.b16 %v150, %v149
  %v161 = vpack.c.b16 %v152, %v151
  %v162 = vpack.c.b16 %v154, %v153
  %171 = vmatpush.bf16.msra.mxu0 %v162
  %172 = vmatpush.bf16.msra.mxu0 %v161
  %173 = vmatpush.bf16.msra.mxu0 %v160
  %174 = vmatpush.bf16.msra.mxu0 %v159
  %175 = vmatpush.bf16.msra.mxu0 %v158
  %176 = vmatpush.bf16.msra.mxu0 %v157
  %177 = vmatpush.bf16.msra.mxu0 %v156
  %178 = vmatpush.bf16.msra.mxu0 %v155
  %179 = vmatmul.bf16.gmra.mxu0 %v112
  %v180 = vpop.f32.mrf.mxu0
  %v181 = vadd.f32 0.0, %v180
  %v182 = vpop.f32.mrf.mxu0
  %v183 = vadd.f32 0.0, %v182
  %184 = vmatmul.bf16.gmra.mxu0 %v120
  %v185 = vpop.f32.mrf.mxu0
  %v186 = vadd.f32 0.0, %v185
  %v187 = vpop.f32.mrf.mxu0
  %v188 = vadd.f32 0.0, %v187
  %189 = vdwg.mxu0
  %v206 = vunpack.c.l.b16 %v67
  %v207 = vunpack.c.l.b16 %v68
  %v208 = vunpack.c.l.b16 %v69
  %v209 = vunpack.c.l.b16 %v70
  %v210 = vunpack.c.l.b16 %v71
  %v211 = vunpack.c.l.b16 %v72
  %v212 = vunpack.c.l.b16 %v73
  %v213 = vunpack.c.l.b16 %v74
  %v214 = vunpack.c.l.b16 %v75
  %v215 = vunpack.c.l.b16 %v76
  %v216 = vunpack.c.l.b16 %v77
  %v217 = vunpack.c.l.b16 %v78
  %v218 = vunpack.c.l.b16 %v79
  %v219 = vunpack.c.l.b16 %v80
  %v220 = vunpack.c.l.b16 %v81
  %v221 = vunpack.c.l.b16 %v82
  %v222 = vpack.c.b16 %v207, %v206
  %v223 = vpack.c.b16 %v209, %v208
  %v224 = vpack.c.b16 %v211, %v210
  %v225 = vpack.c.b16 %v213, %v212
  %v226 = vpack.c.b16 %v215, %v214
  %v227 = vpack.c.b16 %v217, %v216
  %v228 = vpack.c.b16 %v219, %v218
  %v229 = vpack.c.b16 %v221, %v220
  %238 = vmatpush.bf16.msra.mxu0 %v229
  %239 = vmatpush.bf16.msra.mxu0 %v228
  %240 = vmatpush.bf16.msra.mxu0 %v227
  %241 = vmatpush.bf16.msra.mxu0 %v226
  %242 = vmatpush.bf16.msra.mxu0 %v225
  %243 = vmatpush.bf16.msra.mxu0 %v224
  %244 = vmatpush.bf16.msra.mxu0 %v223
  %245 = vmatpush.bf16.msra.mxu0 %v222
  %246 = vmatmul.bf16.gmra.mxu0 %v58
  %v247 = vpop.f32.mrf.mxu0
  %v248 = vadd.f32 %v181, %v247
  %v249 = vpop.f32.mrf.mxu0
  %v250 = vadd.f32 %v183, %v249
  %251 = vmatmul.bf16.gmra.mxu0 %v59
  %v252 = vpop.f32.mrf.mxu0
  %v253 = vadd.f32 %v186, %v252
  %v254 = vpop.f32.mrf.mxu0
  %v255 = vadd.f32 %v188, %v254
  %256 = vdwg.mxu0
  %s257 = scalar_lea.vmem %s2, 128
  %v258 = vld [vmem:[%s257] sm:$0xf]
  %v259 = vld [vmem:[%s257 + $0x4] sm:$0xf]
  %v260 = vld [vmem:[%s257 + $0x8] sm:$0xf]
  %v261 = vld [vmem:[%s257 + $0xc] sm:$0xf]
  %v262 = vld [vmem:[%s257 + $0x10] sm:$0xf]
  %v263 = vld [vmem:[%s257 + $0x14] sm:$0xf]
  %v264 = vld [vmem:[%s257 + $0x18] sm:$0xf]
  %v265 = vld [vmem:[%s257 + $0x1c] sm:$0xf]
  %v266 = vld [vmem:[%s257 + $0x20] sm:$0xf]
  %v267 = vld [vmem:[%s257 + $0x24] sm:$0xf]
  %v268 = vld [vmem:[%s257 + $0x28] sm:$0xf]
  %v269 = vld [vmem:[%s257 + $0x2c] sm:$0xf]
  %v270 = vld [vmem:[%s257 + $0x30] sm:$0xf]
  %v271 = vld [vmem:[%s257 + $0x34] sm:$0xf]
  %v272 = vld [vmem:[%s257 + $0x38] sm:$0xf]
  %v273 = vld [vmem:[%s257 + $0x3c] sm:$0xf]
  %vm274 = vsmask.f32 6400
  %v275 = vrot.slane %v102, 1
  %v276 = vrot.slane %v104, 2
  %v277 = vor.u32 %v275, %v276
  %v278 = vrot.slane %v113, 1
  %v279 = vrot.slane %v109, 2
  %v280 = vor.u32 %v278, %v279
  %v281 = vsel %vm274, %v277, %v280
  %v282 = vshrl.u32 %v66, 16
  %v284 = vrot.slane %v282, 1
  %v285 = vrot.slane %v117, 2
  %v286 = vor.u32 %v284, %v285
  %v287 = vsel %vm274, %v280, %v286
  %v306 = vunpack.c.l.b16 %v258
  %v307 = vunpack.c.l.b16 %v259
  %v308 = vunpack.c.l.b16 %v260
  %v309 = vunpack.c.l.b16 %v261
  %v310 = vunpack.c.l.b16 %v262
  %v311 = vunpack.c.l.b16 %v263
  %v312 = vunpack.c.l.b16 %v264
  %v313 = vunpack.c.l.b16 %v265
  %v314 = vunpack.c.l.b16 %v266
  %v315 = vunpack.c.l.b16 %v267
  %v316 = vunpack.c.l.b16 %v268
  %v317 = vunpack.c.l.b16 %v269
  %v318 = vunpack.c.l.b16 %v270
  %v319 = vunpack.c.l.b16 %v271
  %v320 = vunpack.c.l.b16 %v272
  %v321 = vunpack.c.l.b16 %v273
  %v322 = vpack.c.b16 %v307, %v306
  %v323 = vpack.c.b16 %v309, %v308
  %v324 = vpack.c.b16 %v311, %v310
  %v325 = vpack.c.b16 %v313, %v312
  %v326 = vpack.c.b16 %v315, %v314
  %v327 = vpack.c.b16 %v317, %v316
  %v328 = vpack.c.b16 %v319, %v318
  %v329 = vpack.c.b16 %v321, %v320
  %338 = vmatpush.bf16.msra.mxu0 %v329
  %339 = vmatpush.bf16.msra.mxu0 %v328
  %340 = vmatpush.bf16.msra.mxu0 %v327
  %341 = vmatpush.bf16.msra.mxu0 %v326
  %342 = vmatpush.bf16.msra.mxu0 %v325
  %343 = vmatpush.bf16.msra.mxu0 %v324
  %344 = vmatpush.bf16.msra.mxu0 %v323
  %345 = vmatpush.bf16.msra.mxu0 %v322
  %346 = vmatmul.bf16.gmra.mxu0 %v281
  %v347 = vpop.f32.mrf.mxu0
  %v348 = vadd.f32 0.0, %v347
  %v349 = vpop.f32.mrf.mxu0
  %v350 = vadd.f32 0.0, %v349
  %351 = vmatmul.bf16.gmra.mxu0 %v287
  %v352 = vpop.f32.mrf.mxu0
  %v353 = vadd.f32 0.0, %v352
  %v354 = vpop.f32.mrf.mxu0
  %v355 = vadd.f32 0.0, %v354
  %356 = vdwg.mxu0
  %v357 = vadd.f32 %v248, %v348
  %v358 = vadd.f32 %v250, %v350
  %v359 = vadd.f32 %v253, %v353
  %v360 = vadd.f32 %v255, %v355
  %s361 = scalar_lea.vmem %s2, 192
  %v362 = vld [vmem:[%s361] sm:$0xf]
  %v363 = vld [vmem:[%s361 + $0x4] sm:$0xf]
  %v364 = vld [vmem:[%s361 + $0x8] sm:$0xf]
  %v365 = vld [vmem:[%s361 + $0xc] sm:$0xf]
  %v366 = vld [vmem:[%s361 + $0x10] sm:$0xf]
  %v367 = vld [vmem:[%s361 + $0x14] sm:$0xf]
  %v368 = vld [vmem:[%s361 + $0x18] sm:$0xf]
  %v369 = vld [vmem:[%s361 + $0x1c] sm:$0xf]
  %v370 = vld [vmem:[%s361 + $0x20] sm:$0xf]
  %v371 = vld [vmem:[%s361 + $0x24] sm:$0xf]
  %v372 = vld [vmem:[%s361 + $0x28] sm:$0xf]
  %v373 = vld [vmem:[%s361 + $0x2c] sm:$0xf]
  %v374 = vld [vmem:[%s361 + $0x30] sm:$0xf]
  %v375 = vld [vmem:[%s361 + $0x34] sm:$0xf]
  %v376 = vld [vmem:[%s361 + $0x38] sm:$0xf]
  %v377 = vld [vmem:[%s361 + $0x3c] sm:$0xf]
  %vm378 = vcmask 1045504
  %v379 = vrot.slane %v58, 2
  %v380 = vrot.slane %v59, 2
  %v381 = vsel %vm378, %v379, %v380
  %v382 = vrot.slane %v66, 2
  %v383 = vsel %vm378, %v380, %v382
  %v402 = vunpack.c.l.b16 %v362
  %v403 = vunpack.c.l.b16 %v363
  %v404 = vunpack.c.l.b16 %v364
  %v405 = vunpack.c.l.b16 %v365
  %v406 = vunpack.c.l.b16 %v366
  %v407 = vunpack.c.l.b16 %v367
  %v408 = vunpack.c.l.b16 %v368
  %v409 = vunpack.c.l.b16 %v369
  %v410 = vunpack.c.l.b16 %v370
  %v411 = vunpack.c.l.b16 %v371
  %v412 = vunpack.c.l.b16 %v372
  %v413 = vunpack.c.l.b16 %v373
  %v414 = vunpack.c.l.b16 %v374
  %v415 = vunpack.c.l.b16 %v375
  %v416 = vunpack.c.l.b16 %v376
  %v417 = vunpack.c.l.b16 %v377
  %v418 = vpack.c.b16 %v403, %v402
  %v419 = vpack.c.b16 %v405, %v404
  %v420 = vpack.c.b16 %v407, %v406
  %v421 = vpack.c.b16 %v409, %v408
  %v422 = vpack.c.b16 %v411, %v410
  %v423 = vpack.c.b16 %v413, %v412
  %v424 = vpack.c.b16 %v415, %v414
  %v425 = vpack.c.b16 %v417, %v416
  %434 = vmatpush.bf16.msra.mxu0 %v425
  %435 = vmatpush.bf16.msra.mxu0 %v424
  %436 = vmatpush.bf16.msra.mxu0 %v423
  %437 = vmatpush.bf16.msra.mxu0 %v422
  %438 = vmatpush.bf16.msra.mxu0 %v421
  %439 = vmatpush.bf16.msra.mxu0 %v420
  %440 = vmatpush.bf16.msra.mxu0 %v419
  %441 = vmatpush.bf16.msra.mxu0 %v418
  %442 = vmatmul.bf16.gmra.mxu0 %v381
  %v443 = vpop.f32.mrf.mxu0
  %v444 = vadd.f32 0.0, %v443
  %v445 = vpop.f32.mrf.mxu0
  %v446 = vadd.f32 0.0, %v445
  %447 = vmatmul.bf16.gmra.mxu0 %v383
  %v448 = vpop.f32.mrf.mxu0
  %v449 = vadd.f32 0.0, %v448
  %v450 = vpop.f32.mrf.mxu0
  %v451 = vadd.f32 0.0, %v450
  %452 = vdwg.mxu0
  %v453 = vadd.f32 %v357, %v444
  %v454 = vadd.f32 %v358, %v446
  %v455 = vadd.f32 %v359, %v449
  %v456 = vadd.f32 %v360, %v451
  %v457 = vld [vmem:[%s3] sm:$0x1]
  %v459 = vperm.slane %v457, 0
  %v461 = vadd.f32 %v453, %v459
  %v462 = vadd.f32 %v454, %v459
  %v463 = vadd.f32 %v455, %v459
  %v464 = vadd.f32 %v456, %v459
  %v465 = vmul.f32 %v461, 0.2
  %v466 = vmul.f32 %v462, 0.2
  %v467 = vmul.f32 %v463, 0.2
  %v468 = vmul.f32 %v464, 0.2
  %v469 = vmax.f32 %v461, %v465
  %v470 = vmax.f32 %v462, %v466
  %v471 = vmax.f32 %v463, %v467
  %v472 = vmax.f32 %v464, %v468
  %v473 = vpack.c.bf16 %v469, %v469
  %v474 = vpack.c.bf16 %v470, %v470
  %v475 = vpack.c.bf16 %v471, %v471
  %v476 = vpack.c.bf16 %v472, %v472
  %477 = vst [vmem:[%s4] sm:$0xf] %v473
  %478 = vst [vmem:[%s4 + $0x4] sm:$0xf] %v474
  %479 = vst [vmem:[%s4 + $0x8] sm:$0xf] %v475
  %480 = vst [vmem:[%s4 + $0xc] sm:$0xf] %v476
  // Predicated region
  $region18: #{discriminator_forward.7} parent=0 // pred_check
    _
  $region19: #{discriminator_forward.7} parent=0 // pred_check_branch
    %482 = sbr.rel (0) target = $region21
  $region20: #{discriminator_forward.7} parent=0 // pred_region
    _
  $region21: #{discriminator_forward.7} parent=0 // pred_fallthru
    _
  // Predicated region
  $region22: #{discriminator_forward.7} parent=0 // pred_check
    _
  $region23: #{discriminator_forward.7} parent=0 // pred_check_branch
    %484 = sbr.rel (0) target = $region25
  $region24: #{discriminator_forward.7} parent=0 // pred_region
    _
  $region25: #{discriminator_forward.7} parent=0 // pred_fallthru
    _

// kernel: discriminator_forward.8
$region0: #{discriminator_forward.8}
  #allocation0 [shape = 'u32[]', space=smem, size = 0x4, offset = 0x4, fixed_abs, tag = 'smem constant byte address 0x4 - core index']
  #allocation1 [shape = 'u32[72,128]{1,0:T(1,128)}', space=vmem, size = 0x9000, scoped, tag = 'internal scratch']
  %s0 = inlined_call_operand.vmem [shape: bf16[32,128], index: 0, kind: input, shape index: {}, may-alias: {0,1}]
  %s1 = inlined_call_operand.vmem [shape: bf16[32,128], index: 1, kind: input, shape index: {}, may-alias: {0,1}]
  %s2 = inlined_call_operand.vmem [shape: bf16[4,128,128], index: 2, kind: input, shape index: {}]
  %s3 = inlined_call_operand.vmem [shape: f32[1,128], index: 3, kind: input, shape index: {}]
  %s4 = inlined_call_operand.vmem [shape: bf16[16,128], index: 4, kind: output, shape index: {}]
  %s5 = sld [smem:[#allocation0]]
  $region26: #{discriminator_forward.8} parent=0
    _
  %s7 = ssub.s32 1, %s5
  %s8 = scalar_select 0, %s7, %s5
  // Predicated region
  $region2: #{discriminator_forward.8} parent=0 // pred_check
    _
  $region3: #{discriminator_forward.8} parent=0 // pred_check_branch
    %10 = sbr.rel (0) target = $region5
  $region4: #{discriminator_forward.8} parent=0 // pred_region
    _
  $region5: #{discriminator_forward.8} parent=0 // pred_fallthru
    _
  // Predicated region
  $region6: #{discriminator_forward.8} parent=0 // pred_check
    _
  $region7: #{discriminator_forward.8} parent=0 // pred_check_branch
    %12 = sbr.rel (0) target = $region9
  $region8: #{discriminator_forward.8} parent=0 // pred_region
    %s13 = sadd.s32 0, 1
    %s14 = smul.u32 2, %s13
    %p15 = scmp.lt.s32.totalorder %s14, 3
    %s16 = scalar_select %p15, %s14, 3
    %s17 = smul.addr %s16, 4
    %s18 = scalar_lea.vmem %s1, %s17
    %s19 = sadd.s32 0, 1
    %s20 = smul.u32 2, %s19
  $region9: #{discriminator_forward.8} parent=0 // pred_fallthru
    _
  // Predicated region
  $region10: #{discriminator_forward.8} parent=0 // pred_check
    _
  $region11: #{discriminator_forward.8} parent=0 // pred_check_branch
    %22 = sbr.rel (0) target = $region13
  $region12: #{discriminator_forward.8} parent=0 // pred_region
    _
  $region13: #{discriminator_forward.8} parent=0 // pred_fallthru
    _
  // Predicated region
  $region14: #{discriminator_forward.8} parent=0 // pred_check
    _
  $region15: #{discriminator_forward.8} parent=0 // pred_check_branch
    %24 = sbr.rel (0) target = $region17
  $region16: #{discriminator_forward.8} parent=0 // pred_region
    _
  $region17: #{discriminator_forward.8} parent=0 // pred_fallthru
    _
  %s25 = sadd.s32 0, 1
  %s26 = smul.u32 2, %s25
  %p27 = scmp.lt.s32.totalorder %s26, 3
  %s28 = scalar_select %p27, %s26, 3
  %s29 = smul.addr %s28, 4
  %s30 = scalar_lea.vmem %s1, %s29
  %s31 = sadd.s32 0, 1
  %s32 = smul.u32 2, %s31
  %p33 = scmp.lt.s32.totalorder %s32, 3
  %s34 = scalar_select %p33, %s32, 3
  %s35 = smul.addr %s34, 4
  %s36 = scalar_lea.vmem %s1, %s35
  %s37 = sadd.s32 0, 1
  %s38 = smul.u32 2, %s37
  %v39 = vld [vmem:[%s0] sm:$0xf]
  %v40 = vld [vmem:[%s0 + $0x4] sm:$0xf]
  %v41 = vld [vmem:[%s36] sm:$0xf]
  %v42 = vld [vmem:[%s36 + $0x4] sm:$0xf]
  %v45 = vunpack.c.l.b16 %v39
  %v46 = vunpack.c.l.b16 %v40
  %v47 = vpack.c.b16 %v46, %v45
  %v51 = vunpack.c.l.b16 %v41
  %v52 = vunpack.c.l.b16 %v42
  %v53 = vpack.c.b16 %v52, %v51
  %v54 = vld [vmem:[%s2] sm:$0xf]
  %v55 = vld [vmem:[%s2 + $0x4] sm:$0xf]
  %v56 = vld [vmem:[%s2 + $0x8] sm:$0xf]
  %v57 = vld [vmem:[%s2 + $0xc] sm:$0xf]
  %v58 = vld [vmem:[%s2 + $0x10] sm:$0xf]
  %v59 = vld [vmem:[%s2 + $0x14] sm:$0xf]
  %v60 = vld [vmem:[%s2 + $0x18] sm:$0xf]
  %v61 = vld [vmem:[%s2 + $0x1c] sm:$0xf]
  %v62 = vld [vmem:[%s2 + $0x20] sm:$0xf]
  %v63 = vld [vmem:[%s2 + $0x24] sm:$0xf]
  %v64 = vld [vmem:[%s2 + $0x28] sm:$0xf]
  %v65 = vld [vmem:[%s2 + $0x2c] sm:$0xf]
  %v66 = vld [vmem:[%s2 + $0x30] sm:$0xf]
  %v67 = vld [vmem:[%s2 + $0x34] sm:$0xf]
  %v68 = vld [vmem:[%s2 + $0x38] sm:$0xf]
  %v69 = vld [vmem:[%s2 + $0x3c] sm:$0xf]
  %s70 = scalar_lea.vmem %s2, 64
  %v71 = vld [vmem:[%s70] sm:$0xf]
  %v72 = vld [vmem:[%s70 + $0x4] sm:$0xf]
  %v73 = vld [vmem:[%s70 + $0x8] sm:$0xf]
  %v74 = vld [vmem:[%s70 + $0xc] sm:$0xf]
  %v75 = vld [vmem:[%s70 + $0x10] sm:$0xf]
  %v76 = vld [vmem:[%s70 + $0x14] sm:$0xf]
  %v77 = vld [vmem:[%s70 + $0x18] sm:$0xf]
  %v78 = vld [vmem:[%s70 + $0x1c] sm:$0xf]
  %v79 = vld [vmem:[%s70 + $0x20] sm:$0xf]
  %v80 = vld [vmem:[%s70 + $0x24] sm:$0xf]
  %v81 = vld [vmem:[%s70 + $0x28] sm:$0xf]
  %v82 = vld [vmem:[%s70 + $0x2c] sm:$0xf]
  %v83 = vld [vmem:[%s70 + $0x30] sm:$0xf]
  %v84 = vld [vmem:[%s70 + $0x34] sm:$0xf]
  %v85 = vld [vmem:[%s70 + $0x38] sm:$0xf]
  %v86 = vld [vmem:[%s70 + $0x3c] sm:$0xf]
  %vm87 = vsmask.f32 7424
  %v89 = vshrl.u32 %v47, 16
  %v91 = vshll.u32 %v47, 16
  %v93 = vrot.slane %v91, 1
  %v94 = vor.u32 %v89, %v93
  %v96 = vshll.u32 %v53, 16
  %v98 = vrot.slane %v96, 1
  %v99 = vsel %vm87, %v94, %v98
  %v117 = vunpack.c.l.b16 %v71
  %v118 = vunpack.c.l.b16 %v72
  %v119 = vunpack.c.l.b16 %v73
  %v120 = vunpack.c.l.b16 %v74
  %v121 = vunpack.c.l.b16 %v75
  %v122 = vunpack.c.l.b16 %v76
  %v123 = vunpack.c.l.b16 %v77
  %v124 = vunpack.c.l.b16 %v78
  %v125 = vunpack.c.l.b16 %v79
  %v126 = vunpack.c.l.b16 %v80
  %v127 = vunpack.c.l.b16 %v81
  %v128 = vunpack.c.l.b16 %v82
  %v129 = vunpack.c.l.b16 %v83
  %v130 = vunpack.c.l.b16 %v84
  %v131 = vunpack.c.l.b16 %v85
  %v132 = vunpack.c.l.b16 %v86
  %v133 = vpack.c.b16 %v118, %v117
  %v134 = vpack.c.b16 %v120, %v119
  %v135 = vpack.c.b16 %v122, %v121
  %v136 = vpack.c.b16 %v124, %v123
  %v137 = vpack.c.b16 %v126, %v125
  %v138 = vpack.c.b16 %v128, %v127
  %v139 = vpack.c.b16 %v130, %v129
  %v140 = vpack.c.b16 %v132, %v131
  %149 = vmatpush.bf16.msra.mxu0 %v140
  %150 = vmatpush.bf16.msra.mxu0 %v139
  %151 = vmatpush.bf16.msra.mxu0 %v138
  %152 = vmatpush.bf16.msra.mxu0 %v137
  %153 = vmatpush.bf16.msra.mxu0 %v136
  %154 = vmatpush.bf16.msra.mxu0 %v135
  %155 = vmatpush.bf16.msra.mxu0 %v134
  %156 = vmatpush.bf16.msra.mxu0 %v133
  %157 = vmatmul.bf16.gmra.mxu0 %v99
  %v158 = vpop.f32.mrf.mxu0
  %v159 = vadd.f32 0.0, %v158
  %v160 = vpop.f32.mrf.mxu0
  %v161 = vadd.f32 0.0, %v160
  %162 = vdwg.mxu0
  %v179 = vunpack.c.l.b16 %v54
  %v180 = vunpack.c.l.b16 %v55
  %v181 = vunpack.c.l.b16 %v56
  %v182 = vunpack.c.l.b16 %v57
  %v183 = vunpack.c.l.b16 %v58
  %v184 = vunpack.c.l.b16 %v59
  %v185 = vunpack.c.l.b16 %v60
  %v186 = vunpack.c.l.b16 %v61
  %v187 = vunpack.c.l.b16 %v62
  %v188 = vunpack.c.l.b16 %v63
  %v189 = vunpack.c.l.b16 %v64
  %v190 = vunpack.c.l.b16 %v65
  %v191 = vunpack.c.l.b16 %v66
  %v192 = vunpack.c.l.b16 %v67
  %v193 = vunpack.c.l.b16 %v68
  %v194 = vunpack.c.l.b16 %v69
  %v195 = vpack.c.b16 %v180, %v179
  %v196 = vpack.c.b16 %v182, %v181
  %v197 = vpack.c.b16 %v184, %v183
  %v198 = vpack.c.b16 %v186, %v185
  %v199 = vpack.c.b16 %v188, %v187
  %v200 = vpack.c.b16 %v190, %v189
  %v201 = vpack.c.b16 %v192, %v191
  %v202 = vpack.c.b16 %v194, %v193
  %211 = vmatpush.bf16.msra.mxu0 %v202
  %212 = vmatpush.bf16.msra.mxu0 %v201
  %213 = vmatpush.bf16.msra.mxu0 %v200
  %214 = vmatpush.bf16.msra.mxu0 %v199
  %215 = vmatpush.bf16.msra.mxu0 %v198
  %216 = vmatpush.bf16.msra.mxu0 %v197
  %217 = vmatpush.bf16.msra.mxu0 %v196
  %218 = vmatpush.bf16.msra.mxu0 %v195
  %219 = vmatmul.bf16.gmra.mxu0 %v47
  %v220 = vpop.f32.mrf.mxu0
  %v221 = vadd.f32 %v159, %v220
  %v222 = vpop.f32.mrf.mxu0
  %v223 = vadd.f32 %v161, %v222
  %224 = vdwg.mxu0
  %s225 = scalar_lea.vmem %s2, 128
  %v226 = vld [vmem:[%s225] sm:$0xf]
  %v227 = vld [vmem:[%s225 + $0x4] sm:$0xf]
  %v228 = vld [vmem:[%s225 + $0x8] sm:$0xf]
  %v229 = vld [vmem:[%s225 + $0xc] sm:$0xf]
  %v230 = vld [vmem:[%s225 + $0x10] sm:$0xf]
  %v231 = vld [vmem:[%s225 + $0x14] sm:$0xf]
  %v232 = vld [vmem:[%s225 + $0x18] sm:$0xf]
  %v233 = vld [vmem:[%s225 + $0x1c] sm:$0xf]
  %v234 = vld [vmem:[%s225 + $0x20] sm:$0xf]
  %v235 = vld [vmem:[%s225 + $0x24] sm:$0xf]
  %v236 = vld [vmem:[%s225 + $0x28] sm:$0xf]
  %v237 = vld [vmem:[%s225 + $0x2c] sm:$0xf]
  %v238 = vld [vmem:[%s225 + $0x30] sm:$0xf]
  %v239 = vld [vmem:[%s225 + $0x34] sm:$0xf]
  %v240 = vld [vmem:[%s225 + $0x38] sm:$0xf]
  %v241 = vld [vmem:[%s225 + $0x3c] sm:$0xf]
  %vm242 = vcmask 1046528
  %v243 = vrot.slane %v47, 1
  %v244 = vrot.slane %v53, 1
  %v245 = vsel %vm242, %v243, %v244
  %v263 = vunpack.c.l.b16 %v226
  %v264 = vunpack.c.l.b16 %v227
  %v265 = vunpack.c.l.b16 %v228
  %v266 = vunpack.c.l.b16 %v229
  %v267 = vunpack.c.l.b16 %v230
  %v268 = vunpack.c.l.b16 %v231
  %v269 = vunpack.c.l.b16 %v232
  %v270 = vunpack.c.l.b16 %v233
  %v271 = vunpack.c.l.b16 %v234
  %v272 = vunpack.c.l.b16 %v235
  %v273 = vunpack.c.l.b16 %v236
  %v274 = vunpack.c.l.b16 %v237
  %v275 = vunpack.c.l.b16 %v238
  %v276 = vunpack.c.l.b16 %v239
  %v277 = vunpack.c.l.b16 %v240
  %v278 = vunpack.c.l.b16 %v241
  %v279 = vpack.c.b16 %v264, %v263
  %v280 = vpack.c.b16 %v266, %v265
  %v281 = vpack.c.b16 %v268, %v267
  %v282 = vpack.c.b16 %v270, %v269
  %v283 = vpack.c.b16 %v272, %v271
  %v284 = vpack.c.b16 %v274, %v273
  %v285 = vpack.c.b16 %v276, %v275
  %v286 = vpack.c.b16 %v278, %v277
  %295 = vmatpush.bf16.msra.mxu0 %v286
  %296 = vmatpush.bf16.msra.mxu0 %v285
  %297 = vmatpush.bf16.msra.mxu0 %v284
  %298 = vmatpush.bf16.msra.mxu0 %v283
  %299 = vmatpush.bf16.msra.mxu0 %v282
  %300 = vmatpush.bf16.msra.mxu0 %v281
  %301 = vmatpush.bf16.msra.mxu0 %v280
  %302 = vmatpush.bf16.msra.mxu0 %v279
  %303 = vmatmul.bf16.gmra.mxu0 %v245
  %v304 = vpop.f32.mrf.mxu0
  %v305 = vadd.f32 0.0, %v304
  %v306 = vpop.f32.mrf.mxu0
  %v307 = vadd.f32 0.0, %v306
  %308 = vdwg.mxu0
  %v309 = vadd.f32 %v221, %v305
  %v310 = vadd.f32 %v223, %v307
  %s311 = scalar_lea.vmem %s2, 192
  %v312 = vld [vmem:[%s311] sm:$0xf]
  %v313 = vld [vmem:[%s311 + $0x4] sm:$0xf]
  %v314 = vld [vmem:[%s311 + $0x8] sm:$0xf]
  %v315 = vld [vmem:[%s311 + $0xc] sm:$0xf]
  %v316 = vld [vmem:[%s311 + $0x10] sm:$0xf]
  %v317 = vld [vmem:[%s311 + $0x14] sm:$0xf]
  %v318 = vld [vmem:[%s311 + $0x18] sm:$0xf]
  %v319 = vld [vmem:[%s311 + $0x1c] sm:$0xf]
  %v320 = vld [vmem:[%s311 + $0x20] sm:$0xf]
  %v321 = vld [vmem:[%s311 + $0x24] sm:$0xf]
  %v322 = vld [vmem:[%s311 + $0x28] sm:$0xf]
  %v323 = vld [vmem:[%s311 + $0x2c] sm:$0xf]
  %v324 = vld [vmem:[%s311 + $0x30] sm:$0xf]
  %v325 = vld [vmem:[%s311 + $0x34] sm:$0xf]
  %v326 = vld [vmem:[%s311 + $0x38] sm:$0xf]
  %v327 = vld [vmem:[%s311 + $0x3c] sm:$0xf]
  %vm328 = vsmask.f32 6400
  %v329 = vrot.slane %v89, 1
  %v330 = vrot.slane %v91, 2
  %v331 = vor.u32 %v329, %v330
  %v332 = vshrl.u32 %v53, 16
  %v334 = vrot.slane %v332, 1
  %v335 = vrot.slane %v96, 2
  %v336 = vor.u32 %v334, %v335
  %v337 = vsel %vm328, %v331, %v336
  %v355 = vunpack.c.l.b16 %v312
  %v356 = vunpack.c.l.b16 %v313
  %v357 = vunpack.c.l.b16 %v314
  %v358 = vunpack.c.l.b16 %v315
  %v359 = vunpack.c.l.b16 %v316
  %v360 = vunpack.c.l.b16 %v317
  %v361 = vunpack.c.l.b16 %v318
  %v362 = vunpack.c.l.b16 %v319
  %v363 = vunpack.c.l.b16 %v320
  %v364 = vunpack.c.l.b16 %v321
  %v365 = vunpack.c.l.b16 %v322
  %v366 = vunpack.c.l.b16 %v323
  %v367 = vunpack.c.l.b16 %v324
  %v368 = vunpack.c.l.b16 %v325
  %v369 = vunpack.c.l.b16 %v326
  %v370 = vunpack.c.l.b16 %v327
  %v371 = vpack.c.b16 %v356, %v355
  %v372 = vpack.c.b16 %v358, %v357
  %v373 = vpack.c.b16 %v360, %v359
  %v374 = vpack.c.b16 %v362, %v361
  %v375 = vpack.c.b16 %v364, %v363
  %v376 = vpack.c.b16 %v366, %v365
  %v377 = vpack.c.b16 %v368, %v367
  %v378 = vpack.c.b16 %v370, %v369
  %387 = vmatpush.bf16.msra.mxu0 %v378
  %388 = vmatpush.bf16.msra.mxu0 %v377
  %389 = vmatpush.bf16.msra.mxu0 %v376
  %390 = vmatpush.bf16.msra.mxu0 %v375
  %391 = vmatpush.bf16.msra.mxu0 %v374
  %392 = vmatpush.bf16.msra.mxu0 %v373
  %393 = vmatpush.bf16.msra.mxu0 %v372
  %394 = vmatpush.bf16.msra.mxu0 %v371
  %395 = vmatmul.bf16.gmra.mxu0 %v337
  %v396 = vpop.f32.mrf.mxu0
  %v397 = vadd.f32 0.0, %v396
  %v398 = vpop.f32.mrf.mxu0
  %v399 = vadd.f32 0.0, %v398
  %400 = vdwg.mxu0
  %v401 = vadd.f32 %v309, %v397
  %v402 = vadd.f32 %v310, %v399
  %v403 = vld [vmem:[%s3] sm:$0x1]
  %v405 = vperm.slane %v403, 0
  %v407 = vadd.f32 %v401, %v405
  %v408 = vadd.f32 %v402, %v405
  %v409 = vmul.f32 %v407, 0.2
  %v410 = vmul.f32 %v408, 0.2
  %v411 = vmax.f32 %v407, %v409
  %v412 = vmax.f32 %v408, %v410
  %v413 = vpack.c.bf16 %v411, %v411
  %v414 = vpack.c.bf16 %v412, %v412
  %415 = vst [vmem:[%s4] sm:$0xf] %v413
  %416 = vst [vmem:[%s4 + $0x4] sm:$0xf] %v414
  // Predicated region
  $region18: #{discriminator_forward.8} parent=0 // pred_check
    _
  $region19: #{discriminator_forward.8} parent=0 // pred_check_branch
    %418 = sbr.rel (0) target = $region21
  $region20: #{discriminator_forward.8} parent=0 // pred_region
    _
  $region21: #{discriminator_forward.8} parent=0 // pred_fallthru
    _
  // Predicated region
  $region22: #{discriminator_forward.8} parent=0 // pred_check
    _
  $region23: #{discriminator_forward.8} parent=0 // pred_check_branch
    %420 = sbr.rel (0) target = $region25
  $region24: #{discriminator_forward.8} parent=0 // pred_region
    _
  $region25: #{discriminator_forward.8} parent=0 // pred_fallthru
    _

// kernel: discriminator_forward.9
$region0: #{discriminator_forward.9}
  #allocation0 [shape = 'u32[]', space=smem, size = 0x4, offset = 0x4, fixed_abs, tag = 'smem constant byte address 0x4 - core index']
  #allocation1 [shape = 'u32[72,128]{1,0:T(1,128)}', space=vmem, size = 0x9000, scoped, tag = 'internal scratch']
  %s0 = inlined_call_operand.vmem [shape: bf16[8,128], index: 0, kind: input, shape index: {}]
  %s1 = inlined_call_operand.vmem [shape: bf16[7,128,128], index: 1, kind: input, shape index: {}]
  %s2 = inlined_call_operand.vmem [shape: f32[7,1,128], index: 2, kind: input, shape index: {}]
  %s3 = inlined_call_operand.vmem [shape: f32[8,128], index: 3, kind: output, shape index: {}]
  %s4 = sld [smem:[#allocation0]]
  $region22: #{discriminator_forward.9} parent=0
    _
  %s6 = ssub.s32 1, %s4
  %s7 = scalar_select 0, %s6, %s4
  // Predicated region
  $region2: #{discriminator_forward.9} parent=0 // pred_check
    _
  $region3: #{discriminator_forward.9} parent=0 // pred_check_branch
    %9 = sbr.rel (0) target = $region5
  $region4: #{discriminator_forward.9} parent=0 // pred_region
    _
  $region5: #{discriminator_forward.9} parent=0 // pred_fallthru
    _
  // Predicated region
  $region6: #{discriminator_forward.9} parent=0 // pred_check
    _
  $region7: #{discriminator_forward.9} parent=0 // pred_check_branch
    %11 = sbr.rel (0) target = $region9
  $region8: #{discriminator_forward.9} parent=0 // pred_region
    _
  $region9: #{discriminator_forward.9} parent=0 // pred_fallthru
    _
  // Predicated region
  $region10: #{discriminator_forward.9} parent=0 // pred_check
    _
  $region11: #{discriminator_forward.9} parent=0 // pred_check_branch
    %13 = sbr.rel (0) target = $region13
  $region12: #{discriminator_forward.9} parent=0 // pred_region
    _
  $region13: #{discriminator_forward.9} parent=0 // pred_fallthru
    _
  %v14 = vld [vmem:[%s0] sm:$0xf]
  %v15 = vld [vmem:[%s1] sm:$0xf]
  %v16 = vld [vmem:[%s1 + $0x4] sm:$0xf]
  %v17 = vld [vmem:[%s1 + $0x8] sm:$0xf]
  %v18 = vld [vmem:[%s1 + $0xc] sm:$0xf]
  %v19 = vld [vmem:[%s1 + $0x10] sm:$0xf]
  %v20 = vld [vmem:[%s1 + $0x14] sm:$0xf]
  %v21 = vld [vmem:[%s1 + $0x18] sm:$0xf]
  %v22 = vld [vmem:[%s1 + $0x1c] sm:$0xf]
  %v23 = vld [vmem:[%s1 + $0x20] sm:$0xf]
  %v24 = vld [vmem:[%s1 + $0x24] sm:$0xf]
  %v25 = vld [vmem:[%s1 + $0x28] sm:$0xf]
  %v26 = vld [vmem:[%s1 + $0x2c] sm:$0xf]
  %v27 = vld [vmem:[%s1 + $0x30] sm:$0xf]
  %v28 = vld [vmem:[%s1 + $0x34] sm:$0xf]
  %v29 = vld [vmem:[%s1 + $0x38] sm:$0xf]
  %v30 = vld [vmem:[%s1 + $0x3c] sm:$0xf]
  %v31 = vld [vmem:[%s2] sm:$0x1]
  %v33 = vperm.slane %v31, 0
  %v51 = vunpack.c.l.b16 %v15
  %v52 = vunpack.c.l.b16 %v16
  %v53 = vunpack.c.l.b16 %v17
  %v54 = vunpack.c.l.b16 %v18
  %v55 = vunpack.c.l.b16 %v19
  %v56 = vunpack.c.l.b16 %v20
  %v57 = vunpack.c.l.b16 %v21
  %v58 = vunpack.c.l.b16 %v22
  %v59 = vunpack.c.l.b16 %v23
  %v60 = vunpack.c.l.b16 %v24
  %v61 = vunpack.c.l.b16 %v25
  %v62 = vunpack.c.l.b16 %v26
  %v63 = vunpack.c.l.b16 %v27
  %v64 = vunpack.c.l.b16 %v28
  %v65 = vunpack.c.l.b16 %v29
  %v66 = vunpack.c.l.b16 %v30
  %v67 = vpack.c.b16 %v52, %v51
  %v68 = vpack.c.b16 %v54, %v53
  %v69 = vpack.c.b16 %v56, %v55
  %v70 = vpack.c.b16 %v58, %v57
  %v71 = vpack.c.b16 %v60, %v59
  %v72 = vpack.c.b16 %v62, %v61
  %v73 = vpack.c.b16 %v64, %v63
  %v74 = vpack.c.b16 %v66, %v65
  %83 = vmatpush.bf16.msra.mxu0 %v74
  %84 = vmatpush.bf16.msra.mxu0 %v73
  %85 = vmatpush.bf16.msra.mxu0 %v72
  %86 = vmatpush.bf16.msra.mxu0 %v71
  %87 = vmatpush.bf16.msra.mxu0 %v70
  %88 = vmatpush.bf16.msra.mxu0 %v69
  %89 = vmatpush.bf16.msra.mxu0 %v68
  %90 = vmatpush.bf16.msra.mxu0 %v67
  %91 = vmatmul.bf16.gmra.mxu0 %v14
  %v92 = vpop.f32.mrf.mxu0
  %v93 = vadd.f32 %v33, %v92
  %v94 = vpop.f32.mrf.mxu0
  %95 = vdwg.mxu0
  %v96 = vmul.f32 %v93, 0.2
  %v97 = vmax.f32 %v93, %v96
  %v98 = vpack.c.bf16 %v97, %v97
  %s99 = scalar_lea.vmem %s1, 64
  %v100 = vld [vmem:[%s99] sm:$0xf]
  %v101 = vld [vmem:[%s99 + $0x4] sm:$0xf]
  %v102 = vld [vmem:[%s99 + $0x8] sm:$0xf]
  %v103 = vld [vmem:[%s99 + $0xc] sm:$0xf]
  %v104 = vld [vmem:[%s99 + $0x10] sm:$0xf]
  %v105 = vld [vmem:[%s99 + $0x14] sm:$0xf]
  %v106 = vld [vmem:[%s99 + $0x18] sm:$0xf]
  %v107 = vld [vmem:[%s99 + $0x1c] sm:$0xf]
  %v108 = vld [vmem:[%s99 + $0x20] sm:$0xf]
  %v109 = vld [vmem:[%s99 + $0x24] sm:$0xf]
  %v110 = vld [vmem:[%s99 + $0x28] sm:$0xf]
  %v111 = vld [vmem:[%s99 + $0x2c] sm:$0xf]
  %v112 = vld [vmem:[%s99 + $0x30] sm:$0xf]
  %v113 = vld [vmem:[%s99 + $0x34] sm:$0xf]
  %v114 = vld [vmem:[%s99 + $0x38] sm:$0xf]
  %v115 = vld [vmem:[%s99 + $0x3c] sm:$0xf]
  %s116 = scalar_lea.vmem %s2, 1
  %v117 = vld [vmem:[%s116] sm:$0x1]
  %v119 = vperm.slane %v117, 0
  %v137 = vunpack.c.l.b16 %v100
  %v138 = vunpack.c.l.b16 %v101
  %v139 = vunpack.c.l.b16 %v102
  %v140 = vunpack.c.l.b16 %v103
  %v141 = vunpack.c.l.b16 %v104
  %v142 = vunpack.c.l.b16 %v105
  %v143 = vunpack.c.l.b16 %v106
  %v144 = vunpack.c.l.b16 %v107
  %v145 = vunpack.c.l.b16 %v108
  %v146 = vunpack.c.l.b16 %v109
  %v147 = vunpack.c.l.b16 %v110
  %v148 = vunpack.c.l.b16 %v111
  %v149 = vunpack.c.l.b16 %v112
  %v150 = vunpack.c.l.b16 %v113
  %v151 = vunpack.c.l.b16 %v114
  %v152 = vunpack.c.l.b16 %v115
  %v153 = vpack.c.b16 %v138, %v137
  %v154 = vpack.c.b16 %v140, %v139
  %v155 = vpack.c.b16 %v142, %v141
  %v156 = vpack.c.b16 %v144, %v143
  %v157 = vpack.c.b16 %v146, %v145
  %v158 = vpack.c.b16 %v148, %v147
  %v159 = vpack.c.b16 %v150, %v149
  %v160 = vpack.c.b16 %v152, %v151
  %169 = vmatpush.bf16.msra.mxu0 %v160
  %170 = vmatpush.bf16.msra.mxu0 %v159
  %171 = vmatpush.bf16.msra.mxu0 %v158
  %172 = vmatpush.bf16.msra.mxu0 %v157
  %173 = vmatpush.bf16.msra.mxu0 %v156
  %174 = vmatpush.bf16.msra.mxu0 %v155
  %175 = vmatpush.bf16.msra.mxu0 %v154
  %176 = vmatpush.bf16.msra.mxu0 %v153
  %177 = vmatmul.bf16.gmra.mxu0 %v98
  %v178 = vpop.f32.mrf.mxu0
  %v179 = vadd.f32 %v119, %v178
  %v180 = vpop.f32.mrf.mxu0
  %181 = vdwg.mxu0
  %v182 = vmul.f32 %v179, 0.2
  %v183 = vmax.f32 %v179, %v182
  %v184 = vpack.c.bf16 %v183, %v183
  %s185 = scalar_lea.vmem %s1, 128
  %v186 = vld [vmem:[%s185] sm:$0xf]
  %v187 = vld [vmem:[%s185 + $0x4] sm:$0xf]
  %v188 = vld [vmem:[%s185 + $0x8] sm:$0xf]
  %v189 = vld [vmem:[%s185 + $0xc] sm:$0xf]
  %v190 = vld [vmem:[%s185 + $0x10] sm:$0xf]
  %v191 = vld [vmem:[%s185 + $0x14] sm:$0xf]
  %v192 = vld [vmem:[%s185 + $0x18] sm:$0xf]
  %v193 = vld [vmem:[%s185 + $0x1c] sm:$0xf]
  %v194 = vld [vmem:[%s185 + $0x20] sm:$0xf]
  %v195 = vld [vmem:[%s185 + $0x24] sm:$0xf]
  %v196 = vld [vmem:[%s185 + $0x28] sm:$0xf]
  %v197 = vld [vmem:[%s185 + $0x2c] sm:$0xf]
  %v198 = vld [vmem:[%s185 + $0x30] sm:$0xf]
  %v199 = vld [vmem:[%s185 + $0x34] sm:$0xf]
  %v200 = vld [vmem:[%s185 + $0x38] sm:$0xf]
  %v201 = vld [vmem:[%s185 + $0x3c] sm:$0xf]
  %s202 = scalar_lea.vmem %s2, 2
  %v203 = vld [vmem:[%s202] sm:$0x1]
  %v205 = vperm.slane %v203, 0
  %v223 = vunpack.c.l.b16 %v186
  %v224 = vunpack.c.l.b16 %v187
  %v225 = vunpack.c.l.b16 %v188
  %v226 = vunpack.c.l.b16 %v189
  %v227 = vunpack.c.l.b16 %v190
  %v228 = vunpack.c.l.b16 %v191
  %v229 = vunpack.c.l.b16 %v192
  %v230 = vunpack.c.l.b16 %v193
  %v231 = vunpack.c.l.b16 %v194
  %v232 = vunpack.c.l.b16 %v195
  %v233 = vunpack.c.l.b16 %v196
  %v234 = vunpack.c.l.b16 %v197
  %v235 = vunpack.c.l.b16 %v198
  %v236 = vunpack.c.l.b16 %v199
  %v237 = vunpack.c.l.b16 %v200
  %v238 = vunpack.c.l.b16 %v201
  %v239 = vpack.c.b16 %v224, %v223
  %v240 = vpack.c.b16 %v226, %v225
  %v241 = vpack.c.b16 %v228, %v227
  %v242 = vpack.c.b16 %v230, %v229
  %v243 = vpack.c.b16 %v232, %v231
  %v244 = vpack.c.b16 %v234, %v233
  %v245 = vpack.c.b16 %v236, %v235
  %v246 = vpack.c.b16 %v238, %v237
  %255 = vmatpush.bf16.msra.mxu0 %v246
  %256 = vmatpush.bf16.msra.mxu0 %v245
  %257 = vmatpush.bf16.msra.mxu0 %v244
  %258 = vmatpush.bf16.msra.mxu0 %v243
  %259 = vmatpush.bf16.msra.mxu0 %v242
  %260 = vmatpush.bf16.msra.mxu0 %v241
  %261 = vmatpush.bf16.msra.mxu0 %v240
  %262 = vmatpush.bf16.msra.mxu0 %v239
  %263 = vmatmul.bf16.gmra.mxu0 %v184
  %v264 = vpop.f32.mrf.mxu0
  %v265 = vadd.f32 %v205, %v264
  %v266 = vpop.f32.mrf.mxu0
  %267 = vdwg.mxu0
  %v268 = vmul.f32 %v265, 0.2
  %v269 = vmax.f32 %v265, %v268
  %v270 = vpack.c.bf16 %v269, %v269
  %s271 = scalar_lea.vmem %s1, 192
  %v272 = vld [vmem:[%s271] sm:$0xf]
  %v273 = vld [vmem:[%s271 + $0x4] sm:$0xf]
  %v274 = vld [vmem:[%s271 + $0x8] sm:$0xf]
  %v275 = vld [vmem:[%s271 + $0xc] sm:$0xf]
  %v276 = vld [vmem:[%s271 + $0x10] sm:$0xf]
  %v277 = vld [vmem:[%s271 + $0x14] sm:$0xf]
  %v278 = vld [vmem:[%s271 + $0x18] sm:$0xf]
  %v279 = vld [vmem:[%s271 + $0x1c] sm:$0xf]
  %v280 = vld [vmem:[%s271 + $0x20] sm:$0xf]
  %v281 = vld [vmem:[%s271 + $0x24] sm:$0xf]
  %v282 = vld [vmem:[%s271 + $0x28] sm:$0xf]
  %v283 = vld [vmem:[%s271 + $0x2c] sm:$0xf]
  %v284 = vld [vmem:[%s271 + $0x30] sm:$0xf]
  %v285 = vld [vmem:[%s271 + $0x34] sm:$0xf]
  %v286 = vld [vmem:[%s271 + $0x38] sm:$0xf]
  %v287 = vld [vmem:[%s271 + $0x3c] sm:$0xf]
  %s288 = scalar_lea.vmem %s2, 3
  %v289 = vld [vmem:[%s288] sm:$0x1]
  %v291 = vperm.slane %v289, 0
  %v309 = vunpack.c.l.b16 %v272
  %v310 = vunpack.c.l.b16 %v273
  %v311 = vunpack.c.l.b16 %v274
  %v312 = vunpack.c.l.b16 %v275
  %v313 = vunpack.c.l.b16 %v276
  %v314 = vunpack.c.l.b16 %v277
  %v315 = vunpack.c.l.b16 %v278
  %v316 = vunpack.c.l.b16 %v279
  %v317 = vunpack.c.l.b16 %v280
  %v318 = vunpack.c.l.b16 %v281
  %v319 = vunpack.c.l.b16 %v282
  %v320 = vunpack.c.l.b16 %v283
  %v321 = vunpack.c.l.b16 %v284
  %v322 = vunpack.c.l.b16 %v285
  %v323 = vunpack.c.l.b16 %v286
  %v324 = vunpack.c.l.b16 %v287
  %v325 = vpack.c.b16 %v310, %v309
  %v326 = vpack.c.b16 %v312, %v311
  %v327 = vpack.c.b16 %v314, %v313
  %v328 = vpack.c.b16 %v316, %v315
  %v329 = vpack.c.b16 %v318, %v317
  %v330 = vpack.c.b16 %v320, %v319
  %v331 = vpack.c.b16 %v322, %v321
  %v332 = vpack.c.b16 %v324, %v323
  %341 = vmatpush.bf16.msra.mxu0 %v332
  %342 = vmatpush.bf16.msra.mxu0 %v331
  %343 = vmatpush.bf16.msra.mxu0 %v330
  %344 = vmatpush.bf16.msra.mxu0 %v329
  %345 = vmatpush.bf16.msra.mxu0 %v328
  %346 = vmatpush.bf16.msra.mxu0 %v327
  %347 = vmatpush.bf16.msra.mxu0 %v326
  %348 = vmatpush.bf16.msra.mxu0 %v325
  %349 = vmatmul.bf16.gmra.mxu0 %v270
  %v350 = vpop.f32.mrf.mxu0
  %v351 = vadd.f32 %v291, %v350
  %v352 = vpop.f32.mrf.mxu0
  %353 = vdwg.mxu0
  %v354 = vmul.f32 %v351, 0.2
  %v355 = vmax.f32 %v351, %v354
  %v356 = vpack.c.bf16 %v355, %v355
  %s357 = scalar_lea.vmem %s1, 256
  %v358 = vld [vmem:[%s357] sm:$0xf]
  %v359 = vld [vmem:[%s357 + $0x4] sm:$0xf]
  %v360 = vld [vmem:[%s357 + $0x8] sm:$0xf]
  %v361 = vld [vmem:[%s357 + $0xc] sm:$0xf]
  %v362 = vld [vmem:[%s357 + $0x10] sm:$0xf]
  %v363 = vld [vmem:[%s357 + $0x14] sm:$0xf]
  %v364 = vld [vmem:[%s357 + $0x18] sm:$0xf]
  %v365 = vld [vmem:[%s357 + $0x1c] sm:$0xf]
  %v366 = vld [vmem:[%s357 + $0x20] sm:$0xf]
  %v367 = vld [vmem:[%s357 + $0x24] sm:$0xf]
  %v368 = vld [vmem:[%s357 + $0x28] sm:$0xf]
  %v369 = vld [vmem:[%s357 + $0x2c] sm:$0xf]
  %v370 = vld [vmem:[%s357 + $0x30] sm:$0xf]
  %v371 = vld [vmem:[%s357 + $0x34] sm:$0xf]
  %v372 = vld [vmem:[%s357 + $0x38] sm:$0xf]
  %v373 = vld [vmem:[%s357 + $0x3c] sm:$0xf]
  %s374 = scalar_lea.vmem %s2, 4
  %v375 = vld [vmem:[%s374] sm:$0x1]
  %v377 = vperm.slane %v375, 0
  %v395 = vunpack.c.l.b16 %v358
  %v396 = vunpack.c.l.b16 %v359
  %v397 = vunpack.c.l.b16 %v360
  %v398 = vunpack.c.l.b16 %v361
  %v399 = vunpack.c.l.b16 %v362
  %v400 = vunpack.c.l.b16 %v363
  %v401 = vunpack.c.l.b16 %v364
  %v402 = vunpack.c.l.b16 %v365
  %v403 = vunpack.c.l.b16 %v366
  %v404 = vunpack.c.l.b16 %v367
  %v405 = vunpack.c.l.b16 %v368
  %v406 = vunpack.c.l.b16 %v369
  %v407 = vunpack.c.l.b16 %v370
  %v408 = vunpack.c.l.b16 %v371
  %v409 = vunpack.c.l.b16 %v372
  %v410 = vunpack.c.l.b16 %v373
  %v411 = vpack.c.b16 %v396, %v395
  %v412 = vpack.c.b16 %v398, %v397
  %v413 = vpack.c.b16 %v400, %v399
  %v414 = vpack.c.b16 %v402, %v401
  %v415 = vpack.c.b16 %v404, %v403
  %v416 = vpack.c.b16 %v406, %v405
  %v417 = vpack.c.b16 %v408, %v407
  %v418 = vpack.c.b16 %v410, %v409
  %427 = vmatpush.bf16.msra.mxu0 %v418
  %428 = vmatpush.bf16.msra.mxu0 %v417
  %429 = vmatpush.bf16.msra.mxu0 %v416
  %430 = vmatpush.bf16.msra.mxu0 %v415
  %431 = vmatpush.bf16.msra.mxu0 %v414
  %432 = vmatpush.bf16.msra.mxu0 %v413
  %433 = vmatpush.bf16.msra.mxu0 %v412
  %434 = vmatpush.bf16.msra.mxu0 %v411
  %435 = vmatmul.bf16.gmra.mxu0 %v356
  %v436 = vpop.f32.mrf.mxu0
  %v437 = vadd.f32 %v377, %v436
  %v438 = vpop.f32.mrf.mxu0
  %439 = vdwg.mxu0
  %v440 = vmul.f32 %v437, 0.2
  %v441 = vmax.f32 %v437, %v440
  %v442 = vpack.c.bf16 %v441, %v441
  %s443 = scalar_lea.vmem %s1, 320
  %v444 = vld [vmem:[%s443] sm:$0xf]
  %v445 = vld [vmem:[%s443 + $0x4] sm:$0xf]
  %v446 = vld [vmem:[%s443 + $0x8] sm:$0xf]
  %v447 = vld [vmem:[%s443 + $0xc] sm:$0xf]
  %v448 = vld [vmem:[%s443 + $0x10] sm:$0xf]
  %v449 = vld [vmem:[%s443 + $0x14] sm:$0xf]
  %v450 = vld [vmem:[%s443 + $0x18] sm:$0xf]
  %v451 = vld [vmem:[%s443 + $0x1c] sm:$0xf]
  %v452 = vld [vmem:[%s443 + $0x20] sm:$0xf]
  %v453 = vld [vmem:[%s443 + $0x24] sm:$0xf]
  %v454 = vld [vmem:[%s443 + $0x28] sm:$0xf]
  %v455 = vld [vmem:[%s443 + $0x2c] sm:$0xf]
  %v456 = vld [vmem:[%s443 + $0x30] sm:$0xf]
  %v457 = vld [vmem:[%s443 + $0x34] sm:$0xf]
  %v458 = vld [vmem:[%s443 + $0x38] sm:$0xf]
  %v459 = vld [vmem:[%s443 + $0x3c] sm:$0xf]
  %s460 = scalar_lea.vmem %s2, 5
  %v461 = vld [vmem:[%s460] sm:$0x1]
  %v463 = vperm.slane %v461, 0
  %v481 = vunpack.c.l.b16 %v444
  %v482 = vunpack.c.l.b16 %v445
  %v483 = vunpack.c.l.b16 %v446
  %v484 = vunpack.c.l.b16 %v447
  %v485 = vunpack.c.l.b16 %v448
  %v486 = vunpack.c.l.b16 %v449
  %v487 = vunpack.c.l.b16 %v450
  %v488 = vunpack.c.l.b16 %v451
  %v489 = vunpack.c.l.b16 %v452
  %v490 = vunpack.c.l.b16 %v453
  %v491 = vunpack.c.l.b16 %v454
  %v492 = vunpack.c.l.b16 %v455
  %v493 = vunpack.c.l.b16 %v456
  %v494 = vunpack.c.l.b16 %v457
  %v495 = vunpack.c.l.b16 %v458
  %v496 = vunpack.c.l.b16 %v459
  %v497 = vpack.c.b16 %v482, %v481
  %v498 = vpack.c.b16 %v484, %v483
  %v499 = vpack.c.b16 %v486, %v485
  %v500 = vpack.c.b16 %v488, %v487
  %v501 = vpack.c.b16 %v490, %v489
  %v502 = vpack.c.b16 %v492, %v491
  %v503 = vpack.c.b16 %v494, %v493
  %v504 = vpack.c.b16 %v496, %v495
  %513 = vmatpush.bf16.msra.mxu0 %v504
  %514 = vmatpush.bf16.msra.mxu0 %v503
  %515 = vmatpush.bf16.msra.mxu0 %v502
  %516 = vmatpush.bf16.msra.mxu0 %v501
  %517 = vmatpush.bf16.msra.mxu0 %v500
  %518 = vmatpush.bf16.msra.mxu0 %v499
  %519 = vmatpush.bf16.msra.mxu0 %v498
  %520 = vmatpush.bf16.msra.mxu0 %v497
  %521 = vmatmul.bf16.gmra.mxu0 %v442
  %v522 = vpop.f32.mrf.mxu0
  %v523 = vadd.f32 %v463, %v522
  %v524 = vpop.f32.mrf.mxu0
  %525 = vdwg.mxu0
  %v526 = vmul.f32 %v523, 0.2
  %v527 = vmax.f32 %v523, %v526
  %v528 = vpack.c.bf16 %v527, %v527
  %s529 = scalar_lea.vmem %s1, 384
  %v530 = vld [vmem:[%s529] sm:$0xf]
  %v531 = vld [vmem:[%s529 + $0x4] sm:$0xf]
  %v532 = vld [vmem:[%s529 + $0x8] sm:$0xf]
  %v533 = vld [vmem:[%s529 + $0xc] sm:$0xf]
  %v534 = vld [vmem:[%s529 + $0x10] sm:$0xf]
  %v535 = vld [vmem:[%s529 + $0x14] sm:$0xf]
  %v536 = vld [vmem:[%s529 + $0x18] sm:$0xf]
  %v537 = vld [vmem:[%s529 + $0x1c] sm:$0xf]
  %v538 = vld [vmem:[%s529 + $0x20] sm:$0xf]
  %v539 = vld [vmem:[%s529 + $0x24] sm:$0xf]
  %v540 = vld [vmem:[%s529 + $0x28] sm:$0xf]
  %v541 = vld [vmem:[%s529 + $0x2c] sm:$0xf]
  %v542 = vld [vmem:[%s529 + $0x30] sm:$0xf]
  %v543 = vld [vmem:[%s529 + $0x34] sm:$0xf]
  %v544 = vld [vmem:[%s529 + $0x38] sm:$0xf]
  %v545 = vld [vmem:[%s529 + $0x3c] sm:$0xf]
  %s546 = scalar_lea.vmem %s2, 6
  %v547 = vld [vmem:[%s546] sm:$0x1]
  %v549 = vperm.slane %v547, 0
  %v567 = vunpack.c.l.b16 %v530
  %v568 = vunpack.c.l.b16 %v531
  %v569 = vunpack.c.l.b16 %v532
  %v570 = vunpack.c.l.b16 %v533
  %v571 = vunpack.c.l.b16 %v534
  %v572 = vunpack.c.l.b16 %v535
  %v573 = vunpack.c.l.b16 %v536
  %v574 = vunpack.c.l.b16 %v537
  %v575 = vunpack.c.l.b16 %v538
  %v576 = vunpack.c.l.b16 %v539
  %v577 = vunpack.c.l.b16 %v540
  %v578 = vunpack.c.l.b16 %v541
  %v579 = vunpack.c.l.b16 %v542
  %v580 = vunpack.c.l.b16 %v543
  %v581 = vunpack.c.l.b16 %v544
  %v582 = vunpack.c.l.b16 %v545
  %v583 = vpack.c.b16 %v568, %v567
  %v584 = vpack.c.b16 %v570, %v569
  %v585 = vpack.c.b16 %v572, %v571
  %v586 = vpack.c.b16 %v574, %v573
  %v587 = vpack.c.b16 %v576, %v575
  %v588 = vpack.c.b16 %v578, %v577
  %v589 = vpack.c.b16 %v580, %v579
  %v590 = vpack.c.b16 %v582, %v581
  %599 = vmatpush.bf16.msra.mxu0 %v590
  %600 = vmatpush.bf16.msra.mxu0 %v589
  %601 = vmatpush.bf16.msra.mxu0 %v588
  %602 = vmatpush.bf16.msra.mxu0 %v587
  %603 = vmatpush.bf16.msra.mxu0 %v586
  %604 = vmatpush.bf16.msra.mxu0 %v585
  %605 = vmatpush.bf16.msra.mxu0 %v584
  %606 = vmatpush.bf16.msra.mxu0 %v583
  %607 = vmatmul.bf16.gmra.mxu0 %v528
  %v608 = vpop.f32.mrf.mxu0
  %v609 = vadd.f32 %v549, %v608
  %v610 = vpop.f32.mrf.mxu0
  %611 = vdwg.mxu0
  %v612 = vsub.f32 0.0, %v609
  %v613 = vmul.f32 %v612, 1.442695
  %v614 = vpow.pop %v613
  %v615 = vadd.f32 %v614, 1.0
  %v616 = vrcp.pop %v615
  %617 = vst [vmem:[%s3] sm:$0xff] %v616
  // Predicated region
  $region14: #{discriminator_forward.9} parent=0 // pred_check
    _
  $region15: #{discriminator_forward.9} parent=0 // pred_check_branch
    %619 = sbr.rel (0) target = $region17
  $region16: #{discriminator_forward.9} parent=0 // pred_region
    _
  $region17: #{discriminator_forward.9} parent=0 // pred_fallthru
    _
  // Predicated region
  $region18: #{discriminator_forward.9} parent=0 // pred_check
    _
  $region19: #{discriminator_forward.9} parent=0 // pred_check_branch
    %621 = sbr.rel (0) target = $region21
  $region20: #{discriminator_forward.9} parent=0 // pred_region
    _
  $region21: #{discriminator_forward.9} parent=0 // pred_fallthru
    _

</llo_original>
